<compile_context>
chip_gen: v5e
topology: v5e:2x2
jax: 0.10.0
libtpu: 0.0.40
codegen_flags: <defaults>
</compile_context>

<pallas_src>
import jax
import jax.numpy as jnp
from jax.experimental import pallas as pl
from jax.experimental.pallas import tpu as pltpu

LANE = 128          # TPU lane width; feature axes are zero-padded to this.
NUM_LEVELS = 3      # len(d_list) - 1 UFG levels.


def _round_up(a, b):
    return ((a + b - 1) // b) * b


def _log_softmax_masked(logits, valid_cols):
    """log_softmax over lanes, with padded class lanes masked out."""
    col = jax.lax.broadcasted_iota(jnp.int32, logits.shape, 1)
    logits = jnp.where(col < valid_cols, logits, -1e30)
    m = jnp.max(logits, axis=1, keepdims=True)
    s = logits - m
    lse = jnp.log(jnp.sum(jnp.exp(s), axis=1, keepdims=True))
    return s - lse


# --------------------------------------------------------------------------
# Fused single-launch kernel (small graphs: A, h, h2 all resident in VMEM)
# --------------------------------------------------------------------------
def _make_fused_kernel(num_levels, hp, valid_cols):
    def kernel(x_ref, w1_ref, b1_ref, a_ref, f1_ref, w2_ref, b2_ref,
               f2_ref, w3_ref, b3_ref, o_ref):
        # linear1 (small K, f32 is fine).
        h = (jnp.dot(x_ref[...], w1_ref[...],
                     preferred_element_type=jnp.float32) + b1_ref[...])

        def ufg_block(src_f32, filt_ref, w_ref, b_ref):
            # 3-level propagate (bf16 MXU, f32 accum) + filter + ReLU + Linear.
            src = src_f32.astype(jnp.bfloat16)
            out = b_ref[...].astype(jnp.float32)
            for l in range(num_levels):
                p = jnp.dot(a_ref[l], src, preferred_element_type=jnp.float32)
                p = jnp.maximum(p * filt_ref[l], 0.0)
                out = out + jnp.dot(p, w_ref[l * hp:(l + 1) * hp, :],
                                    preferred_element_type=jnp.float32)
            return out

        h2 = ufg_block(h, f1_ref, w2_ref, b2_ref)           # mlp2
        logits = ufg_block(h2, f2_ref, w3_ref, b3_ref)       # mlp1
        o_ref[...] = _log_softmax_masked(logits, valid_cols).astype(o_ref.dtype)

    return kernel


def _fused_forward(xp, p):
    np_tot, f = xp.shape
    nl = p["A"].shape[0]
    hp = p["f1"].shape[-1]
    cp = p["b3"].shape[-1]
    c = p["num_classes"]

    args = (xp, p["w1"], p["b1"], p["A"], p["f1"], p["w2"], p["b2"],
            p["f2"], p["w3"], p["b3"])
    vmem_spec = pl.BlockSpec(memory_space=pltpu.MemorySpace.VMEM)

    arg_bytes = sum(int(a.size) * a.dtype.itemsize for a in args)
    out_bytes = np_tot * cp * 4
    # Everything is resident (grid == () -> no pipelining); intermediates are a
    # handful of (Np, 128) f32 slabs, covered by the margin.
    vmem_limit = int(min(60 * 2**20, arg_bytes + out_bytes + 16 * 2**20))

    flops = (2 * np_tot * f * hp                         # linear1
             + 2 * 2 * nl * np_tot * np_tot * hp         # two propagates
             + 2 * nl * np_tot * hp * (hp + cp))         # mlp2 + mlp1
    return pl.pallas_call(
        _make_fused_kernel(nl, hp, c),
        out_shape=jax.ShapeDtypeStruct((np_tot, cp), jnp.float32),
        in_specs=[vmem_spec] * len(args),
        out_specs=vmem_spec,
        compiler_params=pltpu.CompilerParams(vmem_limit_bytes=vmem_limit),
        cost_estimate=pl.CostEstimate(flops=int(flops),
                                      transcendentals=int(np_tot * cp),
                                      bytes_accessed=int(arg_bytes + out_bytes)),
    )(*args)


# --------------------------------------------------------------------------
# Tiled kernel: one UFG block (opt. input Linear) + ReLU -> Linear (+ log_sm)
# --------------------------------------------------------------------------
def _make_ufg_block_kernel(tm, tk, num_levels, hp, in_linear, valid_cols,
                           do_log_softmax):
    def kernel(*refs):
        if in_linear:
            (src_ref, w_in_ref, b_in_ref, a_ref, filt_ref,
             w_out_ref, b_out_ref, o_ref, acc_ref) = refs
        else:
            (src_ref, a_ref, filt_ref,
             w_out_ref, b_out_ref, o_ref, acc_ref) = refs
            w_in_ref = b_in_ref = None

        k = pl.program_id(1)

        @pl.when(k == 0)
        def _init():
            acc_ref[...] = jnp.zeros_like(acc_ref)

        # src is VMEM-resident (constant index_map); slice the current
        # contraction tile in-kernel.
        start = pl.multiple_of(k * tk, tk)
        src_tile = src_ref[pl.ds(start, tk), :]

        if in_linear:
            # linear1 on this src tile; per-src-row bias counted once across k.
            h_src = (jnp.dot(src_tile, w_in_ref[...],
                             preferred_element_type=jnp.float32)
                     + b_in_ref[...]).astype(jnp.bfloat16)
        else:
            h_src = src_tile                       # already bf16 (h2 handoff)

        # 3-level propagate: native bf16 MXU dots with f32 VMEM accumulation.
        for l in range(num_levels):
            acc_ref[l] += jnp.dot(a_ref[l], h_src,
                                  preferred_element_type=jnp.float32)

        @pl.when(k == pl.num_programs(1) - 1)
        def _finalize():
            out = b_out_ref[...].astype(jnp.float32)
            for l in range(num_levels):
                part = jnp.maximum(acc_ref[l] * filt_ref[l], 0.0)
                out = out + jnp.dot(part, w_out_ref[l * hp:(l + 1) * hp, :],
                                    preferred_element_type=jnp.float32)
            if do_log_softmax:
                out = _log_softmax_masked(out, valid_cols)
            o_ref[...] = out.astype(o_ref.dtype)

    return kernel


def _ufg_block(src, a, filt, w_out, b_out, *, w_in=None, b_in=None,
               valid_cols=0, do_log_softmax=False, out_dtype=jnp.float32,
               tile_m=256, tile_k=256):
    """One pallas_call: [opt. Linear] -> 3-level propagate -> ReLU -> Linear."""
    nl, np_tot, _ = a.shape
    hp = filt.shape[-1]
    out_cols = w_out.shape[-1]
    src_cols = src.shape[-1]
    in_linear = w_in is not None

    tile_m = min(tile_m, np_tot)
    tile_k = min(tile_k, np_tot)
    # v7x shards the "parallel" dst axis over 2 TensorCores: keep >= 2 dst
    # tiles when possible.
    while np_tot // tile_m < 2 and tile_m > 128:
        tile_m //= 2
    assert np_tot % tile_m == 0 and np_tot % tile_k == 0, \
        "node count must be padded to a tile multiple"
    grid = (np_tot // tile_m, np_tot // tile_k)

    kernel = _make_ufg_block_kernel(tile_m, tile_k, nl, hp, in_linear,
                                    valid_cols, do_log_softmax)

    in_specs = [pl.BlockSpec(src.shape, lambda i, k: (0, 0))]   # resident src
    args = [src]
    if in_linear:
        in_specs += [pl.BlockSpec(w_in.shape, lambda i, k: (0, 0)),
                     pl.BlockSpec(b_in.shape, lambda i, k: (0, 0))]
        args += [w_in, b_in]
    in_specs += [pl.BlockSpec((nl, tile_m, tile_k), lambda i, k: (0, i, k)),
                 pl.BlockSpec(filt.shape, lambda i, k: (0, 0, 0)),
                 pl.BlockSpec(w_out.shape, lambda i, k: (0, 0)),
                 pl.BlockSpec(b_out.shape, lambda i, k: (0, 0))]
    args += [a, filt, w_out, b_out]

    # VMEM footprint -> right-sized limit (64 MiB physical on v7x).
    out_itemsize = jnp.dtype(out_dtype).itemsize
    small = ([w_in, b_in] if in_linear else []) + [filt, w_out, b_out]
    small_bytes = sum(int(v.size) * v.dtype.itemsize for v in small)
    footprint = (2 * nl * tile_m * tile_k * a.dtype.itemsize   # A double-buffer
                 + 2 * int(src.size) * src.dtype.itemsize       # resident src (x2 safe)
                 + nl * tile_m * hp * 4                         # f32 acc scratch
                 + 2 * tile_m * out_cols * out_itemsize         # out double-buffer
                 + 2 * small_bytes)
    vmem_limit = int(min(60 * 2**20, footprint + 16 * 2**20))

    flops = (2 * nl * np_tot * np_tot * hp
             + 2 * np_tot * nl * hp * out_cols)
    if in_linear:
        flops += 2 * np_tot * src_cols * hp * grid[0]   # linear1 recompute per dst tile
    transc = np_tot * out_cols if do_log_softmax else 0
    bytes_acc = (int(a.size) * a.dtype.itemsize
                 + int(src.size) * src.dtype.itemsize
                 + small_bytes + np_tot * out_cols * out_itemsize)

    return pl.pallas_call(
        kernel,
        out_shape=jax.ShapeDtypeStruct((np_tot, out_cols), out_dtype),
        grid_spec=pltpu.PrefetchScalarGridSpec(
            num_scalar_prefetch=0,
            grid=grid,
            in_specs=in_specs,
            out_specs=pl.BlockSpec((tile_m, out_cols), lambda i, k: (i, 0)),
            scratch_shapes=[pltpu.VMEM((nl, tile_m, hp), jnp.float32)],
        ),
        compiler_params=pltpu.CompilerParams(
            dimension_semantics=("parallel", "arbitrary"),
            vmem_limit_bytes=vmem_limit,
        ),
        cost_estimate=pl.CostEstimate(flops=int(flops),
                                      transcendentals=int(transc),
                                      bytes_accessed=int(bytes_acc)),
    )(*args)


# --------------------------------------------------------------------------
# Wrapper: padding plumbing + path dispatch
# --------------------------------------------------------------------------
def pad_params(raw, *, tile=128):
    """Zero-pad feature axes to 128 lanes, the node axis to a tile multiple,
    and store the dense graph operators A in bfloat16 (dominant operand)."""
    nl, n, _ = raw["A"].shape
    f, h = raw["w1"].shape
    c = raw["w3"].shape[1]
    hp, cp = _round_up(h, LANE), _round_up(c, LANE)
    np_tot = _round_up(n, tile)

    p = {"num_classes": c, "num_nodes": n}
    p["w1"] = jnp.zeros((f, hp), jnp.float32).at[:, :h].set(raw["w1"])
    p["b1"] = jnp.zeros((1, hp), jnp.float32).at[0, :h].set(raw["b1"])
    w2 = jnp.zeros((nl * hp, hp), jnp.float32)
    w3 = jnp.zeros((nl * hp, cp), jnp.float32)
    for l in range(nl):
        w2 = w2.at[l * hp:l * hp + h, :h].set(raw["w2"][l * h:(l + 1) * h, :])
        w3 = w3.at[l * hp:l * hp + h, :c].set(raw["w3"][l * h:(l + 1) * h, :])
    p["w2"], p["w3"] = w2, w3
    p["b2"] = jnp.zeros((1, hp), jnp.float32).at[0, :h].set(raw["b2"])
    p["b3"] = jnp.zeros((1, cp), jnp.float32).at[0, :c].set(raw["b3"])
    p["f1"] = jnp.zeros((nl, 1, hp), jnp.float32).at[:, 0, :h].set(raw["f1"])
    p["f2"] = jnp.zeros((nl, 1, hp), jnp.float32).at[:, 0, :h].set(raw["f2"])
    p["A"] = (jnp.zeros((nl, np_tot, np_tot), jnp.bfloat16)
              .at[:, :n, :n].set(raw["A"].astype(jnp.bfloat16)))
    return p


def net_forward(x, p, *, tile_m=256, tile_k=256, force_tiled=False,
                fused_a_budget=12 * 2**20):
    """x: [N, F] f32; p: padded params from pad_params(). Returns [N, C] f32."""
    n, f = x.shape
    c = p["num_classes"]
    np_tot = p["A"].shape[1]
    xp = jnp.zeros((np_tot, f), jnp.float32).at[:n, :].set(x)

    a_bytes = int(p["A"].size) * p["A"].dtype.itemsize
    if a_bytes <= fused_a_budget and not force_tiled:
        # Small graph: one fused launch, A / h / h2 resident in VMEM.
        logp = _fused_forward(xp, p)
    else:
        # Call 1: linear1 + UFG block 1 + mlp2 -> h2 [Np, Hp] (bf16 handoff).
        h2 = _ufg_block(xp, p["A"], p["f1"], p["w2"], p["b2"],
                        w_in=p["w1"], b_in=p["b1"],
                        out_dtype=jnp.bfloat16,
                        tile_m=tile_m, tile_k=tile_k)
        # Call 2: UFG block 2 + mlp1 + log_softmax -> [Np, Cp].
        logp = _ufg_block(h2, p["A"], p["f2"], p["w3"], p["b3"],
                          valid_cols=c, do_log_softmax=True,
                          out_dtype=jnp.float32,
                          tile_m=tile_m, tile_k=tile_k)
    return logp[:n, :c]


# --------------------------------------------------------------------------
# Pure-JAX reference and parameter construction
# --------------------------------------------------------------------------
def ref_forward(x, raw):
    """Mirrors the PyTorch forward (eval mode), with bf16 rounding applied at
    the same points as the kernel path (A, h and h2 feed the MXU in bf16), so
    only f32 accumulation-order noise remains."""
    hi = jax.lax.Precision.HIGHEST
    nl = raw["A"].shape[0]
    a = raw["A"].astype(jnp.bfloat16).astype(jnp.float32)
    h = jnp.dot(x, raw["w1"], precision=hi) + raw["b1"]
    hb = h.astype(jnp.bfloat16).astype(jnp.float32)
    cat1 = jnp.concatenate([jnp.dot(a[l], hb, precision=hi) * raw["f1"][l][None, :]
                            for l in range(nl)], axis=1)
    h2 = jnp.dot(jnp.maximum(cat1, 0.0), raw["w2"], precision=hi) + raw["b2"]
    h2b = h2.astype(jnp.bfloat16).astype(jnp.float32)
    cat2 = jnp.concatenate([jnp.dot(a[l], h2b, precision=hi) * raw["f2"][l][None, :]
                            for l in range(nl)], axis=1)
    logits = jnp.dot(jnp.maximum(cat2, 0.0), raw["w3"], precision=hi) + raw["b3"]
    return jax.nn.log_softmax(logits, axis=1)


def make_params(key, n, f, h, c, nl=NUM_LEVELS, density=0.3):
    ks = jax.random.split(key, 14)
    p = {}
    p["w1"] = jax.random.normal(ks[0], (f, h), jnp.float32) / jnp.sqrt(f)
    p["b1"] = 0.1 * jax.random.normal(ks[1], (h,), jnp.float32)
    p["w2"] = jax.random.normal(ks[2], (nl * h, h), jnp.float32) / jnp.sqrt(nl * h)
    p["b2"] = 0.1 * jax.random.normal(ks[3], (h,), jnp.float32)
    p["w3"] = jax.random.normal(ks[4], (nl * h, c), jnp.float32) / jnp.sqrt(nl * h)
    p["b3"] = 0.1 * jax.random.normal(ks[5], (c,), jnp.float32)
    # UFGLevel filters: uniform(init_scale, init_scale + 0.1), init_scale = 0.7*i
    p["f1"] = jnp.stack([0.7 * (l + 1) + 0.1 * jax.random.uniform(ks[6 + l], (h,))
                         for l in range(nl)]).astype(jnp.float32)
    p["f2"] = jnp.stack([0.7 * (l + 1) + 0.1 * jax.random.uniform(ks[9 + l], (h,))
                         for l in range(nl)]).astype(jnp.float32)
    # Sparse framelet operators d_list[1..3] as dense [N, N] (A[dst,src]=edge_attr),
    # scaled so A @ h stays O(1) (real framelet operators are normalized).
    scale = 1.0 / jnp.sqrt(density * n)
    vals = jax.random.normal(ks[12], (nl, n, n), jnp.float32) * scale
    mask = (jax.random.uniform(ks[13], (nl, n, n)) < density).astype(jnp.float32)
    p["A"] = vals * mask
    return p


if __name__ == "__main__":
    # nhid = 24 per the module; num_classes = 4; 3 UFG levels (len(d_list)=4).
    N, F, H, C = 200, 8, 24, 4
    TILE = 128
    key = jax.random.PRNGKey(0)
    kx, kp = jax.random.split(key)
    x = jax.random.normal(kx, (N, F), jnp.float32)
    raw = make_params(kp, N, F, H, C)
    padded = pad_params(raw, tile=TILE)
    ref = ref_forward(x, raw)

    # Path 1: fused single-launch kernel (auto-selected for small graphs).
    out_fused = jax.block_until_ready(net_forward(x, padded))
    assert out_fused.shape == (N, C)
    err_f = float(jnp.max(jnp.abs(out_fused - ref)))
    assert jnp.allclose(out_fused, ref, atol=1e-3, rtol=1e-3), \
        f"fused mismatch, max abs err {err_f}"

    # Path 2: tiled two-call path — grid (2, 2) exercises tiling, padding and
    # the bf16 h2 handoff.
    out_tiled = jax.block_until_ready(
        net_forward(x, padded, tile_m=TILE, tile_k=TILE, force_tiled=True))
    assert out_tiled.shape == (N, C)
    err_t = float(jnp.max(jnp.abs(out_tiled - ref)))
    assert jnp.allclose(out_tiled, ref, atol=1e-3, rtol=1e-3), \
        f"tiled mismatch, max abs err {err_t}"

    print("KERNEL_OK")
</pallas_src>

<mosaic_0001>
module attributes {stable_mosaic.version = 11 : i64} {
  func.func @kernel(%arg0: memref<256x8xf32, #tpu.memory_space<vmem>>, %arg1: memref<8x128xf32, #tpu.memory_space<vmem>>, %arg2: memref<1x128xf32, #tpu.memory_space<vmem>>, %arg3: memref<3x256x256xbf16, #tpu.memory_space<vmem>>, %arg4: memref<3x1x128xf32, #tpu.memory_space<vmem>>, %arg5: memref<384x128xf32, #tpu.memory_space<vmem>>, %arg6: memref<1x128xf32, #tpu.memory_space<vmem>>, %arg7: memref<3x1x128xf32, #tpu.memory_space<vmem>>, %arg8: memref<384x128xf32, #tpu.memory_space<vmem>>, %arg9: memref<1x128xf32, #tpu.memory_space<vmem>>, %arg10: memref<256x128xf32, #tpu.memory_space<vmem>>) attributes {dimension_semantics = [], scalar_prefetch = 0 : i64, scratch_operands = 0 : i64, tpu.core_type = #tpu.core_type<tc>} {
    %c0 = arith.constant 0 : index
    %c0_0 = arith.constant 0 : index
    %0 = vector.load %arg0[%c0, %c0_0] : memref<256x8xf32, #tpu.memory_space<vmem>>, vector<256x8xf32>
    %c0_1 = arith.constant 0 : index
    %c0_2 = arith.constant 0 : index
    %1 = vector.load %arg1[%c0_1, %c0_2] : memref<8x128xf32, #tpu.memory_space<vmem>>, vector<8x128xf32>
    %cst = arith.constant dense<0.000000e+00> : vector<256x128xf32>
    %2 = tpu.matmul %0, %1, %cst {dimension_numbers = #tpu.dot_dimension_numbers<[1], [0], [0], [1], [0, 0, 1, 1], [], []>} : vector<256x8xf32>, vector<8x128xf32>, vector<256x128xf32> -> vector<256x128xf32>
    %c0_3 = arith.constant 0 : index
    %c0_4 = arith.constant 0 : index
    %3 = vector.load %arg2[%c0_3, %c0_4] : memref<1x128xf32, #tpu.memory_space<vmem>>, vector<1x128xf32>
    %4 = vector.broadcast %3 : vector<1x128xf32> to vector<256x128xf32>
    %5 = arith.addf %2, %4 : vector<256x128xf32>
    %6 = arith.truncf %5 : vector<256x128xf32> to vector<256x128xbf16>
    %c0_5 = arith.constant 0 : index
    %c0_6 = arith.constant 0 : index
    %7 = vector.load %arg6[%c0_5, %c0_6] : memref<1x128xf32, #tpu.memory_space<vmem>>, vector<1x128xf32>
    %c0_7 = arith.constant 0 : index
    %c0_8 = arith.constant 0 : index
    %c0_9 = arith.constant 0 : index
    %8 = vector.load %arg3[%c0_7, %c0_8, %c0_9] : memref<3x256x256xbf16, #tpu.memory_space<vmem>>, vector<1x256x256xbf16>
    %9 = vector.shape_cast %8 : vector<1x256x256xbf16> to vector<256x256xbf16>
    %cst_10 = arith.constant dense<0.000000e+00> : vector<256x128xf32>
    %10 = tpu.matmul %9, %6, %cst_10 {dimension_numbers = #tpu.dot_dimension_numbers<[1], [0], [0], [1], [0, 0, 1, 1], [], []>} : vector<256x256xbf16>, vector<256x128xbf16>, vector<256x128xf32> -> vector<256x128xf32>
    %c0_11 = arith.constant 0 : index
    %c0_12 = arith.constant 0 : index
    %c0_13 = arith.constant 0 : index
    %11 = vector.load %arg4[%c0_11, %c0_12, %c0_13] : memref<3x1x128xf32, #tpu.memory_space<vmem>>, vector<1x1x128xf32>
    %12 = vector.shape_cast %11 : vector<1x1x128xf32> to vector<1x128xf32>
    %13 = vector.broadcast %12 : vector<1x128xf32> to vector<256x128xf32>
    %14 = arith.mulf %10, %13 : vector<256x128xf32>
    %cst_14 = arith.constant 0.000000e+00 : f32
    %15 = vector.broadcast %cst_14 : f32 to vector<256x128xf32>
    %16 = arith.maximumf %14, %15 : vector<256x128xf32>
    %c0_15 = arith.constant 0 : index
    %c0_16 = arith.constant 0 : index
    %17 = vector.load %arg5[%c0_15, %c0_16] : memref<384x128xf32, #tpu.memory_space<vmem>>, vector<128x128xf32>
    %cst_17 = arith.constant dense<0.000000e+00> : vector<256x128xf32>
    %18 = tpu.matmul %16, %17, %cst_17 {dimension_numbers = #tpu.dot_dimension_numbers<[1], [0], [0], [1], [0, 0, 1, 1], [], []>} : vector<256x128xf32>, vector<128x128xf32>, vector<256x128xf32> -> vector<256x128xf32>
    %19 = vector.broadcast %7 : vector<1x128xf32> to vector<256x128xf32>
    %20 = arith.addf %19, %18 : vector<256x128xf32>
    %c1 = arith.constant 1 : index
    %c0_18 = arith.constant 0 : index
    %c0_19 = arith.constant 0 : index
    %21 = vector.load %arg3[%c1, %c0_18, %c0_19] : memref<3x256x256xbf16, #tpu.memory_space<vmem>>, vector<1x256x256xbf16>
    %22 = vector.shape_cast %21 : vector<1x256x256xbf16> to vector<256x256xbf16>
    %cst_20 = arith.constant dense<0.000000e+00> : vector<256x128xf32>
    %23 = tpu.matmul %22, %6, %cst_20 {dimension_numbers = #tpu.dot_dimension_numbers<[1], [0], [0], [1], [0, 0, 1, 1], [], []>} : vector<256x256xbf16>, vector<256x128xbf16>, vector<256x128xf32> -> vector<256x128xf32>
    %c1_21 = arith.constant 1 : index
    %c0_22 = arith.constant 0 : index
    %c0_23 = arith.constant 0 : index
    %24 = vector.load %arg4[%c1_21, %c0_22, %c0_23] : memref<3x1x128xf32, #tpu.memory_space<vmem>>, vector<1x1x128xf32>
    %25 = vector.shape_cast %24 : vector<1x1x128xf32> to vector<1x128xf32>
    %26 = vector.broadcast %25 : vector<1x128xf32> to vector<256x128xf32>
    %27 = arith.mulf %23, %26 : vector<256x128xf32>
    %cst_24 = arith.constant 0.000000e+00 : f32
    %28 = vector.broadcast %cst_24 : f32 to vector<256x128xf32>
    %29 = arith.maximumf %27, %28 : vector<256x128xf32>
    %c128 = arith.constant 128 : index
    %c0_25 = arith.constant 0 : index
    %30 = vector.load %arg5[%c128, %c0_25] : memref<384x128xf32, #tpu.memory_space<vmem>>, vector<128x128xf32>
    %cst_26 = arith.constant dense<0.000000e+00> : vector<256x128xf32>
    %31 = tpu.matmul %29, %30, %cst_26 {dimension_numbers = #tpu.dot_dimension_numbers<[1], [0], [0], [1], [0, 0, 1, 1], [], []>} : vector<256x128xf32>, vector<128x128xf32>, vector<256x128xf32> -> vector<256x128xf32>
    %32 = arith.addf %20, %31 : vector<256x128xf32>
    %c2 = arith.constant 2 : index
    %c0_27 = arith.constant 0 : index
    %c0_28 = arith.constant 0 : index
    %33 = vector.load %arg3[%c2, %c0_27, %c0_28] : memref<3x256x256xbf16, #tpu.memory_space<vmem>>, vector<1x256x256xbf16>
    %34 = vector.shape_cast %33 : vector<1x256x256xbf16> to vector<256x256xbf16>
    %cst_29 = arith.constant dense<0.000000e+00> : vector<256x128xf32>
    %35 = tpu.matmul %34, %6, %cst_29 {dimension_numbers = #tpu.dot_dimension_numbers<[1], [0], [0], [1], [0, 0, 1, 1], [], []>} : vector<256x256xbf16>, vector<256x128xbf16>, vector<256x128xf32> -> vector<256x128xf32>
    %c2_30 = arith.constant 2 : index
    %c0_31 = arith.constant 0 : index
    %c0_32 = arith.constant 0 : index
    %36 = vector.load %arg4[%c2_30, %c0_31, %c0_32] : memref<3x1x128xf32, #tpu.memory_space<vmem>>, vector<1x1x128xf32>
    %37 = vector.shape_cast %36 : vector<1x1x128xf32> to vector<1x128xf32>
    %38 = vector.broadcast %37 : vector<1x128xf32> to vector<256x128xf32>
    %39 = arith.mulf %35, %38 : vector<256x128xf32>
    %cst_33 = arith.constant 0.000000e+00 : f32
    %40 = vector.broadcast %cst_33 : f32 to vector<256x128xf32>
    %41 = arith.maximumf %39, %40 : vector<256x128xf32>
    %c256 = arith.constant 256 : index
    %c0_34 = arith.constant 0 : index
    %42 = vector.load %arg5[%c256, %c0_34] : memref<384x128xf32, #tpu.memory_space<vmem>>, vector<128x128xf32>
    %cst_35 = arith.constant dense<0.000000e+00> : vector<256x128xf32>
    %43 = tpu.matmul %41, %42, %cst_35 {dimension_numbers = #tpu.dot_dimension_numbers<[1], [0], [0], [1], [0, 0, 1, 1], [], []>} : vector<256x128xf32>, vector<128x128xf32>, vector<256x128xf32> -> vector<256x128xf32>
    %44 = arith.addf %32, %43 : vector<256x128xf32>
    %45 = arith.truncf %44 : vector<256x128xf32> to vector<256x128xbf16>
    %c0_36 = arith.constant 0 : index
    %c0_37 = arith.constant 0 : index
    %46 = vector.load %arg9[%c0_36, %c0_37] : memref<1x128xf32, #tpu.memory_space<vmem>>, vector<1x128xf32>
    %c0_38 = arith.constant 0 : index
    %c0_39 = arith.constant 0 : index
    %c0_40 = arith.constant 0 : index
    %47 = vector.load %arg3[%c0_38, %c0_39, %c0_40] : memref<3x256x256xbf16, #tpu.memory_space<vmem>>, vector<1x256x256xbf16>
    %48 = vector.shape_cast %47 : vector<1x256x256xbf16> to vector<256x256xbf16>
    %cst_41 = arith.constant dense<0.000000e+00> : vector<256x128xf32>
    %49 = tpu.matmul %48, %45, %cst_41 {dimension_numbers = #tpu.dot_dimension_numbers<[1], [0], [0], [1], [0, 0, 1, 1], [], []>} : vector<256x256xbf16>, vector<256x128xbf16>, vector<256x128xf32> -> vector<256x128xf32>
    %c0_42 = arith.constant 0 : index
    %c0_43 = arith.constant 0 : index
    %c0_44 = arith.constant 0 : index
    %50 = vector.load %arg7[%c0_42, %c0_43, %c0_44] : memref<3x1x128xf32, #tpu.memory_space<vmem>>, vector<1x1x128xf32>
    %51 = vector.shape_cast %50 : vector<1x1x128xf32> to vector<1x128xf32>
    %52 = vector.broadcast %51 : vector<1x128xf32> to vector<256x128xf32>
    %53 = arith.mulf %49, %52 : vector<256x128xf32>
    %cst_45 = arith.constant 0.000000e+00 : f32
    %54 = vector.broadcast %cst_45 : f32 to vector<256x128xf32>
    %55 = arith.maximumf %53, %54 : vector<256x128xf32>
    %c0_46 = arith.constant 0 : index
    %c0_47 = arith.constant 0 : index
    %56 = vector.load %arg8[%c0_46, %c0_47] : memref<384x128xf32, #tpu.memory_space<vmem>>, vector<128x128xf32>
    %cst_48 = arith.constant dense<0.000000e+00> : vector<256x128xf32>
    %57 = tpu.matmul %55, %56, %cst_48 {dimension_numbers = #tpu.dot_dimension_numbers<[1], [0], [0], [1], [0, 0, 1, 1], [], []>} : vector<256x128xf32>, vector<128x128xf32>, vector<256x128xf32> -> vector<256x128xf32>
    %58 = vector.broadcast %46 : vector<1x128xf32> to vector<256x128xf32>
    %59 = arith.addf %58, %57 : vector<256x128xf32>
    %c1_49 = arith.constant 1 : index
    %c0_50 = arith.constant 0 : index
    %c0_51 = arith.constant 0 : index
    %60 = vector.load %arg3[%c1_49, %c0_50, %c0_51] : memref<3x256x256xbf16, #tpu.memory_space<vmem>>, vector<1x256x256xbf16>
    %61 = vector.shape_cast %60 : vector<1x256x256xbf16> to vector<256x256xbf16>
    %cst_52 = arith.constant dense<0.000000e+00> : vector<256x128xf32>
    %62 = tpu.matmul %61, %45, %cst_52 {dimension_numbers = #tpu.dot_dimension_numbers<[1], [0], [0], [1], [0, 0, 1, 1], [], []>} : vector<256x256xbf16>, vector<256x128xbf16>, vector<256x128xf32> -> vector<256x128xf32>
    %c1_53 = arith.constant 1 : index
    %c0_54 = arith.constant 0 : index
    %c0_55 = arith.constant 0 : index
    %63 = vector.load %arg7[%c1_53, %c0_54, %c0_55] : memref<3x1x128xf32, #tpu.memory_space<vmem>>, vector<1x1x128xf32>
    %64 = vector.shape_cast %63 : vector<1x1x128xf32> to vector<1x128xf32>
    %65 = vector.broadcast %64 : vector<1x128xf32> to vector<256x128xf32>
    %66 = arith.mulf %62, %65 : vector<256x128xf32>
    %cst_56 = arith.constant 0.000000e+00 : f32
    %67 = vector.broadcast %cst_56 : f32 to vector<256x128xf32>
    %68 = arith.maximumf %66, %67 : vector<256x128xf32>
    %c128_57 = arith.constant 128 : index
    %c0_58 = arith.constant 0 : index
    %69 = vector.load %arg8[%c128_57, %c0_58] : memref<384x128xf32, #tpu.memory_space<vmem>>, vector<128x128xf32>
    %cst_59 = arith.constant dense<0.000000e+00> : vector<256x128xf32>
    %70 = tpu.matmul %68, %69, %cst_59 {dimension_numbers = #tpu.dot_dimension_numbers<[1], [0], [0], [1], [0, 0, 1, 1], [], []>} : vector<256x128xf32>, vector<128x128xf32>, vector<256x128xf32> -> vector<256x128xf32>
    %71 = arith.addf %59, %70 : vector<256x128xf32>
    %c2_60 = arith.constant 2 : index
    %c0_61 = arith.constant 0 : index
    %c0_62 = arith.constant 0 : index
    %72 = vector.load %arg3[%c2_60, %c0_61, %c0_62] : memref<3x256x256xbf16, #tpu.memory_space<vmem>>, vector<1x256x256xbf16>
    %73 = vector.shape_cast %72 : vector<1x256x256xbf16> to vector<256x256xbf16>
    %cst_63 = arith.constant dense<0.000000e+00> : vector<256x128xf32>
    %74 = tpu.matmul %73, %45, %cst_63 {dimension_numbers = #tpu.dot_dimension_numbers<[1], [0], [0], [1], [0, 0, 1, 1], [], []>} : vector<256x256xbf16>, vector<256x128xbf16>, vector<256x128xf32> -> vector<256x128xf32>
    %c2_64 = arith.constant 2 : index
    %c0_65 = arith.constant 0 : index
    %c0_66 = arith.constant 0 : index
    %75 = vector.load %arg7[%c2_64, %c0_65, %c0_66] : memref<3x1x128xf32, #tpu.memory_space<vmem>>, vector<1x1x128xf32>
    %76 = vector.shape_cast %75 : vector<1x1x128xf32> to vector<1x128xf32>
    %77 = vector.broadcast %76 : vector<1x128xf32> to vector<256x128xf32>
    %78 = arith.mulf %74, %77 : vector<256x128xf32>
    %cst_67 = arith.constant 0.000000e+00 : f32
    %79 = vector.broadcast %cst_67 : f32 to vector<256x128xf32>
    %80 = arith.maximumf %78, %79 : vector<256x128xf32>
    %c256_68 = arith.constant 256 : index
    %c0_69 = arith.constant 0 : index
    %81 = vector.load %arg8[%c256_68, %c0_69] : memref<384x128xf32, #tpu.memory_space<vmem>>, vector<128x128xf32>
    %cst_70 = arith.constant dense<0.000000e+00> : vector<256x128xf32>
    %82 = tpu.matmul %80, %81, %cst_70 {dimension_numbers = #tpu.dot_dimension_numbers<[1], [0], [0], [1], [0, 0, 1, 1], [], []>} : vector<256x128xf32>, vector<128x128xf32>, vector<256x128xf32> -> vector<256x128xf32>
    %83 = arith.addf %71, %82 : vector<256x128xf32>
    %84 = tpu.iota {dimensions = array<i32: 1>} : vector<256x128xi32>
    %c4_i32 = arith.constant 4 : i32
    %85 = vector.broadcast %c4_i32 : i32 to vector<256x128xi32>
    %86 = arith.cmpi slt, %84, %85 : vector<256x128xi32>
    %cst_71 = arith.constant -1.000000e+30 : f32
    %87 = vector.broadcast %cst_71 : f32 to vector<256x128xf32>
    %88 = arith.select %86, %83, %87 : vector<256x128xi1>, vector<256x128xf32>
    %cst_72 = arith.constant dense<0xFF800000> : vector<256xf32>
    %89 = vector.multi_reduction <maximumf>, %88, %cst_72 [1] : vector<256x128xf32> to vector<256xf32>
    %90 = vector.shape_cast %89 : vector<256xf32> to vector<256x1xf32>
    %91 = vector.broadcast %90 : vector<256x1xf32> to vector<256x128xf32>
    %92 = arith.subf %88, %91 : vector<256x128xf32>
    %93 = math.exp %92 : vector<256x128xf32>
    %cst_73 = arith.constant dense<0.000000e+00> : vector<256xf32>
    %94 = vector.multi_reduction <add>, %93, %cst_73 [1] : vector<256x128xf32> to vector<256xf32>
    %95 = vector.shape_cast %94 : vector<256xf32> to vector<256x1xf32>
    %96 = math.log %95 : vector<256x1xf32>
    %97 = vector.broadcast %96 : vector<256x1xf32> to vector<256x128xf32>
    %98 = arith.subf %92, %97 : vector<256x128xf32>
    %c0_74 = arith.constant 0 : index
    %c0_75 = arith.constant 0 : index
    %99 = vector.load %arg10[%c0_74, %c0_75] : memref<256x128xf32, #tpu.memory_space<vmem>>, vector<256x128xf32>
    tpu.vector_store %arg10[%c0_74, %c0_75], %98 {strides = array<i32>} : memref<256x128xf32, #tpu.memory_space<vmem>>, vector<256x128xf32>,
    return
  }
}

</mosaic_0001>

<llo_original>
// kernel: tpu_custom_call.1
$region0: #{tpu_custom_call.1}
  #allocation0 [shape = 'u32[]', space=smem, size = 0x4, offset = 0x4, fixed_abs, tag = 'smem constant byte address 0x4 - core index']
  #allocation1 [shape = 'u32[72,128]{1,0:T(1,128)}', space=vmem, size = 0x9000, scoped, tag = 'internal scratch']
  %s0 = inlined_call_operand.vmem [shape: f32[256,8], index: 0, kind: input, shape index: {}]
  %s1 = inlined_call_operand.vmem [shape: f32[8,128], index: 1, kind: input, shape index: {}]
  %s2 = inlined_call_operand.vmem [shape: f32[1,128], index: 2, kind: input, shape index: {}]
  %s3 = inlined_call_operand.hbm [shape: bf16[3,256,256], index: 3, kind: input, shape index: {}]
  %s4 = inlined_call_operand.vmem [shape: f32[3,1,128], index: 4, kind: input, shape index: {}]
  %s5 = inlined_call_operand.hbm [shape: f32[384,128], index: 5, kind: input, shape index: {}]
  %s6 = inlined_call_operand.vmem [shape: f32[1,128], index: 6, kind: input, shape index: {}]
  %s7 = inlined_call_operand.vmem [shape: f32[3,1,128], index: 7, kind: input, shape index: {}]
  %s8 = inlined_call_operand.hbm [shape: f32[384,128], index: 8, kind: input, shape index: {}]
  %s9 = inlined_call_operand.vmem [shape: f32[1,128], index: 9, kind: input, shape index: {}]
  %s10 = inlined_call_operand.hbm [shape: f32[256,128], index: 10, kind: output, shape index: {}]
  %s11 = sld [smem:[#allocation0]]
  $region62: #{tpu_custom_call.1} parent=0
    _
  %s13 = ssub.s32 1, %s11
  %s14 = scalar_select 0, %s13, %s11
  $region1: #{tpu_custom_call.1} parent=0
    #allocation2 [shape = 'u8[393216]{0}', space=vmem, size = 0x60000, scoped, tag = 'input window, operand 3, single buffered']
    #allocation3 [shape = 's32[1]{0}', space=sflag, size = 0x4, scoped, tag = 'scoped memory for tpu_custom_call.1']
    #allocation4 [shape = 's32[1]{0}', space=sflag, size = 0x4, scoped, tag = 'scoped memory for tpu_custom_call.1']
    #allocation5 [shape = 'u8[196608]{0}', space=vmem, size = 0x30000, scoped, tag = 'input window, operand 5, single buffered']
    #allocation6 [shape = 's32[1]{0}', space=sflag, size = 0x4, scoped, tag = 'scoped memory for tpu_custom_call.1']
    #allocation7 [shape = 'u8[196608]{0}', space=vmem, size = 0x30000, scoped, tag = 'input window, operand 8, single buffered']
    #allocation8 [shape = 'u8[131072]{0}', space=vmem, size = 0x20000, scoped, tag = 'output window, operand 0, single buffered']
    %15 = vsyncpa [#allocation3], 0
    %16 = vsyncpa [#allocation6], 0
    %17 = vsyncpa [#allocation4], 0
    // Predicated region
    $region2: #{tpu_custom_call.1} parent=1 // pred_check
      _
    $region3: #{tpu_custom_call.1} parent=1 // pred_check_branch
      %19 = sbr.rel (0) target = $region5
    $region4: #{tpu_custom_call.1} parent=1 // pred_region
      _
    $region5: #{tpu_custom_call.1} parent=1 // pred_fallthru
      _
    // Predicated region
    $region6: #{tpu_custom_call.1} parent=1 // pred_check
      _
    $region7: #{tpu_custom_call.1} parent=1 // pred_check_branch
      %21 = sbr.rel (0) target = $region9
    $region8: #{tpu_custom_call.1} parent=1 // pred_region
      _
    $region9: #{tpu_custom_call.1} parent=1 // pred_fallthru
      _
    // Predicated region
    $region10: #{tpu_custom_call.1} parent=1 // pred_check
      _
    $region11: #{tpu_custom_call.1} parent=1 // pred_check_branch
      %23 = sbr.rel (0) target = $region13
    $region12: #{tpu_custom_call.1} parent=1 // pred_region
      _
    $region13: #{tpu_custom_call.1} parent=1 // pred_fallthru
      _
    // Predicated region
    $region14: #{tpu_custom_call.1} parent=1 // pred_check
      _
    $region15: #{tpu_custom_call.1} parent=1 // pred_check_branch
      %25 = sbr.rel (0) target = $region17
    $region16: #{tpu_custom_call.1} parent=1 // pred_region
      %27 = vsyncadd [#allocation3], 0
      %s28 = sshll.u32 %s3, 4
      %s29 = int_to_ptr.hbm [resolvable:$true] %s28
      %s30 = sshll.u32 [#allocation2], 4
      %s31 = int_to_ptr.vmem [resolvable:$true] %s30
      %36 = dma.hbm_to_vmem [thread:$0]  %s29, 12288, %s31, [#allocation3], 128, 128, 8
    $region17: #{tpu_custom_call.1} parent=1 // pred_fallthru
      _
    // Predicated region
    $region18: #{tpu_custom_call.1} parent=1 // pred_check
      _
    $region19: #{tpu_custom_call.1} parent=1 // pred_check_branch
      %38 = sbr.rel (0) target = $region21
    $region20: #{tpu_custom_call.1} parent=1 // pred_region
      _
    $region21: #{tpu_custom_call.1} parent=1 // pred_fallthru
      _
    // Predicated region
    $region22: #{tpu_custom_call.1} parent=1 // pred_check
      _
    $region23: #{tpu_custom_call.1} parent=1 // pred_check_branch
      %40 = sbr.rel (0) target = $region25
    $region24: #{tpu_custom_call.1} parent=1 // pred_region
      %42 = vsyncadd [#allocation6], 0
      %s43 = sshll.u32 %s5, 4
      %s44 = int_to_ptr.hbm [resolvable:$true] %s43
      %s45 = sshll.u32 [#allocation5], 4
      %s46 = int_to_ptr.vmem [resolvable:$true] %s45
      %51 = dma.hbm_to_vmem [thread:$0]  %s44, 6144, %s46, [#allocation6], 128, 128, 8
    $region25: #{tpu_custom_call.1} parent=1 // pred_fallthru
      _
    // Predicated region
    $region26: #{tpu_custom_call.1} parent=1 // pred_check
      _
    $region27: #{tpu_custom_call.1} parent=1 // pred_check_branch
      %53 = sbr.rel (0) target = $region29
    $region28: #{tpu_custom_call.1} parent=1 // pred_region
      _
    $region29: #{tpu_custom_call.1} parent=1 // pred_fallthru
      _
    // Predicated region
    $region30: #{tpu_custom_call.1} parent=1 // pred_check
      _
    $region31: #{tpu_custom_call.1} parent=1 // pred_check_branch
      %55 = sbr.rel (0) target = $region33
    $region32: #{tpu_custom_call.1} parent=1 // pred_region
      _
    $region33: #{tpu_custom_call.1} parent=1 // pred_fallthru
      _
    // Predicated region
    $region34: #{tpu_custom_call.1} parent=1 // pred_check
      _
    $region35: #{tpu_custom_call.1} parent=1 // pred_check_branch
      %57 = sbr.rel (0) target = $region37
    $region36: #{tpu_custom_call.1} parent=1 // pred_region
      %59 = vsyncadd [#allocation6], 0
      %s60 = sshll.u32 %s8, 4
      %s61 = int_to_ptr.hbm [resolvable:$true] %s60
      %s62 = sshll.u32 [#allocation7], 4
      %s63 = int_to_ptr.vmem [resolvable:$true] %s62
      %68 = dma.hbm_to_vmem [thread:$0]  %s61, 6144, %s63, [#allocation6], 128, 128, 8
    $region37: #{tpu_custom_call.1} parent=1 // pred_fallthru
      _
    // Predicated region
    $region38: #{tpu_custom_call.1} parent=1 // pred_check
      _
    $region39: #{tpu_custom_call.1} parent=1 // pred_check_branch
      %70 = sbr.rel (0) target = $region41
    $region40: #{tpu_custom_call.1} parent=1 // pred_region
      _
    $region41: #{tpu_custom_call.1} parent=1 // pred_fallthru
      _
    // Predicated region
    $region42: #{tpu_custom_call.1} parent=1 // pred_check
      _
    $region43: #{tpu_custom_call.1} parent=1 // pred_check_branch
      %72 = sbr.rel (0) target = $region45
    $region44: #{tpu_custom_call.1} parent=1 // pred_region
      %74 = dma.done [#allocation3], 12288
    $region45: #{tpu_custom_call.1} parent=1 // pred_fallthru
      _
    // Predicated region
    $region46: #{tpu_custom_call.1} parent=1 // pred_check
      _
    $region47: #{tpu_custom_call.1} parent=1 // pred_check_branch
      %76 = sbr.rel (0) target = $region49
    $region48: #{tpu_custom_call.1} parent=1 // pred_region
      %78 = dma.done [#allocation6], 6144
    $region49: #{tpu_custom_call.1} parent=1 // pred_fallthru
      _
    // Predicated region
    $region50: #{tpu_custom_call.1} parent=1 // pred_check
      _
    $region51: #{tpu_custom_call.1} parent=1 // pred_check_branch
      %80 = sbr.rel (0) target = $region53
    $region52: #{tpu_custom_call.1} parent=1 // pred_region
      %82 = dma.done [#allocation6], 6144
    $region53: #{tpu_custom_call.1} parent=1 // pred_fallthru
      _
    %v83 = vld [vmem:[%s0] sm:$0xff]
    %v84 = vld [vmem:[%s0 + $0x8] sm:$0xff]
    %v85 = vld [vmem:[%s0 + $0x10] sm:$0xff]
    %v86 = vld [vmem:[%s0 + $0x18] sm:$0xff]
    %v87 = vld [vmem:[%s0 + $0x20] sm:$0xff]
    %v88 = vld [vmem:[%s0 + $0x28] sm:$0xff]
    %v89 = vld [vmem:[%s0 + $0x30] sm:$0xff]
    %v90 = vld [vmem:[%s0 + $0x38] sm:$0xff]
    %v91 = vld [vmem:[%s0 + $0x40] sm:$0xff]
    %v92 = vld [vmem:[%s0 + $0x48] sm:$0xff]
    %v93 = vld [vmem:[%s0 + $0x50] sm:$0xff]
    %v94 = vld [vmem:[%s0 + $0x58] sm:$0xff]
    %v95 = vld [vmem:[%s0 + $0x60] sm:$0xff]
    %v96 = vld [vmem:[%s0 + $0x68] sm:$0xff]
    %v97 = vld [vmem:[%s0 + $0x70] sm:$0xff]
    %v98 = vld [vmem:[%s0 + $0x78] sm:$0xff]
    %v99 = vld [vmem:[%s0 + $0x80] sm:$0xff]
    %v100 = vld [vmem:[%s0 + $0x88] sm:$0xff]
    %v101 = vld [vmem:[%s0 + $0x90] sm:$0xff]
    %v102 = vld [vmem:[%s0 + $0x98] sm:$0xff]
    %v103 = vld [vmem:[%s0 + $0xa0] sm:$0xff]
    %v104 = vld [vmem:[%s0 + $0xa8] sm:$0xff]
    %v105 = vld [vmem:[%s0 + $0xb0] sm:$0xff]
    %v106 = vld [vmem:[%s0 + $0xb8] sm:$0xff]
    %v107 = vld [vmem:[%s0 + $0xc0] sm:$0xff]
    %v108 = vld [vmem:[%s0 + $0xc8] sm:$0xff]
    %v109 = vld [vmem:[%s0 + $0xd0] sm:$0xff]
    %v110 = vld [vmem:[%s0 + $0xd8] sm:$0xff]
    %v111 = vld [vmem:[%s0 + $0xe0] sm:$0xff]
    %v112 = vld [vmem:[%s0 + $0xe8] sm:$0xff]
    %v113 = vld [vmem:[%s0 + $0xf0] sm:$0xff]
    %v114 = vld [vmem:[%s0 + $0xf8] sm:$0xff]
    %v115 = vld [vmem:[%s1] sm:$0xff]
    %v116 = vld [vmem:[%s2] sm:$0x1]
    %v118 = vperm.slane %v116, 0
    %vm120 = vcmask 64512
    %v122 = vsel %vm120, %v83, 0
    %v125 = vsel %vm120, %v84, 0
    %v128 = vsel %vm120, %v85, 0
    %v131 = vsel %vm120, %v86, 0
    %v134 = vsel %vm120, %v87, 0
    %v137 = vsel %vm120, %v88, 0
    %v140 = vsel %vm120, %v89, 0
    %v143 = vsel %vm120, %v90, 0
    %v146 = vsel %vm120, %v91, 0
    %v149 = vsel %vm120, %v92, 0
    %v152 = vsel %vm120, %v93, 0
    %v155 = vsel %vm120, %v94, 0
    %v158 = vsel %vm120, %v95, 0
    %v161 = vsel %vm120, %v96, 0
    %v164 = vsel %vm120, %v97, 0
    %v167 = vsel %vm120, %v98, 0
    %v170 = vsel %vm120, %v99, 0
    %v173 = vsel %vm120, %v100, 0
    %v176 = vsel %vm120, %v101, 0
    %v179 = vsel %vm120, %v102, 0
    %v182 = vsel %vm120, %v103, 0
    %v185 = vsel %vm120, %v104, 0
    %v188 = vsel %vm120, %v105, 0
    %v191 = vsel %vm120, %v106, 0
    %v194 = vsel %vm120, %v107, 0
    %v197 = vsel %vm120, %v108, 0
    %v200 = vsel %vm120, %v109, 0
    %v203 = vsel %vm120, %v110, 0
    %v206 = vsel %vm120, %v111, 0
    %v209 = vsel %vm120, %v112, 0
    %v212 = vsel %vm120, %v113, 0
    %v215 = vsel %vm120, %v114, 0
    %217 = vmatpush.msra.mxu0 0.0
    %218 = vmatpush.msra.mxu0 0.0
    %219 = vmatpush.msra.mxu0 0.0
    %220 = vmatpush.msra.mxu0 0.0
    %221 = vmatpush.msra.mxu0 0.0
    %222 = vmatpush.msra.mxu0 0.0
    %223 = vmatpush.msra.mxu0 0.0
    %224 = vmatpush.msra.mxu0 0.0
    %225 = vmatpush.msra.mxu0 0.0
    %226 = vmatpush.msra.mxu0 0.0
    %227 = vmatpush.msra.mxu0 0.0
    %228 = vmatpush.msra.mxu0 0.0
    %229 = vmatpush.msra.mxu0 0.0
    %230 = vmatpush.msra.mxu0 0.0
    %231 = vmatpush.msra.mxu0 0.0
    %232 = vmatpush.msra.mxu0 %v115
    %233 = vmatmul.f32.gmra.mxu0 %v122
    %v234 = vpop.f32.mrf.mxu0
    %v235 = vadd.f32 %v118, %v234
    %236 = vmatmul.f32.gmra.mxu0 %v125
    %v237 = vpop.f32.mrf.mxu0
    %v238 = vadd.f32 %v118, %v237
    %239 = vmatmul.f32.gmra.mxu0 %v128
    %v240 = vpop.f32.mrf.mxu0
    %v241 = vadd.f32 %v118, %v240
    %242 = vmatmul.f32.gmra.mxu0 %v131
    %v243 = vpop.f32.mrf.mxu0
    %v244 = vadd.f32 %v118, %v243
    %245 = vmatmul.f32.gmra.mxu0 %v134
    %v246 = vpop.f32.mrf.mxu0
    %v247 = vadd.f32 %v118, %v246
    %248 = vmatmul.f32.gmra.mxu0 %v137
    %v249 = vpop.f32.mrf.mxu0
    %v250 = vadd.f32 %v118, %v249
    %251 = vmatmul.f32.gmra.mxu0 %v140
    %v252 = vpop.f32.mrf.mxu0
    %v253 = vadd.f32 %v118, %v252
    %254 = vmatmul.f32.gmra.mxu0 %v143
    %v255 = vpop.f32.mrf.mxu0
    %v256 = vadd.f32 %v118, %v255
    %257 = vmatmul.f32.gmra.mxu0 %v146
    %v258 = vpop.f32.mrf.mxu0
    %v259 = vadd.f32 %v118, %v258
    %260 = vmatmul.f32.gmra.mxu0 %v149
    %v261 = vpop.f32.mrf.mxu0
    %v262 = vadd.f32 %v118, %v261
    %263 = vmatmul.f32.gmra.mxu0 %v152
    %v264 = vpop.f32.mrf.mxu0
    %v265 = vadd.f32 %v118, %v264
    %266 = vmatmul.f32.gmra.mxu0 %v155
    %v267 = vpop.f32.mrf.mxu0
    %v268 = vadd.f32 %v118, %v267
    %269 = vmatmul.f32.gmra.mxu0 %v158
    %v270 = vpop.f32.mrf.mxu0
    %v271 = vadd.f32 %v118, %v270
    %272 = vmatmul.f32.gmra.mxu0 %v161
    %v273 = vpop.f32.mrf.mxu0
    %v274 = vadd.f32 %v118, %v273
    %275 = vmatmul.f32.gmra.mxu0 %v164
    %v276 = vpop.f32.mrf.mxu0
    %v277 = vadd.f32 %v118, %v276
    %278 = vmatmul.f32.gmra.mxu0 %v167
    %v279 = vpop.f32.mrf.mxu0
    %v280 = vadd.f32 %v118, %v279
    %281 = vmatmul.f32.gmra.mxu0 %v170
    %v282 = vpop.f32.mrf.mxu0
    %v283 = vadd.f32 %v118, %v282
    %284 = vmatmul.f32.gmra.mxu0 %v173
    %v285 = vpop.f32.mrf.mxu0
    %v286 = vadd.f32 %v118, %v285
    %287 = vmatmul.f32.gmra.mxu0 %v176
    %v288 = vpop.f32.mrf.mxu0
    %v289 = vadd.f32 %v118, %v288
    %290 = vmatmul.f32.gmra.mxu0 %v179
    %v291 = vpop.f32.mrf.mxu0
    %v292 = vadd.f32 %v118, %v291
    %293 = vmatmul.f32.gmra.mxu0 %v182
    %v294 = vpop.f32.mrf.mxu0
    %v295 = vadd.f32 %v118, %v294
    %296 = vmatmul.f32.gmra.mxu0 %v185
    %v297 = vpop.f32.mrf.mxu0
    %v298 = vadd.f32 %v118, %v297
    %299 = vmatmul.f32.gmra.mxu0 %v188
    %v300 = vpop.f32.mrf.mxu0
    %v301 = vadd.f32 %v118, %v300
    %302 = vmatmul.f32.gmra.mxu0 %v191
    %v303 = vpop.f32.mrf.mxu0
    %v304 = vadd.f32 %v118, %v303
    %305 = vmatmul.f32.gmra.mxu0 %v194
    %v306 = vpop.f32.mrf.mxu0
    %v307 = vadd.f32 %v118, %v306
    %308 = vmatmul.f32.gmra.mxu0 %v197
    %v309 = vpop.f32.mrf.mxu0
    %v310 = vadd.f32 %v118, %v309
    %311 = vmatmul.f32.gmra.mxu0 %v200
    %v312 = vpop.f32.mrf.mxu0
    %v313 = vadd.f32 %v118, %v312
    %314 = vmatmul.f32.gmra.mxu0 %v203
    %v315 = vpop.f32.mrf.mxu0
    %v316 = vadd.f32 %v118, %v315
    %317 = vmatmul.f32.gmra.mxu0 %v206
    %v318 = vpop.f32.mrf.mxu0
    %v319 = vadd.f32 %v118, %v318
    %320 = vmatmul.f32.gmra.mxu0 %v209
    %v321 = vpop.f32.mrf.mxu0
    %v322 = vadd.f32 %v118, %v321
    %323 = vmatmul.f32.gmra.mxu0 %v212
    %v324 = vpop.f32.mrf.mxu0
    %v325 = vadd.f32 %v118, %v324
    %326 = vmatmul.f32.gmra.mxu0 %v215
    %v327 = vpop.f32.mrf.mxu0
    %v328 = vadd.f32 %v118, %v327
    %329 = vdwg.mxu0
    %v330 = vpack.c.bf16 %v238, %v235
    %v331 = vpack.c.bf16 %v244, %v241
    %v332 = vpack.c.bf16 %v250, %v247
    %v333 = vpack.c.bf16 %v256, %v253
    %v334 = vpack.c.bf16 %v262, %v259
    %v335 = vpack.c.bf16 %v268, %v265
    %v336 = vpack.c.bf16 %v274, %v271
    %v337 = vpack.c.bf16 %v280, %v277
    %v338 = vpack.c.bf16 %v286, %v283
    %v339 = vpack.c.bf16 %v292, %v289
    %v340 = vpack.c.bf16 %v298, %v295
    %v341 = vpack.c.bf16 %v304, %v301
    %v342 = vpack.c.bf16 %v310, %v307
    %v343 = vpack.c.bf16 %v316, %v313
    %v344 = vpack.c.bf16 %v322, %v319
    %v345 = vpack.c.bf16 %v328, %v325
    %v346 = vld [vmem:[%s6] sm:$0x1]
    %v347 = vld [vmem:[#allocation2] sm:$0xff]
    %v348 = vld [vmem:[#allocation2 + $0x8] sm:$0xff]
    %v349 = vld [vmem:[#allocation2 + $0x10] sm:$0xff]
    %v350 = vld [vmem:[#allocation2 + $0x18] sm:$0xff]
    %v351 = vld [vmem:[#allocation2 + $0x20] sm:$0xff]
    %v352 = vld [vmem:[#allocation2 + $0x28] sm:$0xff]
    %v353 = vld [vmem:[#allocation2 + $0x30] sm:$0xff]
    %v354 = vld [vmem:[#allocation2 + $0x38] sm:$0xff]
    %v355 = vld [vmem:[#allocation2 + $0x40] sm:$0xff]
    %v356 = vld [vmem:[#allocation2 + $0x48] sm:$0xff]
    %v357 = vld [vmem:[#allocation2 + $0x50] sm:$0xff]
    %v358 = vld [vmem:[#allocation2 + $0x58] sm:$0xff]
    %v359 = vld [vmem:[#allocation2 + $0x60] sm:$0xff]
    %v360 = vld [vmem:[#allocation2 + $0x68] sm:$0xff]
    %v361 = vld [vmem:[#allocation2 + $0x70] sm:$0xff]
    %v362 = vld [vmem:[#allocation2 + $0x78] sm:$0xff]
    %v363 = vld [vmem:[#allocation2 + $0x80] sm:$0xff]
    %v364 = vld [vmem:[#allocation2 + $0x88] sm:$0xff]
    %v365 = vld [vmem:[#allocation2 + $0x90] sm:$0xff]
    %v366 = vld [vmem:[#allocation2 + $0x98] sm:$0xff]
    %v367 = vld [vmem:[#allocation2 + $0xa0] sm:$0xff]
    %v368 = vld [vmem:[#allocation2 + $0xa8] sm:$0xff]
    %v369 = vld [vmem:[#allocation2 + $0xb0] sm:$0xff]
    %v370 = vld [vmem:[#allocation2 + $0xb8] sm:$0xff]
    %v371 = vld [vmem:[#allocation2 + $0xc0] sm:$0xff]
    %v372 = vld [vmem:[#allocation2 + $0xc8] sm:$0xff]
    %v373 = vld [vmem:[#allocation2 + $0xd0] sm:$0xff]
    %v374 = vld [vmem:[#allocation2 + $0xd8] sm:$0xff]
    %v375 = vld [vmem:[#allocation2 + $0xe0] sm:$0xff]
    %v376 = vld [vmem:[#allocation2 + $0xe8] sm:$0xff]
    %v377 = vld [vmem:[#allocation2 + $0xf0] sm:$0xff]
    %v378 = vld [vmem:[#allocation2 + $0xf8] sm:$0xff]
    %v411 = vunpack.c.l.b16 %v347
    %v412 = vunpack.c.h.b16 %v347
    %v413 = vunpack.c.l.b16 %v348
    %v414 = vunpack.c.h.b16 %v348
    %v415 = vunpack.c.l.b16 %v349
    %v416 = vunpack.c.h.b16 %v349
    %v417 = vunpack.c.l.b16 %v350
    %v418 = vunpack.c.h.b16 %v350
    %v419 = vunpack.c.l.b16 %v351
    %v420 = vunpack.c.h.b16 %v351
    %v421 = vunpack.c.l.b16 %v352
    %v422 = vunpack.c.h.b16 %v352
    %v423 = vunpack.c.l.b16 %v353
    %v424 = vunpack.c.h.b16 %v353
    %v425 = vunpack.c.l.b16 %v354
    %v426 = vunpack.c.h.b16 %v354
    %v427 = vunpack.c.l.b16 %v355
    %v428 = vunpack.c.h.b16 %v355
    %v429 = vunpack.c.l.b16 %v356
    %v430 = vunpack.c.h.b16 %v356
    %v431 = vunpack.c.l.b16 %v357
    %v432 = vunpack.c.h.b16 %v357
    %v433 = vunpack.c.l.b16 %v358
    %v434 = vunpack.c.h.b16 %v358
    %v435 = vunpack.c.l.b16 %v359
    %v436 = vunpack.c.h.b16 %v359
    %v437 = vunpack.c.l.b16 %v360
    %v438 = vunpack.c.h.b16 %v360
    %v439 = vunpack.c.l.b16 %v361
    %v440 = vunpack.c.h.b16 %v361
    %v441 = vunpack.c.l.b16 %v362
    %v442 = vunpack.c.h.b16 %v362
    %v443 = vunpack.c.l.b16 %v363
    %v444 = vunpack.c.h.b16 %v363
    %v445 = vunpack.c.l.b16 %v364
    %v446 = vunpack.c.h.b16 %v364
    %v447 = vunpack.c.l.b16 %v365
    %v448 = vunpack.c.h.b16 %v365
    %v449 = vunpack.c.l.b16 %v366
    %v450 = vunpack.c.h.b16 %v366
    %v451 = vunpack.c.l.b16 %v367
    %v452 = vunpack.c.h.b16 %v367
    %v453 = vunpack.c.l.b16 %v368
    %v454 = vunpack.c.h.b16 %v368
    %v455 = vunpack.c.l.b16 %v369
    %v456 = vunpack.c.h.b16 %v369
    %v457 = vunpack.c.l.b16 %v370
    %v458 = vunpack.c.h.b16 %v370
    %v459 = vunpack.c.l.b16 %v371
    %v460 = vunpack.c.h.b16 %v371
    %v461 = vunpack.c.l.b16 %v372
    %v462 = vunpack.c.h.b16 %v372
    %v463 = vunpack.c.l.b16 %v373
    %v464 = vunpack.c.h.b16 %v373
    %v465 = vunpack.c.l.b16 %v374
    %v466 = vunpack.c.h.b16 %v374
    %v467 = vunpack.c.l.b16 %v375
    %v468 = vunpack.c.h.b16 %v375
    %v469 = vunpack.c.l.b16 %v376
    %v470 = vunpack.c.h.b16 %v376
    %v471 = vunpack.c.l.b16 %v377
    %v472 = vunpack.c.h.b16 %v377
    %v473 = vunpack.c.l.b16 %v378
    %v474 = vunpack.c.h.b16 %v378
    %v475 = vpack.c.b16 %v413, %v411
    %v476 = vpack.c.b16 %v414, %v412
    %v477 = vpack.c.b16 %v417, %v415
    %v478 = vpack.c.b16 %v418, %v416
    %v479 = vpack.c.b16 %v421, %v419
    %v480 = vpack.c.b16 %v422, %v420
    %v481 = vpack.c.b16 %v425, %v423
    %v482 = vpack.c.b16 %v426, %v424
    %v483 = vpack.c.b16 %v429, %v427
    %v484 = vpack.c.b16 %v430, %v428
    %v485 = vpack.c.b16 %v433, %v431
    %v486 = vpack.c.b16 %v434, %v432
    %v487 = vpack.c.b16 %v437, %v435
    %v488 = vpack.c.b16 %v438, %v436
    %v489 = vpack.c.b16 %v441, %v439
    %v490 = vpack.c.b16 %v442, %v440
    %v491 = vpack.c.b16 %v445, %v443
    %v492 = vpack.c.b16 %v446, %v444
    %v493 = vpack.c.b16 %v449, %v447
    %v494 = vpack.c.b16 %v450, %v448
    %v495 = vpack.c.b16 %v453, %v451
    %v496 = vpack.c.b16 %v454, %v452
    %v497 = vpack.c.b16 %v457, %v455
    %v498 = vpack.c.b16 %v458, %v456
    %v499 = vpack.c.b16 %v461, %v459
    %v500 = vpack.c.b16 %v462, %v460
    %v501 = vpack.c.b16 %v465, %v463
    %v502 = vpack.c.b16 %v466, %v464
    %v503 = vpack.c.b16 %v469, %v467
    %v504 = vpack.c.b16 %v470, %v468
    %v505 = vpack.c.b16 %v473, %v471
    %v506 = vpack.c.b16 %v474, %v472
    %539 = vmatpush.bf16.msra.mxu0 %v337
    %540 = vmatpush.bf16.msra.mxu0 %v336
    %541 = vmatpush.bf16.msra.mxu0 %v335
    %542 = vmatpush.bf16.msra.mxu0 %v334
    %543 = vmatpush.bf16.msra.mxu0 %v333
    %544 = vmatpush.bf16.msra.mxu0 %v332
    %545 = vmatpush.bf16.msra.mxu0 %v331
    %546 = vmatpush.bf16.msra.mxu0 %v330
    %547 = vmatmul.bf16.gmra.mxu0 %v475
    %v548 = vpop.f32.mrf.mxu0
    %v549 = vadd.f32 0.0, %v548
    %v550 = vpop.f32.mrf.mxu0
    %v551 = vadd.f32 0.0, %v550
    %552 = vmatmul.bf16.gmra.mxu0 %v477
    %v553 = vpop.f32.mrf.mxu0
    %v554 = vadd.f32 0.0, %v553
    %v555 = vpop.f32.mrf.mxu0
    %v556 = vadd.f32 0.0, %v555
    %557 = vmatmul.bf16.gmra.mxu0 %v479
    %v558 = vpop.f32.mrf.mxu0
    %v559 = vadd.f32 0.0, %v558
    %v560 = vpop.f32.mrf.mxu0
    %v561 = vadd.f32 0.0, %v560
    %562 = vmatmul.bf16.gmra.mxu0 %v481
    %v563 = vpop.f32.mrf.mxu0
    %v564 = vadd.f32 0.0, %v563
    %v565 = vpop.f32.mrf.mxu0
    %v566 = vadd.f32 0.0, %v565
    %567 = vmatmul.bf16.gmra.mxu0 %v483
    %v568 = vpop.f32.mrf.mxu0
    %v569 = vadd.f32 0.0, %v568
    %v570 = vpop.f32.mrf.mxu0
    %v571 = vadd.f32 0.0, %v570
    %572 = vmatmul.bf16.gmra.mxu0 %v485
    %v573 = vpop.f32.mrf.mxu0
    %v574 = vadd.f32 0.0, %v573
    %v575 = vpop.f32.mrf.mxu0
    %v576 = vadd.f32 0.0, %v575
    %577 = vmatmul.bf16.gmra.mxu0 %v487
    %v578 = vpop.f32.mrf.mxu0
    %v579 = vadd.f32 0.0, %v578
    %v580 = vpop.f32.mrf.mxu0
    %v581 = vadd.f32 0.0, %v580
    %582 = vmatmul.bf16.gmra.mxu0 %v489
    %v583 = vpop.f32.mrf.mxu0
    %v584 = vadd.f32 0.0, %v583
    %v585 = vpop.f32.mrf.mxu0
    %v586 = vadd.f32 0.0, %v585
    %587 = vmatmul.bf16.gmra.mxu0 %v491
    %v588 = vpop.f32.mrf.mxu0
    %v589 = vadd.f32 0.0, %v588
    %v590 = vpop.f32.mrf.mxu0
    %v591 = vadd.f32 0.0, %v590
    %592 = vmatmul.bf16.gmra.mxu0 %v493
    %v593 = vpop.f32.mrf.mxu0
    %v594 = vadd.f32 0.0, %v593
    %v595 = vpop.f32.mrf.mxu0
    %v596 = vadd.f32 0.0, %v595
    %597 = vmatmul.bf16.gmra.mxu0 %v495
    %v598 = vpop.f32.mrf.mxu0
    %v599 = vadd.f32 0.0, %v598
    %v600 = vpop.f32.mrf.mxu0
    %v601 = vadd.f32 0.0, %v600
    %602 = vmatmul.bf16.gmra.mxu0 %v497
    %v603 = vpop.f32.mrf.mxu0
    %v604 = vadd.f32 0.0, %v603
    %v605 = vpop.f32.mrf.mxu0
    %v606 = vadd.f32 0.0, %v605
    %607 = vmatmul.bf16.gmra.mxu0 %v499
    %v608 = vpop.f32.mrf.mxu0
    %v609 = vadd.f32 0.0, %v608
    %v610 = vpop.f32.mrf.mxu0
    %v611 = vadd.f32 0.0, %v610
    %612 = vmatmul.bf16.gmra.mxu0 %v501
    %v613 = vpop.f32.mrf.mxu0
    %v614 = vadd.f32 0.0, %v613
    %v615 = vpop.f32.mrf.mxu0
    %v616 = vadd.f32 0.0, %v615
    %617 = vmatmul.bf16.gmra.mxu0 %v503
    %v618 = vpop.f32.mrf.mxu0
    %v619 = vadd.f32 0.0, %v618
    %v620 = vpop.f32.mrf.mxu0
    %v621 = vadd.f32 0.0, %v620
    %622 = vmatmul.bf16.gmra.mxu0 %v505
    %v623 = vpop.f32.mrf.mxu0
    %v624 = vadd.f32 0.0, %v623
    %v625 = vpop.f32.mrf.mxu0
    %v626 = vadd.f32 0.0, %v625
    %627 = vdwg.mxu0
    %628 = vmatpush.bf16.msra.mxu0 %v345
    %629 = vmatpush.bf16.msra.mxu0 %v344
    %630 = vmatpush.bf16.msra.mxu0 %v343
    %631 = vmatpush.bf16.msra.mxu0 %v342
    %632 = vmatpush.bf16.msra.mxu0 %v341
    %633 = vmatpush.bf16.msra.mxu0 %v340
    %634 = vmatpush.bf16.msra.mxu0 %v339
    %635 = vmatpush.bf16.msra.mxu0 %v338
    %636 = vmatmul.bf16.gmra.mxu0 %v476
    %v637 = vpop.f32.mrf.mxu0
    %v638 = vadd.f32 %v549, %v637
    %v639 = vpop.f32.mrf.mxu0
    %v640 = vadd.f32 %v551, %v639
    %641 = vmatmul.bf16.gmra.mxu0 %v478
    %v642 = vpop.f32.mrf.mxu0
    %v643 = vadd.f32 %v554, %v642
    %v644 = vpop.f32.mrf.mxu0
    %v645 = vadd.f32 %v556, %v644
    %646 = vmatmul.bf16.gmra.mxu0 %v480
    %v647 = vpop.f32.mrf.mxu0
    %v648 = vadd.f32 %v559, %v647
    %v649 = vpop.f32.mrf.mxu0
    %v650 = vadd.f32 %v561, %v649
    %651 = vmatmul.bf16.gmra.mxu0 %v482
    %v652 = vpop.f32.mrf.mxu0
    %v653 = vadd.f32 %v564, %v652
    %v654 = vpop.f32.mrf.mxu0
    %v655 = vadd.f32 %v566, %v654
    %656 = vmatmul.bf16.gmra.mxu0 %v484
    %v657 = vpop.f32.mrf.mxu0
    %v658 = vadd.f32 %v569, %v657
    %v659 = vpop.f32.mrf.mxu0
    %v660 = vadd.f32 %v571, %v659
    %661 = vmatmul.bf16.gmra.mxu0 %v486
    %v662 = vpop.f32.mrf.mxu0
    %v663 = vadd.f32 %v574, %v662
    %v664 = vpop.f32.mrf.mxu0
    %v665 = vadd.f32 %v576, %v664
    %666 = vmatmul.bf16.gmra.mxu0 %v488
    %v667 = vpop.f32.mrf.mxu0
    %v668 = vadd.f32 %v579, %v667
    %v669 = vpop.f32.mrf.mxu0
    %v670 = vadd.f32 %v581, %v669
    %671 = vmatmul.bf16.gmra.mxu0 %v490
    %v672 = vpop.f32.mrf.mxu0
    %v673 = vadd.f32 %v584, %v672
    %v674 = vpop.f32.mrf.mxu0
    %v675 = vadd.f32 %v586, %v674
    %676 = vmatmul.bf16.gmra.mxu0 %v492
    %v677 = vpop.f32.mrf.mxu0
    %v678 = vadd.f32 %v589, %v677
    %v679 = vpop.f32.mrf.mxu0
    %v680 = vadd.f32 %v591, %v679
    %681 = vmatmul.bf16.gmra.mxu0 %v494
    %v682 = vpop.f32.mrf.mxu0
    %v683 = vadd.f32 %v594, %v682
    %v684 = vpop.f32.mrf.mxu0
    %v685 = vadd.f32 %v596, %v684
    %686 = vmatmul.bf16.gmra.mxu0 %v496
    %v687 = vpop.f32.mrf.mxu0
    %v688 = vadd.f32 %v599, %v687
    %v689 = vpop.f32.mrf.mxu0
    %v690 = vadd.f32 %v601, %v689
    %691 = vmatmul.bf16.gmra.mxu0 %v498
    %v692 = vpop.f32.mrf.mxu0
    %v693 = vadd.f32 %v604, %v692
    %v694 = vpop.f32.mrf.mxu0
    %v695 = vadd.f32 %v606, %v694
    %696 = vmatmul.bf16.gmra.mxu0 %v500
    %v697 = vpop.f32.mrf.mxu0
    %v698 = vadd.f32 %v609, %v697
    %v699 = vpop.f32.mrf.mxu0
    %v700 = vadd.f32 %v611, %v699
    %701 = vmatmul.bf16.gmra.mxu0 %v502
    %v702 = vpop.f32.mrf.mxu0
    %v703 = vadd.f32 %v614, %v702
    %v704 = vpop.f32.mrf.mxu0
    %v705 = vadd.f32 %v616, %v704
    %706 = vmatmul.bf16.gmra.mxu0 %v504
    %v707 = vpop.f32.mrf.mxu0
    %v708 = vadd.f32 %v619, %v707
    %v709 = vpop.f32.mrf.mxu0
    %v710 = vadd.f32 %v621, %v709
    %711 = vmatmul.bf16.gmra.mxu0 %v506
    %v712 = vpop.f32.mrf.mxu0
    %v713 = vadd.f32 %v624, %v712
    %v714 = vpop.f32.mrf.mxu0
    %v715 = vadd.f32 %v626, %v714
    %716 = vdwg.mxu0
    %v717 = vld [vmem:[%s4] sm:$0x1]
    %v719 = vperm.slane %v717, 0
    %v721 = vmul.f32 %v638, %v719
    %v722 = vmul.f32 %v640, %v719
    %v723 = vmul.f32 %v643, %v719
    %v724 = vmul.f32 %v645, %v719
    %v725 = vmul.f32 %v648, %v719
    %v726 = vmul.f32 %v650, %v719
    %v727 = vmul.f32 %v653, %v719
    %v728 = vmul.f32 %v655, %v719
    %v729 = vmul.f32 %v658, %v719
    %v730 = vmul.f32 %v660, %v719
    %v731 = vmul.f32 %v663, %v719
    %v732 = vmul.f32 %v665, %v719
    %v733 = vmul.f32 %v668, %v719
    %v734 = vmul.f32 %v670, %v719
    %v735 = vmul.f32 %v673, %v719
    %v736 = vmul.f32 %v675, %v719
    %v737 = vmul.f32 %v678, %v719
    %v738 = vmul.f32 %v680, %v719
    %v739 = vmul.f32 %v683, %v719
    %v740 = vmul.f32 %v685, %v719
    %v741 = vmul.f32 %v688, %v719
    %v742 = vmul.f32 %v690, %v719
    %v743 = vmul.f32 %v693, %v719
    %v744 = vmul.f32 %v695, %v719
    %v745 = vmul.f32 %v698, %v719
    %v746 = vmul.f32 %v700, %v719
    %v747 = vmul.f32 %v703, %v719
    %v748 = vmul.f32 %v705, %v719
    %v749 = vmul.f32 %v708, %v719
    %v750 = vmul.f32 %v710, %v719
    %v751 = vmul.f32 %v713, %v719
    %v752 = vmul.f32 %v715, %v719
    %v753 = vmax.f32 %v721, 0.0
    %v754 = vmax.f32 %v722, 0.0
    %v755 = vmax.f32 %v723, 0.0
    %v756 = vmax.f32 %v724, 0.0
    %v757 = vmax.f32 %v725, 0.0
    %v758 = vmax.f32 %v726, 0.0
    %v759 = vmax.f32 %v727, 0.0
    %v760 = vmax.f32 %v728, 0.0
    %v761 = vmax.f32 %v729, 0.0
    %v762 = vmax.f32 %v730, 0.0
    %v763 = vmax.f32 %v731, 0.0
    %v764 = vmax.f32 %v732, 0.0
    %v765 = vmax.f32 %v733, 0.0
    %v766 = vmax.f32 %v734, 0.0
    %v767 = vmax.f32 %v735, 0.0
    %v768 = vmax.f32 %v736, 0.0
    %v769 = vmax.f32 %v737, 0.0
    %v770 = vmax.f32 %v738, 0.0
    %v771 = vmax.f32 %v739, 0.0
    %v772 = vmax.f32 %v740, 0.0
    %v773 = vmax.f32 %v741, 0.0
    %v774 = vmax.f32 %v742, 0.0
    %v775 = vmax.f32 %v743, 0.0
    %v776 = vmax.f32 %v744, 0.0
    %v777 = vmax.f32 %v745, 0.0
    %v778 = vmax.f32 %v746, 0.0
    %v779 = vmax.f32 %v747, 0.0
    %v780 = vmax.f32 %v748, 0.0
    %v781 = vmax.f32 %v749, 0.0
    %v782 = vmax.f32 %v750, 0.0
    %v783 = vmax.f32 %v751, 0.0
    %v784 = vmax.f32 %v752, 0.0
    %v785 = vld [vmem:[#allocation5] sm:$0xff]
    %v786 = vld [vmem:[#allocation5 + $0x8] sm:$0xff]
    %v787 = vld [vmem:[#allocation5 + $0x10] sm:$0xff]
    %v788 = vld [vmem:[#allocation5 + $0x18] sm:$0xff]
    %v789 = vld [vmem:[#allocation5 + $0x20] sm:$0xff]
    %v790 = vld [vmem:[#allocation5 + $0x28] sm:$0xff]
    %v791 = vld [vmem:[#allocation5 + $0x30] sm:$0xff]
    %v792 = vld [vmem:[#allocation5 + $0x38] sm:$0xff]
    %v793 = vld [vmem:[#allocation5 + $0x40] sm:$0xff]
    %v794 = vld [vmem:[#allocation5 + $0x48] sm:$0xff]
    %v795 = vld [vmem:[#allocation5 + $0x50] sm:$0xff]
    %v796 = vld [vmem:[#allocation5 + $0x58] sm:$0xff]
    %v797 = vld [vmem:[#allocation5 + $0x60] sm:$0xff]
    %v798 = vld [vmem:[#allocation5 + $0x68] sm:$0xff]
    %v799 = vld [vmem:[#allocation5 + $0x70] sm:$0xff]
    %v800 = vld [vmem:[#allocation5 + $0x78] sm:$0xff]
    %801 = vmatpush.msra.mxu0 %v800
    %802 = vmatpush.msra.mxu0 %v799
    %803 = vmatpush.msra.mxu0 %v798
    %804 = vmatpush.msra.mxu0 %v797
    %805 = vmatpush.msra.mxu0 %v796
    %806 = vmatpush.msra.mxu0 %v795
    %807 = vmatpush.msra.mxu0 %v794
    %808 = vmatpush.msra.mxu0 %v793
    %809 = vmatpush.msra.mxu0 %v792
    %810 = vmatpush.msra.mxu0 %v791
    %811 = vmatpush.msra.mxu0 %v790
    %812 = vmatpush.msra.mxu0 %v789
    %813 = vmatpush.msra.mxu0 %v788
    %814 = vmatpush.msra.mxu0 %v787
    %815 = vmatpush.msra.mxu0 %v786
    %816 = vmatpush.msra.mxu0 %v785
    %817 = vmatmul.f32.gmra.mxu0 %v753
    %v818 = vpop.f32.mrf.mxu0
    %v819 = vadd.f32 0.0, %v818
    %820 = vmatmul.f32.gmra.mxu0 %v754
    %v821 = vpop.f32.mrf.mxu0
    %v822 = vadd.f32 0.0, %v821
    %823 = vmatmul.f32.gmra.mxu0 %v755
    %v824 = vpop.f32.mrf.mxu0
    %v825 = vadd.f32 0.0, %v824
    %826 = vmatmul.f32.gmra.mxu0 %v756
    %v827 = vpop.f32.mrf.mxu0
    %v828 = vadd.f32 0.0, %v827
    %829 = vmatmul.f32.gmra.mxu0 %v757
    %v830 = vpop.f32.mrf.mxu0
    %v831 = vadd.f32 0.0, %v830
    %832 = vmatmul.f32.gmra.mxu0 %v758
    %v833 = vpop.f32.mrf.mxu0
    %v834 = vadd.f32 0.0, %v833
    %835 = vmatmul.f32.gmra.mxu0 %v759
    %v836 = vpop.f32.mrf.mxu0
    %v837 = vadd.f32 0.0, %v836
    %838 = vmatmul.f32.gmra.mxu0 %v760
    %v839 = vpop.f32.mrf.mxu0
    %v840 = vadd.f32 0.0, %v839
    %841 = vmatmul.f32.gmra.mxu0 %v761
    %v842 = vpop.f32.mrf.mxu0
    %v843 = vadd.f32 0.0, %v842
    %844 = vmatmul.f32.gmra.mxu0 %v762
    %v845 = vpop.f32.mrf.mxu0
    %v846 = vadd.f32 0.0, %v845
    %847 = vmatmul.f32.gmra.mxu0 %v763
    %v848 = vpop.f32.mrf.mxu0
    %v849 = vadd.f32 0.0, %v848
    %850 = vmatmul.f32.gmra.mxu0 %v764
    %v851 = vpop.f32.mrf.mxu0
    %v852 = vadd.f32 0.0, %v851
    %853 = vmatmul.f32.gmra.mxu0 %v765
    %v854 = vpop.f32.mrf.mxu0
    %v855 = vadd.f32 0.0, %v854
    %856 = vmatmul.f32.gmra.mxu0 %v766
    %v857 = vpop.f32.mrf.mxu0
    %v858 = vadd.f32 0.0, %v857
    %859 = vmatmul.f32.gmra.mxu0 %v767
    %v860 = vpop.f32.mrf.mxu0
    %v861 = vadd.f32 0.0, %v860
    %862 = vmatmul.f32.gmra.mxu0 %v768
    %v863 = vpop.f32.mrf.mxu0
    %v864 = vadd.f32 0.0, %v863
    %865 = vmatmul.f32.gmra.mxu0 %v769
    %v866 = vpop.f32.mrf.mxu0
    %v867 = vadd.f32 0.0, %v866
    %868 = vmatmul.f32.gmra.mxu0 %v770
    %v869 = vpop.f32.mrf.mxu0
    %v870 = vadd.f32 0.0, %v869
    %871 = vmatmul.f32.gmra.mxu0 %v771
    %v872 = vpop.f32.mrf.mxu0
    %v873 = vadd.f32 0.0, %v872
    %874 = vmatmul.f32.gmra.mxu0 %v772
    %v875 = vpop.f32.mrf.mxu0
    %v876 = vadd.f32 0.0, %v875
    %877 = vmatmul.f32.gmra.mxu0 %v773
    %v878 = vpop.f32.mrf.mxu0
    %v879 = vadd.f32 0.0, %v878
    %880 = vmatmul.f32.gmra.mxu0 %v774
    %v881 = vpop.f32.mrf.mxu0
    %v882 = vadd.f32 0.0, %v881
    %883 = vmatmul.f32.gmra.mxu0 %v775
    %v884 = vpop.f32.mrf.mxu0
    %v885 = vadd.f32 0.0, %v884
    %886 = vmatmul.f32.gmra.mxu0 %v776
    %v887 = vpop.f32.mrf.mxu0
    %v888 = vadd.f32 0.0, %v887
    %889 = vmatmul.f32.gmra.mxu0 %v777
    %v890 = vpop.f32.mrf.mxu0
    %v891 = vadd.f32 0.0, %v890
    %892 = vmatmul.f32.gmra.mxu0 %v778
    %v893 = vpop.f32.mrf.mxu0
    %v894 = vadd.f32 0.0, %v893
    %895 = vmatmul.f32.gmra.mxu0 %v779
    %v896 = vpop.f32.mrf.mxu0
    %v897 = vadd.f32 0.0, %v896
    %898 = vmatmul.f32.gmra.mxu0 %v780
    %v899 = vpop.f32.mrf.mxu0
    %v900 = vadd.f32 0.0, %v899
    %901 = vmatmul.f32.gmra.mxu0 %v781
    %v902 = vpop.f32.mrf.mxu0
    %v903 = vadd.f32 0.0, %v902
    %904 = vmatmul.f32.gmra.mxu0 %v782
    %v905 = vpop.f32.mrf.mxu0
    %v906 = vadd.f32 0.0, %v905
    %907 = vmatmul.f32.gmra.mxu0 %v783
    %v908 = vpop.f32.mrf.mxu0
    %v909 = vadd.f32 0.0, %v908
    %910 = vmatmul.f32.gmra.mxu0 %v784
    %v911 = vpop.f32.mrf.mxu0
    %v912 = vadd.f32 0.0, %v911
    %913 = vdwg.mxu0
    %v915 = vperm.slane %v346, 0
    %v917 = vadd.f32 %v915, %v819
    %v918 = vadd.f32 %v915, %v822
    %v919 = vadd.f32 %v915, %v825
    %v920 = vadd.f32 %v915, %v828
    %v921 = vadd.f32 %v915, %v831
    %v922 = vadd.f32 %v915, %v834
    %v923 = vadd.f32 %v915, %v837
    %v924 = vadd.f32 %v915, %v840
    %v925 = vadd.f32 %v915, %v843
    %v926 = vadd.f32 %v915, %v846
    %v927 = vadd.f32 %v915, %v849
    %v928 = vadd.f32 %v915, %v852
    %v929 = vadd.f32 %v915, %v855
    %v930 = vadd.f32 %v915, %v858
    %v931 = vadd.f32 %v915, %v861
    %v932 = vadd.f32 %v915, %v864
    %v933 = vadd.f32 %v915, %v867
    %v934 = vadd.f32 %v915, %v870
    %v935 = vadd.f32 %v915, %v873
    %v936 = vadd.f32 %v915, %v876
    %v937 = vadd.f32 %v915, %v879
    %v938 = vadd.f32 %v915, %v882
    %v939 = vadd.f32 %v915, %v885
    %v940 = vadd.f32 %v915, %v888
    %v941 = vadd.f32 %v915, %v891
    %v942 = vadd.f32 %v915, %v894
    %v943 = vadd.f32 %v915, %v897
    %v944 = vadd.f32 %v915, %v900
    %v945 = vadd.f32 %v915, %v903
    %v946 = vadd.f32 %v915, %v906
    %v947 = vadd.f32 %v915, %v909
    %v948 = vadd.f32 %v915, %v912
    %s949 = scalar_lea.vmem [#allocation2], 256
    %v950 = vld [vmem:[%s949] sm:$0xff]
    %v951 = vld [vmem:[%s949 + $0x8] sm:$0xff]
    %v952 = vld [vmem:[%s949 + $0x10] sm:$0xff]
    %v953 = vld [vmem:[%s949 + $0x18] sm:$0xff]
    %v954 = vld [vmem:[%s949 + $0x20] sm:$0xff]
    %v955 = vld [vmem:[%s949 + $0x28] sm:$0xff]
    %v956 = vld [vmem:[%s949 + $0x30] sm:$0xff]
    %v957 = vld [vmem:[%s949 + $0x38] sm:$0xff]
    %v958 = vld [vmem:[%s949 + $0x40] sm:$0xff]
    %v959 = vld [vmem:[%s949 + $0x48] sm:$0xff]
    %v960 = vld [vmem:[%s949 + $0x50] sm:$0xff]
    %v961 = vld [vmem:[%s949 + $0x58] sm:$0xff]
    %v962 = vld [vmem:[%s949 + $0x60] sm:$0xff]
    %v963 = vld [vmem:[%s949 + $0x68] sm:$0xff]
    %v964 = vld [vmem:[%s949 + $0x70] sm:$0xff]
    %v965 = vld [vmem:[%s949 + $0x78] sm:$0xff]
    %v966 = vld [vmem:[%s949 + $0x80] sm:$0xff]
    %v967 = vld [vmem:[%s949 + $0x88] sm:$0xff]
    %v968 = vld [vmem:[%s949 + $0x90] sm:$0xff]
    %v969 = vld [vmem:[%s949 + $0x98] sm:$0xff]
    %v970 = vld [vmem:[%s949 + $0xa0] sm:$0xff]
    %v971 = vld [vmem:[%s949 + $0xa8] sm:$0xff]
    %v972 = vld [vmem:[%s949 + $0xb0] sm:$0xff]
    %v973 = vld [vmem:[%s949 + $0xb8] sm:$0xff]
    %v974 = vld [vmem:[%s949 + $0xc0] sm:$0xff]
    %v975 = vld [vmem:[%s949 + $0xc8] sm:$0xff]
    %v976 = vld [vmem:[%s949 + $0xd0] sm:$0xff]
    %v977 = vld [vmem:[%s949 + $0xd8] sm:$0xff]
    %v978 = vld [vmem:[%s949 + $0xe0] sm:$0xff]
    %v979 = vld [vmem:[%s949 + $0xe8] sm:$0xff]
    %v980 = vld [vmem:[%s949 + $0xf0] sm:$0xff]
    %v981 = vld [vmem:[%s949 + $0xf8] sm:$0xff]
    %v1014 = vunpack.c.l.b16 %v950
    %v1015 = vunpack.c.h.b16 %v950
    %v1016 = vunpack.c.l.b16 %v951
    %v1017 = vunpack.c.h.b16 %v951
    %v1018 = vunpack.c.l.b16 %v952
    %v1019 = vunpack.c.h.b16 %v952
    %v1020 = vunpack.c.l.b16 %v953
    %v1021 = vunpack.c.h.b16 %v953
    %v1022 = vunpack.c.l.b16 %v954
    %v1023 = vunpack.c.h.b16 %v954
    %v1024 = vunpack.c.l.b16 %v955
    %v1025 = vunpack.c.h.b16 %v955
    %v1026 = vunpack.c.l.b16 %v956
    %v1027 = vunpack.c.h.b16 %v956
    %v1028 = vunpack.c.l.b16 %v957
    %v1029 = vunpack.c.h.b16 %v957
    %v1030 = vunpack.c.l.b16 %v958
    %v1031 = vunpack.c.h.b16 %v958
    %v1032 = vunpack.c.l.b16 %v959
    %v1033 = vunpack.c.h.b16 %v959
    %v1034 = vunpack.c.l.b16 %v960
    %v1035 = vunpack.c.h.b16 %v960
    %v1036 = vunpack.c.l.b16 %v961
    %v1037 = vunpack.c.h.b16 %v961
    %v1038 = vunpack.c.l.b16 %v962
    %v1039 = vunpack.c.h.b16 %v962
    %v1040 = vunpack.c.l.b16 %v963
    %v1041 = vunpack.c.h.b16 %v963
    %v1042 = vunpack.c.l.b16 %v964
    %v1043 = vunpack.c.h.b16 %v964
    %v1044 = vunpack.c.l.b16 %v965
    %v1045 = vunpack.c.h.b16 %v965
    %v1046 = vunpack.c.l.b16 %v966
    %v1047 = vunpack.c.h.b16 %v966
    %v1048 = vunpack.c.l.b16 %v967
    %v1049 = vunpack.c.h.b16 %v967
    %v1050 = vunpack.c.l.b16 %v968
    %v1051 = vunpack.c.h.b16 %v968
    %v1052 = vunpack.c.l.b16 %v969
    %v1053 = vunpack.c.h.b16 %v969
    %v1054 = vunpack.c.l.b16 %v970
    %v1055 = vunpack.c.h.b16 %v970
    %v1056 = vunpack.c.l.b16 %v971
    %v1057 = vunpack.c.h.b16 %v971
    %v1058 = vunpack.c.l.b16 %v972
    %v1059 = vunpack.c.h.b16 %v972
    %v1060 = vunpack.c.l.b16 %v973
    %v1061 = vunpack.c.h.b16 %v973
    %v1062 = vunpack.c.l.b16 %v974
    %v1063 = vunpack.c.h.b16 %v974
    %v1064 = vunpack.c.l.b16 %v975
    %v1065 = vunpack.c.h.b16 %v975
    %v1066 = vunpack.c.l.b16 %v976
    %v1067 = vunpack.c.h.b16 %v976
    %v1068 = vunpack.c.l.b16 %v977
    %v1069 = vunpack.c.h.b16 %v977
    %v1070 = vunpack.c.l.b16 %v978
    %v1071 = vunpack.c.h.b16 %v978
    %v1072 = vunpack.c.l.b16 %v979
    %v1073 = vunpack.c.h.b16 %v979
    %v1074 = vunpack.c.l.b16 %v980
    %v1075 = vunpack.c.h.b16 %v980
    %v1076 = vunpack.c.l.b16 %v981
    %v1077 = vunpack.c.h.b16 %v981
    %v1078 = vpack.c.b16 %v1016, %v1014
    %v1079 = vpack.c.b16 %v1017, %v1015
    %v1080 = vpack.c.b16 %v1020, %v1018
    %v1081 = vpack.c.b16 %v1021, %v1019
    %v1082 = vpack.c.b16 %v1024, %v1022
    %v1083 = vpack.c.b16 %v1025, %v1023
    %v1084 = vpack.c.b16 %v1028, %v1026
    %v1085 = vpack.c.b16 %v1029, %v1027
    %v1086 = vpack.c.b16 %v1032, %v1030
    %v1087 = vpack.c.b16 %v1033, %v1031
    %v1088 = vpack.c.b16 %v1036, %v1034
    %v1089 = vpack.c.b16 %v1037, %v1035
    %v1090 = vpack.c.b16 %v1040, %v1038
    %v1091 = vpack.c.b16 %v1041, %v1039
    %v1092 = vpack.c.b16 %v1044, %v1042
    %v1093 = vpack.c.b16 %v1045, %v1043
    %v1094 = vpack.c.b16 %v1048, %v1046
    %v1095 = vpack.c.b16 %v1049, %v1047
    %v1096 = vpack.c.b16 %v1052, %v1050
    %v1097 = vpack.c.b16 %v1053, %v1051
    %v1098 = vpack.c.b16 %v1056, %v1054
    %v1099 = vpack.c.b16 %v1057, %v1055
    %v1100 = vpack.c.b16 %v1060, %v1058
    %v1101 = vpack.c.b16 %v1061, %v1059
    %v1102 = vpack.c.b16 %v1064, %v1062
    %v1103 = vpack.c.b16 %v1065, %v1063
    %v1104 = vpack.c.b16 %v1068, %v1066
    %v1105 = vpack.c.b16 %v1069, %v1067
    %v1106 = vpack.c.b16 %v1072, %v1070
    %v1107 = vpack.c.b16 %v1073, %v1071
    %v1108 = vpack.c.b16 %v1076, %v1074
    %v1109 = vpack.c.b16 %v1077, %v1075
    %1142 = vmatpush.bf16.msra.mxu0 %v337
    %1143 = vmatpush.bf16.msra.mxu0 %v336
    %1144 = vmatpush.bf16.msra.mxu0 %v335
    %1145 = vmatpush.bf16.msra.mxu0 %v334
    %1146 = vmatpush.bf16.msra.mxu0 %v333
    %1147 = vmatpush.bf16.msra.mxu0 %v332
    %1148 = vmatpush.bf16.msra.mxu0 %v331
    %1149 = vmatpush.bf16.msra.mxu0 %v330
    %1150 = vmatmul.bf16.gmra.mxu0 %v1078
    %v1151 = vpop.f32.mrf.mxu0
    %v1152 = vadd.f32 0.0, %v1151
    %v1153 = vpop.f32.mrf.mxu0
    %v1154 = vadd.f32 0.0, %v1153
    %1155 = vmatmul.bf16.gmra.mxu0 %v1080
    %v1156 = vpop.f32.mrf.mxu0
    %v1157 = vadd.f32 0.0, %v1156
    %v1158 = vpop.f32.mrf.mxu0
    %v1159 = vadd.f32 0.0, %v1158
    %1160 = vmatmul.bf16.gmra.mxu0 %v1082
    %v1161 = vpop.f32.mrf.mxu0
    %v1162 = vadd.f32 0.0, %v1161
    %v1163 = vpop.f32.mrf.mxu0
    %v1164 = vadd.f32 0.0, %v1163
    %1165 = vmatmul.bf16.gmra.mxu0 %v1084
    %v1166 = vpop.f32.mrf.mxu0
    %v1167 = vadd.f32 0.0, %v1166
    %v1168 = vpop.f32.mrf.mxu0
    %v1169 = vadd.f32 0.0, %v1168
    %1170 = vmatmul.bf16.gmra.mxu0 %v1086
    %v1171 = vpop.f32.mrf.mxu0
    %v1172 = vadd.f32 0.0, %v1171
    %v1173 = vpop.f32.mrf.mxu0
    %v1174 = vadd.f32 0.0, %v1173
    %1175 = vmatmul.bf16.gmra.mxu0 %v1088
    %v1176 = vpop.f32.mrf.mxu0
    %v1177 = vadd.f32 0.0, %v1176
    %v1178 = vpop.f32.mrf.mxu0
    %v1179 = vadd.f32 0.0, %v1178
    %1180 = vmatmul.bf16.gmra.mxu0 %v1090
    %v1181 = vpop.f32.mrf.mxu0
    %v1182 = vadd.f32 0.0, %v1181
    %v1183 = vpop.f32.mrf.mxu0
    %v1184 = vadd.f32 0.0, %v1183
    %1185 = vmatmul.bf16.gmra.mxu0 %v1092
    %v1186 = vpop.f32.mrf.mxu0
    %v1187 = vadd.f32 0.0, %v1186
    %v1188 = vpop.f32.mrf.mxu0
    %v1189 = vadd.f32 0.0, %v1188
    %1190 = vmatmul.bf16.gmra.mxu0 %v1094
    %v1191 = vpop.f32.mrf.mxu0
    %v1192 = vadd.f32 0.0, %v1191
    %v1193 = vpop.f32.mrf.mxu0
    %v1194 = vadd.f32 0.0, %v1193
    %1195 = vmatmul.bf16.gmra.mxu0 %v1096
    %v1196 = vpop.f32.mrf.mxu0
    %v1197 = vadd.f32 0.0, %v1196
    %v1198 = vpop.f32.mrf.mxu0
    %v1199 = vadd.f32 0.0, %v1198
    %1200 = vmatmul.bf16.gmra.mxu0 %v1098
    %v1201 = vpop.f32.mrf.mxu0
    %v1202 = vadd.f32 0.0, %v1201
    %v1203 = vpop.f32.mrf.mxu0
    %v1204 = vadd.f32 0.0, %v1203
    %1205 = vmatmul.bf16.gmra.mxu0 %v1100
    %v1206 = vpop.f32.mrf.mxu0
    %v1207 = vadd.f32 0.0, %v1206
    %v1208 = vpop.f32.mrf.mxu0
    %v1209 = vadd.f32 0.0, %v1208
    %1210 = vmatmul.bf16.gmra.mxu0 %v1102
    %v1211 = vpop.f32.mrf.mxu0
    %v1212 = vadd.f32 0.0, %v1211
    %v1213 = vpop.f32.mrf.mxu0
    %v1214 = vadd.f32 0.0, %v1213
    %1215 = vmatmul.bf16.gmra.mxu0 %v1104
    %v1216 = vpop.f32.mrf.mxu0
    %v1217 = vadd.f32 0.0, %v1216
    %v1218 = vpop.f32.mrf.mxu0
    %v1219 = vadd.f32 0.0, %v1218
    %1220 = vmatmul.bf16.gmra.mxu0 %v1106
    %v1221 = vpop.f32.mrf.mxu0
    %v1222 = vadd.f32 0.0, %v1221
    %v1223 = vpop.f32.mrf.mxu0
    %v1224 = vadd.f32 0.0, %v1223
    %1225 = vmatmul.bf16.gmra.mxu0 %v1108
    %v1226 = vpop.f32.mrf.mxu0
    %v1227 = vadd.f32 0.0, %v1226
    %v1228 = vpop.f32.mrf.mxu0
    %v1229 = vadd.f32 0.0, %v1228
    %1230 = vdwg.mxu0
    %1231 = vmatpush.bf16.msra.mxu0 %v345
    %1232 = vmatpush.bf16.msra.mxu0 %v344
    %1233 = vmatpush.bf16.msra.mxu0 %v343
    %1234 = vmatpush.bf16.msra.mxu0 %v342
    %1235 = vmatpush.bf16.msra.mxu0 %v341
    %1236 = vmatpush.bf16.msra.mxu0 %v340
    %1237 = vmatpush.bf16.msra.mxu0 %v339
    %1238 = vmatpush.bf16.msra.mxu0 %v338
    %1239 = vmatmul.bf16.gmra.mxu0 %v1079
    %v1240 = vpop.f32.mrf.mxu0
    %v1241 = vadd.f32 %v1152, %v1240
    %v1242 = vpop.f32.mrf.mxu0
    %v1243 = vadd.f32 %v1154, %v1242
    %1244 = vmatmul.bf16.gmra.mxu0 %v1081
    %v1245 = vpop.f32.mrf.mxu0
    %v1246 = vadd.f32 %v1157, %v1245
    %v1247 = vpop.f32.mrf.mxu0
    %v1248 = vadd.f32 %v1159, %v1247
    %1249 = vmatmul.bf16.gmra.mxu0 %v1083
    %v1250 = vpop.f32.mrf.mxu0
    %v1251 = vadd.f32 %v1162, %v1250
    %v1252 = vpop.f32.mrf.mxu0
    %v1253 = vadd.f32 %v1164, %v1252
    %1254 = vmatmul.bf16.gmra.mxu0 %v1085
    %v1255 = vpop.f32.mrf.mxu0
    %v1256 = vadd.f32 %v1167, %v1255
    %v1257 = vpop.f32.mrf.mxu0
    %v1258 = vadd.f32 %v1169, %v1257
    %1259 = vmatmul.bf16.gmra.mxu0 %v1087
    %v1260 = vpop.f32.mrf.mxu0
    %v1261 = vadd.f32 %v1172, %v1260
    %v1262 = vpop.f32.mrf.mxu0
    %v1263 = vadd.f32 %v1174, %v1262
    %1264 = vmatmul.bf16.gmra.mxu0 %v1089
    %v1265 = vpop.f32.mrf.mxu0
    %v1266 = vadd.f32 %v1177, %v1265
    %v1267 = vpop.f32.mrf.mxu0
    %v1268 = vadd.f32 %v1179, %v1267
    %1269 = vmatmul.bf16.gmra.mxu0 %v1091
    %v1270 = vpop.f32.mrf.mxu0
    %v1271 = vadd.f32 %v1182, %v1270
    %v1272 = vpop.f32.mrf.mxu0
    %v1273 = vadd.f32 %v1184, %v1272
    %1274 = vmatmul.bf16.gmra.mxu0 %v1093
    %v1275 = vpop.f32.mrf.mxu0
    %v1276 = vadd.f32 %v1187, %v1275
    %v1277 = vpop.f32.mrf.mxu0
    %v1278 = vadd.f32 %v1189, %v1277
    %1279 = vmatmul.bf16.gmra.mxu0 %v1095
    %v1280 = vpop.f32.mrf.mxu0
    %v1281 = vadd.f32 %v1192, %v1280
    %v1282 = vpop.f32.mrf.mxu0
    %v1283 = vadd.f32 %v1194, %v1282
    %1284 = vmatmul.bf16.gmra.mxu0 %v1097
    %v1285 = vpop.f32.mrf.mxu0
    %v1286 = vadd.f32 %v1197, %v1285
    %v1287 = vpop.f32.mrf.mxu0
    %v1288 = vadd.f32 %v1199, %v1287
    %1289 = vmatmul.bf16.gmra.mxu0 %v1099
    %v1290 = vpop.f32.mrf.mxu0
    %v1291 = vadd.f32 %v1202, %v1290
    %v1292 = vpop.f32.mrf.mxu0
    %v1293 = vadd.f32 %v1204, %v1292
    %1294 = vmatmul.bf16.gmra.mxu0 %v1101
    %v1295 = vpop.f32.mrf.mxu0
    %v1296 = vadd.f32 %v1207, %v1295
    %v1297 = vpop.f32.mrf.mxu0
    %v1298 = vadd.f32 %v1209, %v1297
    %1299 = vmatmul.bf16.gmra.mxu0 %v1103
    %v1300 = vpop.f32.mrf.mxu0
    %v1301 = vadd.f32 %v1212, %v1300
    %v1302 = vpop.f32.mrf.mxu0
    %v1303 = vadd.f32 %v1214, %v1302
    %1304 = vmatmul.bf16.gmra.mxu0 %v1105
    %v1305 = vpop.f32.mrf.mxu0
    %v1306 = vadd.f32 %v1217, %v1305
    %v1307 = vpop.f32.mrf.mxu0
    %v1308 = vadd.f32 %v1219, %v1307
    %1309 = vmatmul.bf16.gmra.mxu0 %v1107
    %v1310 = vpop.f32.mrf.mxu0
    %v1311 = vadd.f32 %v1222, %v1310
    %v1312 = vpop.f32.mrf.mxu0
    %v1313 = vadd.f32 %v1224, %v1312
    %1314 = vmatmul.bf16.gmra.mxu0 %v1109
    %v1315 = vpop.f32.mrf.mxu0
    %v1316 = vadd.f32 %v1227, %v1315
    %v1317 = vpop.f32.mrf.mxu0
    %v1318 = vadd.f32 %v1229, %v1317
    %1319 = vdwg.mxu0
    %s1320 = scalar_lea.vmem %s4, 1
    %v1321 = vld [vmem:[%s1320] sm:$0x1]
    %v1323 = vperm.slane %v1321, 0
    %v1325 = vmul.f32 %v1241, %v1323
    %v1326 = vmul.f32 %v1243, %v1323
    %v1327 = vmul.f32 %v1246, %v1323
    %v1328 = vmul.f32 %v1248, %v1323
    %v1329 = vmul.f32 %v1251, %v1323
    %v1330 = vmul.f32 %v1253, %v1323
    %v1331 = vmul.f32 %v1256, %v1323
    %v1332 = vmul.f32 %v1258, %v1323
    %v1333 = vmul.f32 %v1261, %v1323
    %v1334 = vmul.f32 %v1263, %v1323
    %v1335 = vmul.f32 %v1266, %v1323
    %v1336 = vmul.f32 %v1268, %v1323
    %v1337 = vmul.f32 %v1271, %v1323
    %v1338 = vmul.f32 %v1273, %v1323
    %v1339 = vmul.f32 %v1276, %v1323
    %v1340 = vmul.f32 %v1278, %v1323
    %v1341 = vmul.f32 %v1281, %v1323
    %v1342 = vmul.f32 %v1283, %v1323
    %v1343 = vmul.f32 %v1286, %v1323
    %v1344 = vmul.f32 %v1288, %v1323
    %v1345 = vmul.f32 %v1291, %v1323
    %v1346 = vmul.f32 %v1293, %v1323
    %v1347 = vmul.f32 %v1296, %v1323
    %v1348 = vmul.f32 %v1298, %v1323
    %v1349 = vmul.f32 %v1301, %v1323
    %v1350 = vmul.f32 %v1303, %v1323
    %v1351 = vmul.f32 %v1306, %v1323
    %v1352 = vmul.f32 %v1308, %v1323
    %v1353 = vmul.f32 %v1311, %v1323
    %v1354 = vmul.f32 %v1313, %v1323
    %v1355 = vmul.f32 %v1316, %v1323
    %v1356 = vmul.f32 %v1318, %v1323
    %v1357 = vmax.f32 %v1325, 0.0
    %v1358 = vmax.f32 %v1326, 0.0
    %v1359 = vmax.f32 %v1327, 0.0
    %v1360 = vmax.f32 %v1328, 0.0
    %v1361 = vmax.f32 %v1329, 0.0
    %v1362 = vmax.f32 %v1330, 0.0
    %v1363 = vmax.f32 %v1331, 0.0
    %v1364 = vmax.f32 %v1332, 0.0
    %v1365 = vmax.f32 %v1333, 0.0
    %v1366 = vmax.f32 %v1334, 0.0
    %v1367 = vmax.f32 %v1335, 0.0
    %v1368 = vmax.f32 %v1336, 0.0
    %v1369 = vmax.f32 %v1337, 0.0
    %v1370 = vmax.f32 %v1338, 0.0
    %v1371 = vmax.f32 %v1339, 0.0
    %v1372 = vmax.f32 %v1340, 0.0
    %v1373 = vmax.f32 %v1341, 0.0
    %v1374 = vmax.f32 %v1342, 0.0
    %v1375 = vmax.f32 %v1343, 0.0
    %v1376 = vmax.f32 %v1344, 0.0
    %v1377 = vmax.f32 %v1345, 0.0
    %v1378 = vmax.f32 %v1346, 0.0
    %v1379 = vmax.f32 %v1347, 0.0
    %v1380 = vmax.f32 %v1348, 0.0
    %v1381 = vmax.f32 %v1349, 0.0
    %v1382 = vmax.f32 %v1350, 0.0
    %v1383 = vmax.f32 %v1351, 0.0
    %v1384 = vmax.f32 %v1352, 0.0
    %v1385 = vmax.f32 %v1353, 0.0
    %v1386 = vmax.f32 %v1354, 0.0
    %v1387 = vmax.f32 %v1355, 0.0
    %v1388 = vmax.f32 %v1356, 0.0
    %v1389 = vld [vmem:[#allocation5 + $0x80] sm:$0xff]
    %v1390 = vld [vmem:[#allocation5 + $0x88] sm:$0xff]
    %v1391 = vld [vmem:[#allocation5 + $0x90] sm:$0xff]
    %v1392 = vld [vmem:[#allocation5 + $0x98] sm:$0xff]
    %v1393 = vld [vmem:[#allocation5 + $0xa0] sm:$0xff]
    %v1394 = vld [vmem:[#allocation5 + $0xa8] sm:$0xff]
    %v1395 = vld [vmem:[#allocation5 + $0xb0] sm:$0xff]
    %v1396 = vld [vmem:[#allocation5 + $0xb8] sm:$0xff]
    %v1397 = vld [vmem:[#allocation5 + $0xc0] sm:$0xff]
    %v1398 = vld [vmem:[#allocation5 + $0xc8] sm:$0xff]
    %v1399 = vld [vmem:[#allocation5 + $0xd0] sm:$0xff]
    %v1400 = vld [vmem:[#allocation5 + $0xd8] sm:$0xff]
    %v1401 = vld [vmem:[#allocation5 + $0xe0] sm:$0xff]
    %v1402 = vld [vmem:[#allocation5 + $0xe8] sm:$0xff]
    %v1403 = vld [vmem:[#allocation5 + $0xf0] sm:$0xff]
    %v1404 = vld [vmem:[#allocation5 + $0xf8] sm:$0xff]
    %1405 = vmatpush.msra.mxu0 %v1404
    %1406 = vmatpush.msra.mxu0 %v1403
    %1407 = vmatpush.msra.mxu0 %v1402
    %1408 = vmatpush.msra.mxu0 %v1401
    %1409 = vmatpush.msra.mxu0 %v1400
    %1410 = vmatpush.msra.mxu0 %v1399
    %1411 = vmatpush.msra.mxu0 %v1398
    %1412 = vmatpush.msra.mxu0 %v1397
    %1413 = vmatpush.msra.mxu0 %v1396
    %1414 = vmatpush.msra.mxu0 %v1395
    %1415 = vmatpush.msra.mxu0 %v1394
    %1416 = vmatpush.msra.mxu0 %v1393
    %1417 = vmatpush.msra.mxu0 %v1392
    %1418 = vmatpush.msra.mxu0 %v1391
    %1419 = vmatpush.msra.mxu0 %v1390
    %1420 = vmatpush.msra.mxu0 %v1389
    %1421 = vmatmul.f32.gmra.mxu0 %v1357
    %v1422 = vpop.f32.mrf.mxu0
    %v1423 = vadd.f32 0.0, %v1422
    %1424 = vmatmul.f32.gmra.mxu0 %v1358
    %v1425 = vpop.f32.mrf.mxu0
    %v1426 = vadd.f32 0.0, %v1425
    %1427 = vmatmul.f32.gmra.mxu0 %v1359
    %v1428 = vpop.f32.mrf.mxu0
    %v1429 = vadd.f32 0.0, %v1428
    %1430 = vmatmul.f32.gmra.mxu0 %v1360
    %v1431 = vpop.f32.mrf.mxu0
    %v1432 = vadd.f32 0.0, %v1431
    %1433 = vmatmul.f32.gmra.mxu0 %v1361
    %v1434 = vpop.f32.mrf.mxu0
    %v1435 = vadd.f32 0.0, %v1434
    %1436 = vmatmul.f32.gmra.mxu0 %v1362
    %v1437 = vpop.f32.mrf.mxu0
    %v1438 = vadd.f32 0.0, %v1437
    %1439 = vmatmul.f32.gmra.mxu0 %v1363
    %v1440 = vpop.f32.mrf.mxu0
    %v1441 = vadd.f32 0.0, %v1440
    %1442 = vmatmul.f32.gmra.mxu0 %v1364
    %v1443 = vpop.f32.mrf.mxu0
    %v1444 = vadd.f32 0.0, %v1443
    %1445 = vmatmul.f32.gmra.mxu0 %v1365
    %v1446 = vpop.f32.mrf.mxu0
    %v1447 = vadd.f32 0.0, %v1446
    %1448 = vmatmul.f32.gmra.mxu0 %v1366
    %v1449 = vpop.f32.mrf.mxu0
    %v1450 = vadd.f32 0.0, %v1449
    %1451 = vmatmul.f32.gmra.mxu0 %v1367
    %v1452 = vpop.f32.mrf.mxu0
    %v1453 = vadd.f32 0.0, %v1452
    %1454 = vmatmul.f32.gmra.mxu0 %v1368
    %v1455 = vpop.f32.mrf.mxu0
    %v1456 = vadd.f32 0.0, %v1455
    %1457 = vmatmul.f32.gmra.mxu0 %v1369
    %v1458 = vpop.f32.mrf.mxu0
    %v1459 = vadd.f32 0.0, %v1458
    %1460 = vmatmul.f32.gmra.mxu0 %v1370
    %v1461 = vpop.f32.mrf.mxu0
    %v1462 = vadd.f32 0.0, %v1461
    %1463 = vmatmul.f32.gmra.mxu0 %v1371
    %v1464 = vpop.f32.mrf.mxu0
    %v1465 = vadd.f32 0.0, %v1464
    %1466 = vmatmul.f32.gmra.mxu0 %v1372
    %v1467 = vpop.f32.mrf.mxu0
    %v1468 = vadd.f32 0.0, %v1467
    %1469 = vmatmul.f32.gmra.mxu0 %v1373
    %v1470 = vpop.f32.mrf.mxu0
    %v1471 = vadd.f32 0.0, %v1470
    %1472 = vmatmul.f32.gmra.mxu0 %v1374
    %v1473 = vpop.f32.mrf.mxu0
    %v1474 = vadd.f32 0.0, %v1473
    %1475 = vmatmul.f32.gmra.mxu0 %v1375
    %v1476 = vpop.f32.mrf.mxu0
    %v1477 = vadd.f32 0.0, %v1476
    %1478 = vmatmul.f32.gmra.mxu0 %v1376
    %v1479 = vpop.f32.mrf.mxu0
    %v1480 = vadd.f32 0.0, %v1479
    %1481 = vmatmul.f32.gmra.mxu0 %v1377
    %v1482 = vpop.f32.mrf.mxu0
    %v1483 = vadd.f32 0.0, %v1482
    %1484 = vmatmul.f32.gmra.mxu0 %v1378
    %v1485 = vpop.f32.mrf.mxu0
    %v1486 = vadd.f32 0.0, %v1485
    %1487 = vmatmul.f32.gmra.mxu0 %v1379
    %v1488 = vpop.f32.mrf.mxu0
    %v1489 = vadd.f32 0.0, %v1488
    %1490 = vmatmul.f32.gmra.mxu0 %v1380
    %v1491 = vpop.f32.mrf.mxu0
    %v1492 = vadd.f32 0.0, %v1491
    %1493 = vmatmul.f32.gmra.mxu0 %v1381
    %v1494 = vpop.f32.mrf.mxu0
    %v1495 = vadd.f32 0.0, %v1494
    %1496 = vmatmul.f32.gmra.mxu0 %v1382
    %v1497 = vpop.f32.mrf.mxu0
    %v1498 = vadd.f32 0.0, %v1497
    %1499 = vmatmul.f32.gmra.mxu0 %v1383
    %v1500 = vpop.f32.mrf.mxu0
    %v1501 = vadd.f32 0.0, %v1500
    %1502 = vmatmul.f32.gmra.mxu0 %v1384
    %v1503 = vpop.f32.mrf.mxu0
    %v1504 = vadd.f32 0.0, %v1503
    %1505 = vmatmul.f32.gmra.mxu0 %v1385
    %v1506 = vpop.f32.mrf.mxu0
    %v1507 = vadd.f32 0.0, %v1506
    %1508 = vmatmul.f32.gmra.mxu0 %v1386
    %v1509 = vpop.f32.mrf.mxu0
    %v1510 = vadd.f32 0.0, %v1509
    %1511 = vmatmul.f32.gmra.mxu0 %v1387
    %v1512 = vpop.f32.mrf.mxu0
    %v1513 = vadd.f32 0.0, %v1512
    %1514 = vmatmul.f32.gmra.mxu0 %v1388
    %v1515 = vpop.f32.mrf.mxu0
    %v1516 = vadd.f32 0.0, %v1515
    %1517 = vdwg.mxu0
    %v1518 = vadd.f32 %v917, %v1423
    %v1519 = vadd.f32 %v918, %v1426
    %v1520 = vadd.f32 %v919, %v1429
    %v1521 = vadd.f32 %v920, %v1432
    %v1522 = vadd.f32 %v921, %v1435
    %v1523 = vadd.f32 %v922, %v1438
    %v1524 = vadd.f32 %v923, %v1441
    %v1525 = vadd.f32 %v924, %v1444
    %v1526 = vadd.f32 %v925, %v1447
    %v1527 = vadd.f32 %v926, %v1450
    %v1528 = vadd.f32 %v927, %v1453
    %v1529 = vadd.f32 %v928, %v1456
    %v1530 = vadd.f32 %v929, %v1459
    %v1531 = vadd.f32 %v930, %v1462
    %v1532 = vadd.f32 %v931, %v1465
    %v1533 = vadd.f32 %v932, %v1468
    %v1534 = vadd.f32 %v933, %v1471
    %v1535 = vadd.f32 %v934, %v1474
    %v1536 = vadd.f32 %v935, %v1477
    %v1537 = vadd.f32 %v936, %v1480
    %v1538 = vadd.f32 %v937, %v1483
    %v1539 = vadd.f32 %v938, %v1486
    %v1540 = vadd.f32 %v939, %v1489
    %v1541 = vadd.f32 %v940, %v1492
    %v1542 = vadd.f32 %v941, %v1495
    %v1543 = vadd.f32 %v942, %v1498
    %v1544 = vadd.f32 %v943, %v1501
    %v1545 = vadd.f32 %v944, %v1504
    %v1546 = vadd.f32 %v945, %v1507
    %v1547 = vadd.f32 %v946, %v1510
    %v1548 = vadd.f32 %v947, %v1513
    %v1549 = vadd.f32 %v948, %v1516
    %s1550 = scalar_lea.vmem [#allocation2], 512
    %v1551 = vld [vmem:[%s1550] sm:$0xff]
    %v1552 = vld [vmem:[%s1550 + $0x8] sm:$0xff]
    %v1553 = vld [vmem:[%s1550 + $0x10] sm:$0xff]
    %v1554 = vld [vmem:[%s1550 + $0x18] sm:$0xff]
    %v1555 = vld [vmem:[%s1550 + $0x20] sm:$0xff]
    %v1556 = vld [vmem:[%s1550 + $0x28] sm:$0xff]
    %v1557 = vld [vmem:[%s1550 + $0x30] sm:$0xff]
    %v1558 = vld [vmem:[%s1550 + $0x38] sm:$0xff]
    %v1559 = vld [vmem:[%s1550 + $0x40] sm:$0xff]
    %v1560 = vld [vmem:[%s1550 + $0x48] sm:$0xff]
    %v1561 = vld [vmem:[%s1550 + $0x50] sm:$0xff]
    %v1562 = vld [vmem:[%s1550 + $0x58] sm:$0xff]
    %v1563 = vld [vmem:[%s1550 + $0x60] sm:$0xff]
    %v1564 = vld [vmem:[%s1550 + $0x68] sm:$0xff]
    %v1565 = vld [vmem:[%s1550 + $0x70] sm:$0xff]
    %v1566 = vld [vmem:[%s1550 + $0x78] sm:$0xff]
    %v1567 = vld [vmem:[%s1550 + $0x80] sm:$0xff]
    %v1568 = vld [vmem:[%s1550 + $0x88] sm:$0xff]
    %v1569 = vld [vmem:[%s1550 + $0x90] sm:$0xff]
    %v1570 = vld [vmem:[%s1550 + $0x98] sm:$0xff]
    %v1571 = vld [vmem:[%s1550 + $0xa0] sm:$0xff]
    %v1572 = vld [vmem:[%s1550 + $0xa8] sm:$0xff]
    %v1573 = vld [vmem:[%s1550 + $0xb0] sm:$0xff]
    %v1574 = vld [vmem:[%s1550 + $0xb8] sm:$0xff]
    %v1575 = vld [vmem:[%s1550 + $0xc0] sm:$0xff]
    %v1576 = vld [vmem:[%s1550 + $0xc8] sm:$0xff]
    %v1577 = vld [vmem:[%s1550 + $0xd0] sm:$0xff]
    %v1578 = vld [vmem:[%s1550 + $0xd8] sm:$0xff]
    %v1579 = vld [vmem:[%s1550 + $0xe0] sm:$0xff]
    %v1580 = vld [vmem:[%s1550 + $0xe8] sm:$0xff]
    %v1581 = vld [vmem:[%s1550 + $0xf0] sm:$0xff]
    %v1582 = vld [vmem:[%s1550 + $0xf8] sm:$0xff]
    %v1615 = vunpack.c.l.b16 %v1551
    %v1616 = vunpack.c.h.b16 %v1551
    %v1617 = vunpack.c.l.b16 %v1552
    %v1618 = vunpack.c.h.b16 %v1552
    %v1619 = vunpack.c.l.b16 %v1553
    %v1620 = vunpack.c.h.b16 %v1553
    %v1621 = vunpack.c.l.b16 %v1554
    %v1622 = vunpack.c.h.b16 %v1554
    %v1623 = vunpack.c.l.b16 %v1555
    %v1624 = vunpack.c.h.b16 %v1555
    %v1625 = vunpack.c.l.b16 %v1556
    %v1626 = vunpack.c.h.b16 %v1556
    %v1627 = vunpack.c.l.b16 %v1557
    %v1628 = vunpack.c.h.b16 %v1557
    %v1629 = vunpack.c.l.b16 %v1558
    %v1630 = vunpack.c.h.b16 %v1558
    %v1631 = vunpack.c.l.b16 %v1559
    %v1632 = vunpack.c.h.b16 %v1559
    %v1633 = vunpack.c.l.b16 %v1560
    %v1634 = vunpack.c.h.b16 %v1560
    %v1635 = vunpack.c.l.b16 %v1561
    %v1636 = vunpack.c.h.b16 %v1561
    %v1637 = vunpack.c.l.b16 %v1562
    %v1638 = vunpack.c.h.b16 %v1562
    %v1639 = vunpack.c.l.b16 %v1563
    %v1640 = vunpack.c.h.b16 %v1563
    %v1641 = vunpack.c.l.b16 %v1564
    %v1642 = vunpack.c.h.b16 %v1564
    %v1643 = vunpack.c.l.b16 %v1565
    %v1644 = vunpack.c.h.b16 %v1565
    %v1645 = vunpack.c.l.b16 %v1566
    %v1646 = vunpack.c.h.b16 %v1566
    %v1647 = vunpack.c.l.b16 %v1567
    %v1648 = vunpack.c.h.b16 %v1567
    %v1649 = vunpack.c.l.b16 %v1568
    %v1650 = vunpack.c.h.b16 %v1568
    %v1651 = vunpack.c.l.b16 %v1569
    %v1652 = vunpack.c.h.b16 %v1569
    %v1653 = vunpack.c.l.b16 %v1570
    %v1654 = vunpack.c.h.b16 %v1570
    %v1655 = vunpack.c.l.b16 %v1571
    %v1656 = vunpack.c.h.b16 %v1571
    %v1657 = vunpack.c.l.b16 %v1572
    %v1658 = vunpack.c.h.b16 %v1572
    %v1659 = vunpack.c.l.b16 %v1573
    %v1660 = vunpack.c.h.b16 %v1573
    %v1661 = vunpack.c.l.b16 %v1574
    %v1662 = vunpack.c.h.b16 %v1574
    %v1663 = vunpack.c.l.b16 %v1575
    %v1664 = vunpack.c.h.b16 %v1575
    %v1665 = vunpack.c.l.b16 %v1576
    %v1666 = vunpack.c.h.b16 %v1576
    %v1667 = vunpack.c.l.b16 %v1577
    %v1668 = vunpack.c.h.b16 %v1577
    %v1669 = vunpack.c.l.b16 %v1578
    %v1670 = vunpack.c.h.b16 %v1578
    %v1671 = vunpack.c.l.b16 %v1579
    %v1672 = vunpack.c.h.b16 %v1579
    %v1673 = vunpack.c.l.b16 %v1580
    %v1674 = vunpack.c.h.b16 %v1580
    %v1675 = vunpack.c.l.b16 %v1581
    %v1676 = vunpack.c.h.b16 %v1581
    %v1677 = vunpack.c.l.b16 %v1582
    %v1678 = vunpack.c.h.b16 %v1582
    %v1679 = vpack.c.b16 %v1617, %v1615
    %v1680 = vpack.c.b16 %v1618, %v1616
    %v1681 = vpack.c.b16 %v1621, %v1619
    %v1682 = vpack.c.b16 %v1622, %v1620
    %v1683 = vpack.c.b16 %v1625, %v1623
    %v1684 = vpack.c.b16 %v1626, %v1624
    %v1685 = vpack.c.b16 %v1629, %v1627
    %v1686 = vpack.c.b16 %v1630, %v1628
    %v1687 = vpack.c.b16 %v1633, %v1631
    %v1688 = vpack.c.b16 %v1634, %v1632
    %v1689 = vpack.c.b16 %v1637, %v1635
    %v1690 = vpack.c.b16 %v1638, %v1636
    %v1691 = vpack.c.b16 %v1641, %v1639
    %v1692 = vpack.c.b16 %v1642, %v1640
    %v1693 = vpack.c.b16 %v1645, %v1643
    %v1694 = vpack.c.b16 %v1646, %v1644
    %v1695 = vpack.c.b16 %v1649, %v1647
    %v1696 = vpack.c.b16 %v1650, %v1648
    %v1697 = vpack.c.b16 %v1653, %v1651
    %v1698 = vpack.c.b16 %v1654, %v1652
    %v1699 = vpack.c.b16 %v1657, %v1655
    %v1700 = vpack.c.b16 %v1658, %v1656
    %v1701 = vpack.c.b16 %v1661, %v1659
    %v1702 = vpack.c.b16 %v1662, %v1660
    %v1703 = vpack.c.b16 %v1665, %v1663
    %v1704 = vpack.c.b16 %v1666, %v1664
    %v1705 = vpack.c.b16 %v1669, %v1667
    %v1706 = vpack.c.b16 %v1670, %v1668
    %v1707 = vpack.c.b16 %v1673, %v1671
    %v1708 = vpack.c.b16 %v1674, %v1672
    %v1709 = vpack.c.b16 %v1677, %v1675
    %v1710 = vpack.c.b16 %v1678, %v1676
    %1743 = vmatpush.bf16.msra.mxu0 %v337
    %1744 = vmatpush.bf16.msra.mxu0 %v336
    %1745 = vmatpush.bf16.msra.mxu0 %v335
    %1746 = vmatpush.bf16.msra.mxu0 %v334
    %1747 = vmatpush.bf16.msra.mxu0 %v333
    %1748 = vmatpush.bf16.msra.mxu0 %v332
    %1749 = vmatpush.bf16.msra.mxu0 %v331
    %1750 = vmatpush.bf16.msra.mxu0 %v330
    %1751 = vmatmul.bf16.gmra.mxu0 %v1679
    %v1752 = vpop.f32.mrf.mxu0
    %v1753 = vadd.f32 0.0, %v1752
    %v1754 = vpop.f32.mrf.mxu0
    %v1755 = vadd.f32 0.0, %v1754
    %1756 = vmatmul.bf16.gmra.mxu0 %v1681
    %v1757 = vpop.f32.mrf.mxu0
    %v1758 = vadd.f32 0.0, %v1757
    %v1759 = vpop.f32.mrf.mxu0
    %v1760 = vadd.f32 0.0, %v1759
    %1761 = vmatmul.bf16.gmra.mxu0 %v1683
    %v1762 = vpop.f32.mrf.mxu0
    %v1763 = vadd.f32 0.0, %v1762
    %v1764 = vpop.f32.mrf.mxu0
    %v1765 = vadd.f32 0.0, %v1764
    %1766 = vmatmul.bf16.gmra.mxu0 %v1685
    %v1767 = vpop.f32.mrf.mxu0
    %v1768 = vadd.f32 0.0, %v1767
    %v1769 = vpop.f32.mrf.mxu0
    %v1770 = vadd.f32 0.0, %v1769
    %1771 = vmatmul.bf16.gmra.mxu0 %v1687
    %v1772 = vpop.f32.mrf.mxu0
    %v1773 = vadd.f32 0.0, %v1772
    %v1774 = vpop.f32.mrf.mxu0
    %v1775 = vadd.f32 0.0, %v1774
    %1776 = vmatmul.bf16.gmra.mxu0 %v1689
    %v1777 = vpop.f32.mrf.mxu0
    %v1778 = vadd.f32 0.0, %v1777
    %v1779 = vpop.f32.mrf.mxu0
    %v1780 = vadd.f32 0.0, %v1779
    %1781 = vmatmul.bf16.gmra.mxu0 %v1691
    %v1782 = vpop.f32.mrf.mxu0
    %v1783 = vadd.f32 0.0, %v1782
    %v1784 = vpop.f32.mrf.mxu0
    %v1785 = vadd.f32 0.0, %v1784
    %1786 = vmatmul.bf16.gmra.mxu0 %v1693
    %v1787 = vpop.f32.mrf.mxu0
    %v1788 = vadd.f32 0.0, %v1787
    %v1789 = vpop.f32.mrf.mxu0
    %v1790 = vadd.f32 0.0, %v1789
    %1791 = vmatmul.bf16.gmra.mxu0 %v1695
    %v1792 = vpop.f32.mrf.mxu0
    %v1793 = vadd.f32 0.0, %v1792
    %v1794 = vpop.f32.mrf.mxu0
    %v1795 = vadd.f32 0.0, %v1794
    %1796 = vmatmul.bf16.gmra.mxu0 %v1697
    %v1797 = vpop.f32.mrf.mxu0
    %v1798 = vadd.f32 0.0, %v1797
    %v1799 = vpop.f32.mrf.mxu0
    %v1800 = vadd.f32 0.0, %v1799
    %1801 = vmatmul.bf16.gmra.mxu0 %v1699
    %v1802 = vpop.f32.mrf.mxu0
    %v1803 = vadd.f32 0.0, %v1802
    %v1804 = vpop.f32.mrf.mxu0
    %v1805 = vadd.f32 0.0, %v1804
    %1806 = vmatmul.bf16.gmra.mxu0 %v1701
    %v1807 = vpop.f32.mrf.mxu0
    %v1808 = vadd.f32 0.0, %v1807
    %v1809 = vpop.f32.mrf.mxu0
    %v1810 = vadd.f32 0.0, %v1809
    %1811 = vmatmul.bf16.gmra.mxu0 %v1703
    %v1812 = vpop.f32.mrf.mxu0
    %v1813 = vadd.f32 0.0, %v1812
    %v1814 = vpop.f32.mrf.mxu0
    %v1815 = vadd.f32 0.0, %v1814
    %1816 = vmatmul.bf16.gmra.mxu0 %v1705
    %v1817 = vpop.f32.mrf.mxu0
    %v1818 = vadd.f32 0.0, %v1817
    %v1819 = vpop.f32.mrf.mxu0
    %v1820 = vadd.f32 0.0, %v1819
    %1821 = vmatmul.bf16.gmra.mxu0 %v1707
    %v1822 = vpop.f32.mrf.mxu0
    %v1823 = vadd.f32 0.0, %v1822
    %v1824 = vpop.f32.mrf.mxu0
    %v1825 = vadd.f32 0.0, %v1824
    %1826 = vmatmul.bf16.gmra.mxu0 %v1709
    %v1827 = vpop.f32.mrf.mxu0
    %v1828 = vadd.f32 0.0, %v1827
    %v1829 = vpop.f32.mrf.mxu0
    %v1830 = vadd.f32 0.0, %v1829
    %1831 = vdwg.mxu0
    %1832 = vmatpush.bf16.msra.mxu0 %v345
    %1833 = vmatpush.bf16.msra.mxu0 %v344
    %1834 = vmatpush.bf16.msra.mxu0 %v343
    %1835 = vmatpush.bf16.msra.mxu0 %v342
    %1836 = vmatpush.bf16.msra.mxu0 %v341
    %1837 = vmatpush.bf16.msra.mxu0 %v340
    %1838 = vmatpush.bf16.msra.mxu0 %v339
    %1839 = vmatpush.bf16.msra.mxu0 %v338
    %1840 = vmatmul.bf16.gmra.mxu0 %v1680
    %v1841 = vpop.f32.mrf.mxu0
    %v1842 = vadd.f32 %v1753, %v1841
    %v1843 = vpop.f32.mrf.mxu0
    %v1844 = vadd.f32 %v1755, %v1843
    %1845 = vmatmul.bf16.gmra.mxu0 %v1682
    %v1846 = vpop.f32.mrf.mxu0
    %v1847 = vadd.f32 %v1758, %v1846
    %v1848 = vpop.f32.mrf.mxu0
    %v1849 = vadd.f32 %v1760, %v1848
    %1850 = vmatmul.bf16.gmra.mxu0 %v1684
    %v1851 = vpop.f32.mrf.mxu0
    %v1852 = vadd.f32 %v1763, %v1851
    %v1853 = vpop.f32.mrf.mxu0
    %v1854 = vadd.f32 %v1765, %v1853
    %1855 = vmatmul.bf16.gmra.mxu0 %v1686
    %v1856 = vpop.f32.mrf.mxu0
    %v1857 = vadd.f32 %v1768, %v1856
    %v1858 = vpop.f32.mrf.mxu0
    %v1859 = vadd.f32 %v1770, %v1858
    %1860 = vmatmul.bf16.gmra.mxu0 %v1688
    %v1861 = vpop.f32.mrf.mxu0
    %v1862 = vadd.f32 %v1773, %v1861
    %v1863 = vpop.f32.mrf.mxu0
    %v1864 = vadd.f32 %v1775, %v1863
    %1865 = vmatmul.bf16.gmra.mxu0 %v1690
    %v1866 = vpop.f32.mrf.mxu0
    %v1867 = vadd.f32 %v1778, %v1866
    %v1868 = vpop.f32.mrf.mxu0
    %v1869 = vadd.f32 %v1780, %v1868
    %1870 = vmatmul.bf16.gmra.mxu0 %v1692
    %v1871 = vpop.f32.mrf.mxu0
    %v1872 = vadd.f32 %v1783, %v1871
    %v1873 = vpop.f32.mrf.mxu0
    %v1874 = vadd.f32 %v1785, %v1873
    %1875 = vmatmul.bf16.gmra.mxu0 %v1694
    %v1876 = vpop.f32.mrf.mxu0
    %v1877 = vadd.f32 %v1788, %v1876
    %v1878 = vpop.f32.mrf.mxu0
    %v1879 = vadd.f32 %v1790, %v1878
    %1880 = vmatmul.bf16.gmra.mxu0 %v1696
    %v1881 = vpop.f32.mrf.mxu0
    %v1882 = vadd.f32 %v1793, %v1881
    %v1883 = vpop.f32.mrf.mxu0
    %v1884 = vadd.f32 %v1795, %v1883
    %1885 = vmatmul.bf16.gmra.mxu0 %v1698
    %v1886 = vpop.f32.mrf.mxu0
    %v1887 = vadd.f32 %v1798, %v1886
    %v1888 = vpop.f32.mrf.mxu0
    %v1889 = vadd.f32 %v1800, %v1888
    %1890 = vmatmul.bf16.gmra.mxu0 %v1700
    %v1891 = vpop.f32.mrf.mxu0
    %v1892 = vadd.f32 %v1803, %v1891
    %v1893 = vpop.f32.mrf.mxu0
    %v1894 = vadd.f32 %v1805, %v1893
    %1895 = vmatmul.bf16.gmra.mxu0 %v1702
    %v1896 = vpop.f32.mrf.mxu0
    %v1897 = vadd.f32 %v1808, %v1896
    %v1898 = vpop.f32.mrf.mxu0
    %v1899 = vadd.f32 %v1810, %v1898
    %1900 = vmatmul.bf16.gmra.mxu0 %v1704
    %v1901 = vpop.f32.mrf.mxu0
    %v1902 = vadd.f32 %v1813, %v1901
    %v1903 = vpop.f32.mrf.mxu0
    %v1904 = vadd.f32 %v1815, %v1903
    %1905 = vmatmul.bf16.gmra.mxu0 %v1706
    %v1906 = vpop.f32.mrf.mxu0
    %v1907 = vadd.f32 %v1818, %v1906
    %v1908 = vpop.f32.mrf.mxu0
    %v1909 = vadd.f32 %v1820, %v1908
    %1910 = vmatmul.bf16.gmra.mxu0 %v1708
    %v1911 = vpop.f32.mrf.mxu0
    %v1912 = vadd.f32 %v1823, %v1911
    %v1913 = vpop.f32.mrf.mxu0
    %v1914 = vadd.f32 %v1825, %v1913
    %1915 = vmatmul.bf16.gmra.mxu0 %v1710
    %v1916 = vpop.f32.mrf.mxu0
    %v1917 = vadd.f32 %v1828, %v1916
    %v1918 = vpop.f32.mrf.mxu0
    %v1919 = vadd.f32 %v1830, %v1918
    %1920 = vdwg.mxu0
    %s1921 = scalar_lea.vmem %s4, 2
    %v1922 = vld [vmem:[%s1921] sm:$0x1]
    %v1924 = vperm.slane %v1922, 0
    %v1926 = vmul.f32 %v1842, %v1924
    %v1927 = vmul.f32 %v1844, %v1924
    %v1928 = vmul.f32 %v1847, %v1924
    %v1929 = vmul.f32 %v1849, %v1924
    %v1930 = vmul.f32 %v1852, %v1924
    %v1931 = vmul.f32 %v1854, %v1924
    %v1932 = vmul.f32 %v1857, %v1924
    %v1933 = vmul.f32 %v1859, %v1924
    %v1934 = vmul.f32 %v1862, %v1924
    %v1935 = vmul.f32 %v1864, %v1924
    %v1936 = vmul.f32 %v1867, %v1924
    %v1937 = vmul.f32 %v1869, %v1924
    %v1938 = vmul.f32 %v1872, %v1924
    %v1939 = vmul.f32 %v1874, %v1924
    %v1940 = vmul.f32 %v1877, %v1924
    %v1941 = vmul.f32 %v1879, %v1924
    %v1942 = vmul.f32 %v1882, %v1924
    %v1943 = vmul.f32 %v1884, %v1924
    %v1944 = vmul.f32 %v1887, %v1924
    %v1945 = vmul.f32 %v1889, %v1924
    %v1946 = vmul.f32 %v1892, %v1924
    %v1947 = vmul.f32 %v1894, %v1924
    %v1948 = vmul.f32 %v1897, %v1924
    %v1949 = vmul.f32 %v1899, %v1924
    %v1950 = vmul.f32 %v1902, %v1924
    %v1951 = vmul.f32 %v1904, %v1924
    %v1952 = vmul.f32 %v1907, %v1924
    %v1953 = vmul.f32 %v1909, %v1924
    %v1954 = vmul.f32 %v1912, %v1924
    %v1955 = vmul.f32 %v1914, %v1924
    %v1956 = vmul.f32 %v1917, %v1924
    %v1957 = vmul.f32 %v1919, %v1924
    %v1958 = vmax.f32 %v1926, 0.0
    %v1959 = vmax.f32 %v1927, 0.0
    %v1960 = vmax.f32 %v1928, 0.0
    %v1961 = vmax.f32 %v1929, 0.0
    %v1962 = vmax.f32 %v1930, 0.0
    %v1963 = vmax.f32 %v1931, 0.0
    %v1964 = vmax.f32 %v1932, 0.0
    %v1965 = vmax.f32 %v1933, 0.0
    %v1966 = vmax.f32 %v1934, 0.0
    %v1967 = vmax.f32 %v1935, 0.0
    %v1968 = vmax.f32 %v1936, 0.0
    %v1969 = vmax.f32 %v1937, 0.0
    %v1970 = vmax.f32 %v1938, 0.0
    %v1971 = vmax.f32 %v1939, 0.0
    %v1972 = vmax.f32 %v1940, 0.0
    %v1973 = vmax.f32 %v1941, 0.0
    %v1974 = vmax.f32 %v1942, 0.0
    %v1975 = vmax.f32 %v1943, 0.0
    %v1976 = vmax.f32 %v1944, 0.0
    %v1977 = vmax.f32 %v1945, 0.0
    %v1978 = vmax.f32 %v1946, 0.0
    %v1979 = vmax.f32 %v1947, 0.0
    %v1980 = vmax.f32 %v1948, 0.0
    %v1981 = vmax.f32 %v1949, 0.0
    %v1982 = vmax.f32 %v1950, 0.0
    %v1983 = vmax.f32 %v1951, 0.0
    %v1984 = vmax.f32 %v1952, 0.0
    %v1985 = vmax.f32 %v1953, 0.0
    %v1986 = vmax.f32 %v1954, 0.0
    %v1987 = vmax.f32 %v1955, 0.0
    %v1988 = vmax.f32 %v1956, 0.0
    %v1989 = vmax.f32 %v1957, 0.0
    %v1990 = vld [vmem:[#allocation5 + $0x100] sm:$0xff]
    %v1991 = vld [vmem:[#allocation5 + $0x108] sm:$0xff]
    %v1992 = vld [vmem:[#allocation5 + $0x110] sm:$0xff]
    %v1993 = vld [vmem:[#allocation5 + $0x118] sm:$0xff]
    %v1994 = vld [vmem:[#allocation5 + $0x120] sm:$0xff]
    %v1995 = vld [vmem:[#allocation5 + $0x128] sm:$0xff]
    %v1996 = vld [vmem:[#allocation5 + $0x130] sm:$0xff]
    %v1997 = vld [vmem:[#allocation5 + $0x138] sm:$0xff]
    %v1998 = vld [vmem:[#allocation5 + $0x140] sm:$0xff]
    %v1999 = vld [vmem:[#allocation5 + $0x148] sm:$0xff]
    %v2000 = vld [vmem:[#allocation5 + $0x150] sm:$0xff]
    %v2001 = vld [vmem:[#allocation5 + $0x158] sm:$0xff]
    %v2002 = vld [vmem:[#allocation5 + $0x160] sm:$0xff]
    %v2003 = vld [vmem:[#allocation5 + $0x168] sm:$0xff]
    %v2004 = vld [vmem:[#allocation5 + $0x170] sm:$0xff]
    %v2005 = vld [vmem:[#allocation5 + $0x178] sm:$0xff]
    %2006 = vmatpush.msra.mxu0 %v2005
    %2007 = vmatpush.msra.mxu0 %v2004
    %2008 = vmatpush.msra.mxu0 %v2003
    %2009 = vmatpush.msra.mxu0 %v2002
    %2010 = vmatpush.msra.mxu0 %v2001
    %2011 = vmatpush.msra.mxu0 %v2000
    %2012 = vmatpush.msra.mxu0 %v1999
    %2013 = vmatpush.msra.mxu0 %v1998
    %2014 = vmatpush.msra.mxu0 %v1997
    %2015 = vmatpush.msra.mxu0 %v1996
    %2016 = vmatpush.msra.mxu0 %v1995
    %2017 = vmatpush.msra.mxu0 %v1994
    %2018 = vmatpush.msra.mxu0 %v1993
    %2019 = vmatpush.msra.mxu0 %v1992
    %2020 = vmatpush.msra.mxu0 %v1991
    %2021 = vmatpush.msra.mxu0 %v1990
    %2022 = vmatmul.f32.gmra.mxu0 %v1958
    %v2023 = vpop.f32.mrf.mxu0
    %v2024 = vadd.f32 0.0, %v2023
    %2025 = vmatmul.f32.gmra.mxu0 %v1959
    %v2026 = vpop.f32.mrf.mxu0
    %v2027 = vadd.f32 0.0, %v2026
    %2028 = vmatmul.f32.gmra.mxu0 %v1960
    %v2029 = vpop.f32.mrf.mxu0
    %v2030 = vadd.f32 0.0, %v2029
    %2031 = vmatmul.f32.gmra.mxu0 %v1961
    %v2032 = vpop.f32.mrf.mxu0
    %v2033 = vadd.f32 0.0, %v2032
    %2034 = vmatmul.f32.gmra.mxu0 %v1962
    %v2035 = vpop.f32.mrf.mxu0
    %v2036 = vadd.f32 0.0, %v2035
    %2037 = vmatmul.f32.gmra.mxu0 %v1963
    %v2038 = vpop.f32.mrf.mxu0
    %v2039 = vadd.f32 0.0, %v2038
    %2040 = vmatmul.f32.gmra.mxu0 %v1964
    %v2041 = vpop.f32.mrf.mxu0
    %v2042 = vadd.f32 0.0, %v2041
    %2043 = vmatmul.f32.gmra.mxu0 %v1965
    %v2044 = vpop.f32.mrf.mxu0
    %v2045 = vadd.f32 0.0, %v2044
    %2046 = vmatmul.f32.gmra.mxu0 %v1966
    %v2047 = vpop.f32.mrf.mxu0
    %v2048 = vadd.f32 0.0, %v2047
    %2049 = vmatmul.f32.gmra.mxu0 %v1967
    %v2050 = vpop.f32.mrf.mxu0
    %v2051 = vadd.f32 0.0, %v2050
    %2052 = vmatmul.f32.gmra.mxu0 %v1968
    %v2053 = vpop.f32.mrf.mxu0
    %v2054 = vadd.f32 0.0, %v2053
    %2055 = vmatmul.f32.gmra.mxu0 %v1969
    %v2056 = vpop.f32.mrf.mxu0
    %v2057 = vadd.f32 0.0, %v2056
    %2058 = vmatmul.f32.gmra.mxu0 %v1970
    %v2059 = vpop.f32.mrf.mxu0
    %v2060 = vadd.f32 0.0, %v2059
    %2061 = vmatmul.f32.gmra.mxu0 %v1971
    %v2062 = vpop.f32.mrf.mxu0
    %v2063 = vadd.f32 0.0, %v2062
    %2064 = vmatmul.f32.gmra.mxu0 %v1972
    %v2065 = vpop.f32.mrf.mxu0
    %v2066 = vadd.f32 0.0, %v2065
    %2067 = vmatmul.f32.gmra.mxu0 %v1973
    %v2068 = vpop.f32.mrf.mxu0
    %v2069 = vadd.f32 0.0, %v2068
    %2070 = vmatmul.f32.gmra.mxu0 %v1974
    %v2071 = vpop.f32.mrf.mxu0
    %v2072 = vadd.f32 0.0, %v2071
    %2073 = vmatmul.f32.gmra.mxu0 %v1975
    %v2074 = vpop.f32.mrf.mxu0
    %v2075 = vadd.f32 0.0, %v2074
    %2076 = vmatmul.f32.gmra.mxu0 %v1976
    %v2077 = vpop.f32.mrf.mxu0
    %v2078 = vadd.f32 0.0, %v2077
    %2079 = vmatmul.f32.gmra.mxu0 %v1977
    %v2080 = vpop.f32.mrf.mxu0
    %v2081 = vadd.f32 0.0, %v2080
    %2082 = vmatmul.f32.gmra.mxu0 %v1978
    %v2083 = vpop.f32.mrf.mxu0
    %v2084 = vadd.f32 0.0, %v2083
    %2085 = vmatmul.f32.gmra.mxu0 %v1979
    %v2086 = vpop.f32.mrf.mxu0
    %v2087 = vadd.f32 0.0, %v2086
    %2088 = vmatmul.f32.gmra.mxu0 %v1980
    %v2089 = vpop.f32.mrf.mxu0
    %v2090 = vadd.f32 0.0, %v2089
    %2091 = vmatmul.f32.gmra.mxu0 %v1981
    %v2092 = vpop.f32.mrf.mxu0
    %v2093 = vadd.f32 0.0, %v2092
    %2094 = vmatmul.f32.gmra.mxu0 %v1982
    %v2095 = vpop.f32.mrf.mxu0
    %v2096 = vadd.f32 0.0, %v2095
    %2097 = vmatmul.f32.gmra.mxu0 %v1983
    %v2098 = vpop.f32.mrf.mxu0
    %v2099 = vadd.f32 0.0, %v2098
    %2100 = vmatmul.f32.gmra.mxu0 %v1984
    %v2101 = vpop.f32.mrf.mxu0
    %v2102 = vadd.f32 0.0, %v2101
    %2103 = vmatmul.f32.gmra.mxu0 %v1985
    %v2104 = vpop.f32.mrf.mxu0
    %v2105 = vadd.f32 0.0, %v2104
    %2106 = vmatmul.f32.gmra.mxu0 %v1986
    %v2107 = vpop.f32.mrf.mxu0
    %v2108 = vadd.f32 0.0, %v2107
    %2109 = vmatmul.f32.gmra.mxu0 %v1987
    %v2110 = vpop.f32.mrf.mxu0
    %v2111 = vadd.f32 0.0, %v2110
    %2112 = vmatmul.f32.gmra.mxu0 %v1988
    %v2113 = vpop.f32.mrf.mxu0
    %v2114 = vadd.f32 0.0, %v2113
    %2115 = vmatmul.f32.gmra.mxu0 %v1989
    %v2116 = vpop.f32.mrf.mxu0
    %v2117 = vadd.f32 0.0, %v2116
    %2118 = vdwg.mxu0
    %v2119 = vadd.f32 %v1518, %v2024
    %v2120 = vadd.f32 %v1519, %v2027
    %v2121 = vadd.f32 %v1520, %v2030
    %v2122 = vadd.f32 %v1521, %v2033
    %v2123 = vadd.f32 %v1522, %v2036
    %v2124 = vadd.f32 %v1523, %v2039
    %v2125 = vadd.f32 %v1524, %v2042
    %v2126 = vadd.f32 %v1525, %v2045
    %v2127 = vadd.f32 %v1526, %v2048
    %v2128 = vadd.f32 %v1527, %v2051
    %v2129 = vadd.f32 %v1528, %v2054
    %v2130 = vadd.f32 %v1529, %v2057
    %v2131 = vadd.f32 %v1530, %v2060
    %v2132 = vadd.f32 %v1531, %v2063
    %v2133 = vadd.f32 %v1532, %v2066
    %v2134 = vadd.f32 %v1533, %v2069
    %v2135 = vadd.f32 %v1534, %v2072
    %v2136 = vadd.f32 %v1535, %v2075
    %v2137 = vadd.f32 %v1536, %v2078
    %v2138 = vadd.f32 %v1537, %v2081
    %v2139 = vadd.f32 %v1538, %v2084
    %v2140 = vadd.f32 %v1539, %v2087
    %v2141 = vadd.f32 %v1540, %v2090
    %v2142 = vadd.f32 %v1541, %v2093
    %v2143 = vadd.f32 %v1542, %v2096
    %v2144 = vadd.f32 %v1543, %v2099
    %v2145 = vadd.f32 %v1544, %v2102
    %v2146 = vadd.f32 %v1545, %v2105
    %v2147 = vadd.f32 %v1546, %v2108
    %v2148 = vadd.f32 %v1547, %v2111
    %v2149 = vadd.f32 %v1548, %v2114
    %v2150 = vadd.f32 %v1549, %v2117
    %v2151 = vpack.c.bf16 %v2120, %v2119
    %v2152 = vpack.c.bf16 %v2122, %v2121
    %v2153 = vpack.c.bf16 %v2124, %v2123
    %v2154 = vpack.c.bf16 %v2126, %v2125
    %v2155 = vpack.c.bf16 %v2128, %v2127
    %v2156 = vpack.c.bf16 %v2130, %v2129
    %v2157 = vpack.c.bf16 %v2132, %v2131
    %v2158 = vpack.c.bf16 %v2134, %v2133
    %v2159 = vpack.c.bf16 %v2136, %v2135
    %v2160 = vpack.c.bf16 %v2138, %v2137
    %v2161 = vpack.c.bf16 %v2140, %v2139
    %v2162 = vpack.c.bf16 %v2142, %v2141
    %v2163 = vpack.c.bf16 %v2144, %v2143
    %v2164 = vpack.c.bf16 %v2146, %v2145
    %v2165 = vpack.c.bf16 %v2148, %v2147
    %v2166 = vpack.c.bf16 %v2150, %v2149
    %v2167 = vld [vmem:[%s9] sm:$0x1]
    %2168 = vmatpush.bf16.msra.mxu0 %v2158
    %2169 = vmatpush.bf16.msra.mxu0 %v2157
    %2170 = vmatpush.bf16.msra.mxu0 %v2156
    %2171 = vmatpush.bf16.msra.mxu0 %v2155
    %2172 = vmatpush.bf16.msra.mxu0 %v2154
    %2173 = vmatpush.bf16.msra.mxu0 %v2153
    %2174 = vmatpush.bf16.msra.mxu0 %v2152
    %2175 = vmatpush.bf16.msra.mxu0 %v2151
    %2176 = vmatmul.bf16.gmra.mxu0 %v475
    %v2177 = vpop.f32.mrf.mxu0
    %v2178 = vadd.f32 0.0, %v2177
    %v2179 = vpop.f32.mrf.mxu0
    %v2180 = vadd.f32 0.0, %v2179
    %2181 = vmatmul.bf16.gmra.mxu0 %v477
    %v2182 = vpop.f32.mrf.mxu0
    %v2183 = vadd.f32 0.0, %v2182
    %v2184 = vpop.f32.mrf.mxu0
    %v2185 = vadd.f32 0.0, %v2184
    %2186 = vmatmul.bf16.gmra.mxu0 %v479
    %v2187 = vpop.f32.mrf.mxu0
    %v2188 = vadd.f32 0.0, %v2187
    %v2189 = vpop.f32.mrf.mxu0
    %v2190 = vadd.f32 0.0, %v2189
    %2191 = vmatmul.bf16.gmra.mxu0 %v481
    %v2192 = vpop.f32.mrf.mxu0
    %v2193 = vadd.f32 0.0, %v2192
    %v2194 = vpop.f32.mrf.mxu0
    %v2195 = vadd.f32 0.0, %v2194
    %2196 = vmatmul.bf16.gmra.mxu0 %v483
    %v2197 = vpop.f32.mrf.mxu0
    %v2198 = vadd.f32 0.0, %v2197
    %v2199 = vpop.f32.mrf.mxu0
    %v2200 = vadd.f32 0.0, %v2199
    %2201 = vmatmul.bf16.gmra.mxu0 %v485
    %v2202 = vpop.f32.mrf.mxu0
    %v2203 = vadd.f32 0.0, %v2202
    %v2204 = vpop.f32.mrf.mxu0
    %v2205 = vadd.f32 0.0, %v2204
    %2206 = vmatmul.bf16.gmra.mxu0 %v487
    %v2207 = vpop.f32.mrf.mxu0
    %v2208 = vadd.f32 0.0, %v2207
    %v2209 = vpop.f32.mrf.mxu0
    %v2210 = vadd.f32 0.0, %v2209
    %2211 = vmatmul.bf16.gmra.mxu0 %v489
    %v2212 = vpop.f32.mrf.mxu0
    %v2213 = vadd.f32 0.0, %v2212
    %v2214 = vpop.f32.mrf.mxu0
    %v2215 = vadd.f32 0.0, %v2214
    %2216 = vmatmul.bf16.gmra.mxu0 %v491
    %v2217 = vpop.f32.mrf.mxu0
    %v2218 = vadd.f32 0.0, %v2217
    %v2219 = vpop.f32.mrf.mxu0
    %v2220 = vadd.f32 0.0, %v2219
    %2221 = vmatmul.bf16.gmra.mxu0 %v493
    %v2222 = vpop.f32.mrf.mxu0
    %v2223 = vadd.f32 0.0, %v2222
    %v2224 = vpop.f32.mrf.mxu0
    %v2225 = vadd.f32 0.0, %v2224
    %2226 = vmatmul.bf16.gmra.mxu0 %v495
    %v2227 = vpop.f32.mrf.mxu0
    %v2228 = vadd.f32 0.0, %v2227
    %v2229 = vpop.f32.mrf.mxu0
    %v2230 = vadd.f32 0.0, %v2229
    %2231 = vmatmul.bf16.gmra.mxu0 %v497
    %v2232 = vpop.f32.mrf.mxu0
    %v2233 = vadd.f32 0.0, %v2232
    %v2234 = vpop.f32.mrf.mxu0
    %v2235 = vadd.f32 0.0, %v2234
    %2236 = vmatmul.bf16.gmra.mxu0 %v499
    %v2237 = vpop.f32.mrf.mxu0
    %v2238 = vadd.f32 0.0, %v2237
    %v2239 = vpop.f32.mrf.mxu0
    %v2240 = vadd.f32 0.0, %v2239
    %2241 = vmatmul.bf16.gmra.mxu0 %v501
    %v2242 = vpop.f32.mrf.mxu0
    %v2243 = vadd.f32 0.0, %v2242
    %v2244 = vpop.f32.mrf.mxu0
    %v2245 = vadd.f32 0.0, %v2244
    %2246 = vmatmul.bf16.gmra.mxu0 %v503
    %v2247 = vpop.f32.mrf.mxu0
    %v2248 = vadd.f32 0.0, %v2247
    %v2249 = vpop.f32.mrf.mxu0
    %v2250 = vadd.f32 0.0, %v2249
    %2251 = vmatmul.bf16.gmra.mxu0 %v505
    %v2252 = vpop.f32.mrf.mxu0
    %v2253 = vadd.f32 0.0, %v2252
    %v2254 = vpop.f32.mrf.mxu0
    %v2255 = vadd.f32 0.0, %v2254
    %2256 = vdwg.mxu0
    %2257 = vmatpush.bf16.msra.mxu0 %v2166
    %2258 = vmatpush.bf16.msra.mxu0 %v2165
    %2259 = vmatpush.bf16.msra.mxu0 %v2164
    %2260 = vmatpush.bf16.msra.mxu0 %v2163
    %2261 = vmatpush.bf16.msra.mxu0 %v2162
    %2262 = vmatpush.bf16.msra.mxu0 %v2161
    %2263 = vmatpush.bf16.msra.mxu0 %v2160
    %2264 = vmatpush.bf16.msra.mxu0 %v2159
    %2265 = vmatmul.bf16.gmra.mxu0 %v476
    %v2266 = vpop.f32.mrf.mxu0
    %v2267 = vadd.f32 %v2178, %v2266
    %v2268 = vpop.f32.mrf.mxu0
    %v2269 = vadd.f32 %v2180, %v2268
    %2270 = vmatmul.bf16.gmra.mxu0 %v478
    %v2271 = vpop.f32.mrf.mxu0
    %v2272 = vadd.f32 %v2183, %v2271
    %v2273 = vpop.f32.mrf.mxu0
    %v2274 = vadd.f32 %v2185, %v2273
    %2275 = vmatmul.bf16.gmra.mxu0 %v480
    %v2276 = vpop.f32.mrf.mxu0
    %v2277 = vadd.f32 %v2188, %v2276
    %v2278 = vpop.f32.mrf.mxu0
    %v2279 = vadd.f32 %v2190, %v2278
    %2280 = vmatmul.bf16.gmra.mxu0 %v482
    %v2281 = vpop.f32.mrf.mxu0
    %v2282 = vadd.f32 %v2193, %v2281
    %v2283 = vpop.f32.mrf.mxu0
    %v2284 = vadd.f32 %v2195, %v2283
    %2285 = vmatmul.bf16.gmra.mxu0 %v484
    %v2286 = vpop.f32.mrf.mxu0
    %v2287 = vadd.f32 %v2198, %v2286
    %v2288 = vpop.f32.mrf.mxu0
    %v2289 = vadd.f32 %v2200, %v2288
    %2290 = vmatmul.bf16.gmra.mxu0 %v486
    %v2291 = vpop.f32.mrf.mxu0
    %v2292 = vadd.f32 %v2203, %v2291
    %v2293 = vpop.f32.mrf.mxu0
    %v2294 = vadd.f32 %v2205, %v2293
    %2295 = vmatmul.bf16.gmra.mxu0 %v488
    %v2296 = vpop.f32.mrf.mxu0
    %v2297 = vadd.f32 %v2208, %v2296
    %v2298 = vpop.f32.mrf.mxu0
    %v2299 = vadd.f32 %v2210, %v2298
    %2300 = vmatmul.bf16.gmra.mxu0 %v490
    %v2301 = vpop.f32.mrf.mxu0
    %v2302 = vadd.f32 %v2213, %v2301
    %v2303 = vpop.f32.mrf.mxu0
    %v2304 = vadd.f32 %v2215, %v2303
    %2305 = vmatmul.bf16.gmra.mxu0 %v492
    %v2306 = vpop.f32.mrf.mxu0
    %v2307 = vadd.f32 %v2218, %v2306
    %v2308 = vpop.f32.mrf.mxu0
    %v2309 = vadd.f32 %v2220, %v2308
    %2310 = vmatmul.bf16.gmra.mxu0 %v494
    %v2311 = vpop.f32.mrf.mxu0
    %v2312 = vadd.f32 %v2223, %v2311
    %v2313 = vpop.f32.mrf.mxu0
    %v2314 = vadd.f32 %v2225, %v2313
    %2315 = vmatmul.bf16.gmra.mxu0 %v496
    %v2316 = vpop.f32.mrf.mxu0
    %v2317 = vadd.f32 %v2228, %v2316
    %v2318 = vpop.f32.mrf.mxu0
    %v2319 = vadd.f32 %v2230, %v2318
    %2320 = vmatmul.bf16.gmra.mxu0 %v498
    %v2321 = vpop.f32.mrf.mxu0
    %v2322 = vadd.f32 %v2233, %v2321
    %v2323 = vpop.f32.mrf.mxu0
    %v2324 = vadd.f32 %v2235, %v2323
    %2325 = vmatmul.bf16.gmra.mxu0 %v500
    %v2326 = vpop.f32.mrf.mxu0
    %v2327 = vadd.f32 %v2238, %v2326
    %v2328 = vpop.f32.mrf.mxu0
    %v2329 = vadd.f32 %v2240, %v2328
    %2330 = vmatmul.bf16.gmra.mxu0 %v502
    %v2331 = vpop.f32.mrf.mxu0
    %v2332 = vadd.f32 %v2243, %v2331
    %v2333 = vpop.f32.mrf.mxu0
    %v2334 = vadd.f32 %v2245, %v2333
    %2335 = vmatmul.bf16.gmra.mxu0 %v504
    %v2336 = vpop.f32.mrf.mxu0
    %v2337 = vadd.f32 %v2248, %v2336
    %v2338 = vpop.f32.mrf.mxu0
    %v2339 = vadd.f32 %v2250, %v2338
    %2340 = vmatmul.bf16.gmra.mxu0 %v506
    %v2341 = vpop.f32.mrf.mxu0
    %v2342 = vadd.f32 %v2253, %v2341
    %v2343 = vpop.f32.mrf.mxu0
    %v2344 = vadd.f32 %v2255, %v2343
    %2345 = vdwg.mxu0
    %v2346 = vld [vmem:[%s7] sm:$0x1]
    %v2348 = vperm.slane %v2346, 0
    %v2350 = vmul.f32 %v2267, %v2348
    %v2351 = vmul.f32 %v2269, %v2348
    %v2352 = vmul.f32 %v2272, %v2348
    %v2353 = vmul.f32 %v2274, %v2348
    %v2354 = vmul.f32 %v2277, %v2348
    %v2355 = vmul.f32 %v2279, %v2348
    %v2356 = vmul.f32 %v2282, %v2348
    %v2357 = vmul.f32 %v2284, %v2348
    %v2358 = vmul.f32 %v2287, %v2348
    %v2359 = vmul.f32 %v2289, %v2348
    %v2360 = vmul.f32 %v2292, %v2348
    %v2361 = vmul.f32 %v2294, %v2348
    %v2362 = vmul.f32 %v2297, %v2348
    %v2363 = vmul.f32 %v2299, %v2348
    %v2364 = vmul.f32 %v2302, %v2348
    %v2365 = vmul.f32 %v2304, %v2348
    %v2366 = vmul.f32 %v2307, %v2348
    %v2367 = vmul.f32 %v2309, %v2348
    %v2368 = vmul.f32 %v2312, %v2348
    %v2369 = vmul.f32 %v2314, %v2348
    %v2370 = vmul.f32 %v2317, %v2348
    %v2371 = vmul.f32 %v2319, %v2348
    %v2372 = vmul.f32 %v2322, %v2348
    %v2373 = vmul.f32 %v2324, %v2348
    %v2374 = vmul.f32 %v2327, %v2348
    %v2375 = vmul.f32 %v2329, %v2348
    %v2376 = vmul.f32 %v2332, %v2348
    %v2377 = vmul.f32 %v2334, %v2348
    %v2378 = vmul.f32 %v2337, %v2348
    %v2379 = vmul.f32 %v2339, %v2348
    %v2380 = vmul.f32 %v2342, %v2348
    %v2381 = vmul.f32 %v2344, %v2348
    %v2382 = vmax.f32 %v2350, 0.0
    %v2383 = vmax.f32 %v2351, 0.0
    %v2384 = vmax.f32 %v2352, 0.0
    %v2385 = vmax.f32 %v2353, 0.0
    %v2386 = vmax.f32 %v2354, 0.0
    %v2387 = vmax.f32 %v2355, 0.0
    %v2388 = vmax.f32 %v2356, 0.0
    %v2389 = vmax.f32 %v2357, 0.0
    %v2390 = vmax.f32 %v2358, 0.0
    %v2391 = vmax.f32 %v2359, 0.0
    %v2392 = vmax.f32 %v2360, 0.0
    %v2393 = vmax.f32 %v2361, 0.0
    %v2394 = vmax.f32 %v2362, 0.0
    %v2395 = vmax.f32 %v2363, 0.0
    %v2396 = vmax.f32 %v2364, 0.0
    %v2397 = vmax.f32 %v2365, 0.0
    %v2398 = vmax.f32 %v2366, 0.0
    %v2399 = vmax.f32 %v2367, 0.0
    %v2400 = vmax.f32 %v2368, 0.0
    %v2401 = vmax.f32 %v2369, 0.0
    %v2402 = vmax.f32 %v2370, 0.0
    %v2403 = vmax.f32 %v2371, 0.0
    %v2404 = vmax.f32 %v2372, 0.0
    %v2405 = vmax.f32 %v2373, 0.0
    %v2406 = vmax.f32 %v2374, 0.0
    %v2407 = vmax.f32 %v2375, 0.0
    %v2408 = vmax.f32 %v2376, 0.0
    %v2409 = vmax.f32 %v2377, 0.0
    %v2410 = vmax.f32 %v2378, 0.0
    %v2411 = vmax.f32 %v2379, 0.0
    %v2412 = vmax.f32 %v2380, 0.0
    %v2413 = vmax.f32 %v2381, 0.0
    %v2414 = vld [vmem:[#allocation7] sm:$0xff]
    %v2415 = vld [vmem:[#allocation7 + $0x8] sm:$0xff]
    %v2416 = vld [vmem:[#allocation7 + $0x10] sm:$0xff]
    %v2417 = vld [vmem:[#allocation7 + $0x18] sm:$0xff]
    %v2418 = vld [vmem:[#allocation7 + $0x20] sm:$0xff]
    %v2419 = vld [vmem:[#allocation7 + $0x28] sm:$0xff]
    %v2420 = vld [vmem:[#allocation7 + $0x30] sm:$0xff]
    %v2421 = vld [vmem:[#allocation7 + $0x38] sm:$0xff]
    %v2422 = vld [vmem:[#allocation7 + $0x40] sm:$0xff]
    %v2423 = vld [vmem:[#allocation7 + $0x48] sm:$0xff]
    %v2424 = vld [vmem:[#allocation7 + $0x50] sm:$0xff]
    %v2425 = vld [vmem:[#allocation7 + $0x58] sm:$0xff]
    %v2426 = vld [vmem:[#allocation7 + $0x60] sm:$0xff]
    %v2427 = vld [vmem:[#allocation7 + $0x68] sm:$0xff]
    %v2428 = vld [vmem:[#allocation7 + $0x70] sm:$0xff]
    %v2429 = vld [vmem:[#allocation7 + $0x78] sm:$0xff]
    %2430 = vmatpush.msra.mxu0 %v2429
    %2431 = vmatpush.msra.mxu0 %v2428
    %2432 = vmatpush.msra.mxu0 %v2427
    %2433 = vmatpush.msra.mxu0 %v2426
    %2434 = vmatpush.msra.mxu0 %v2425
    %2435 = vmatpush.msra.mxu0 %v2424
    %2436 = vmatpush.msra.mxu0 %v2423
    %2437 = vmatpush.msra.mxu0 %v2422
    %2438 = vmatpush.msra.mxu0 %v2421
    %2439 = vmatpush.msra.mxu0 %v2420
    %2440 = vmatpush.msra.mxu0 %v2419
    %2441 = vmatpush.msra.mxu0 %v2418
    %2442 = vmatpush.msra.mxu0 %v2417
    %2443 = vmatpush.msra.mxu0 %v2416
    %2444 = vmatpush.msra.mxu0 %v2415
    %2445 = vmatpush.msra.mxu0 %v2414
    %2446 = vmatmul.f32.gmra.mxu0 %v2382
    %v2447 = vpop.f32.mrf.mxu0
    %v2448 = vadd.f32 0.0, %v2447
    %2449 = vmatmul.f32.gmra.mxu0 %v2383
    %v2450 = vpop.f32.mrf.mxu0
    %v2451 = vadd.f32 0.0, %v2450
    %2452 = vmatmul.f32.gmra.mxu0 %v2384
    %v2453 = vpop.f32.mrf.mxu0
    %v2454 = vadd.f32 0.0, %v2453
    %2455 = vmatmul.f32.gmra.mxu0 %v2385
    %v2456 = vpop.f32.mrf.mxu0
    %v2457 = vadd.f32 0.0, %v2456
    %2458 = vmatmul.f32.gmra.mxu0 %v2386
    %v2459 = vpop.f32.mrf.mxu0
    %v2460 = vadd.f32 0.0, %v2459
    %2461 = vmatmul.f32.gmra.mxu0 %v2387
    %v2462 = vpop.f32.mrf.mxu0
    %v2463 = vadd.f32 0.0, %v2462
    %2464 = vmatmul.f32.gmra.mxu0 %v2388
    %v2465 = vpop.f32.mrf.mxu0
    %v2466 = vadd.f32 0.0, %v2465
    %2467 = vmatmul.f32.gmra.mxu0 %v2389
    %v2468 = vpop.f32.mrf.mxu0
    %v2469 = vadd.f32 0.0, %v2468
    %2470 = vmatmul.f32.gmra.mxu0 %v2390
    %v2471 = vpop.f32.mrf.mxu0
    %v2472 = vadd.f32 0.0, %v2471
    %2473 = vmatmul.f32.gmra.mxu0 %v2391
    %v2474 = vpop.f32.mrf.mxu0
    %v2475 = vadd.f32 0.0, %v2474
    %2476 = vmatmul.f32.gmra.mxu0 %v2392
    %v2477 = vpop.f32.mrf.mxu0
    %v2478 = vadd.f32 0.0, %v2477
    %2479 = vmatmul.f32.gmra.mxu0 %v2393
    %v2480 = vpop.f32.mrf.mxu0
    %v2481 = vadd.f32 0.0, %v2480
    %2482 = vmatmul.f32.gmra.mxu0 %v2394
    %v2483 = vpop.f32.mrf.mxu0
    %v2484 = vadd.f32 0.0, %v2483
    %2485 = vmatmul.f32.gmra.mxu0 %v2395
    %v2486 = vpop.f32.mrf.mxu0
    %v2487 = vadd.f32 0.0, %v2486
    %2488 = vmatmul.f32.gmra.mxu0 %v2396
    %v2489 = vpop.f32.mrf.mxu0
    %v2490 = vadd.f32 0.0, %v2489
    %2491 = vmatmul.f32.gmra.mxu0 %v2397
    %v2492 = vpop.f32.mrf.mxu0
    %v2493 = vadd.f32 0.0, %v2492
    %2494 = vmatmul.f32.gmra.mxu0 %v2398
    %v2495 = vpop.f32.mrf.mxu0
    %v2496 = vadd.f32 0.0, %v2495
    %2497 = vmatmul.f32.gmra.mxu0 %v2399
    %v2498 = vpop.f32.mrf.mxu0
    %v2499 = vadd.f32 0.0, %v2498
    %2500 = vmatmul.f32.gmra.mxu0 %v2400
    %v2501 = vpop.f32.mrf.mxu0
    %v2502 = vadd.f32 0.0, %v2501
    %2503 = vmatmul.f32.gmra.mxu0 %v2401
    %v2504 = vpop.f32.mrf.mxu0
    %v2505 = vadd.f32 0.0, %v2504
    %2506 = vmatmul.f32.gmra.mxu0 %v2402
    %v2507 = vpop.f32.mrf.mxu0
    %v2508 = vadd.f32 0.0, %v2507
    %2509 = vmatmul.f32.gmra.mxu0 %v2403
    %v2510 = vpop.f32.mrf.mxu0
    %v2511 = vadd.f32 0.0, %v2510
    %2512 = vmatmul.f32.gmra.mxu0 %v2404
    %v2513 = vpop.f32.mrf.mxu0
    %v2514 = vadd.f32 0.0, %v2513
    %2515 = vmatmul.f32.gmra.mxu0 %v2405
    %v2516 = vpop.f32.mrf.mxu0
    %v2517 = vadd.f32 0.0, %v2516
    %2518 = vmatmul.f32.gmra.mxu0 %v2406
    %v2519 = vpop.f32.mrf.mxu0
    %v2520 = vadd.f32 0.0, %v2519
    %2521 = vmatmul.f32.gmra.mxu0 %v2407
    %v2522 = vpop.f32.mrf.mxu0
    %v2523 = vadd.f32 0.0, %v2522
    %2524 = vmatmul.f32.gmra.mxu0 %v2408
    %v2525 = vpop.f32.mrf.mxu0
    %v2526 = vadd.f32 0.0, %v2525
    %2527 = vmatmul.f32.gmra.mxu0 %v2409
    %v2528 = vpop.f32.mrf.mxu0
    %v2529 = vadd.f32 0.0, %v2528
    %2530 = vmatmul.f32.gmra.mxu0 %v2410
    %v2531 = vpop.f32.mrf.mxu0
    %v2532 = vadd.f32 0.0, %v2531
    %2533 = vmatmul.f32.gmra.mxu0 %v2411
    %v2534 = vpop.f32.mrf.mxu0
    %v2535 = vadd.f32 0.0, %v2534
    %2536 = vmatmul.f32.gmra.mxu0 %v2412
    %v2537 = vpop.f32.mrf.mxu0
    %v2538 = vadd.f32 0.0, %v2537
    %2539 = vmatmul.f32.gmra.mxu0 %v2413
    %v2540 = vpop.f32.mrf.mxu0
    %v2541 = vadd.f32 0.0, %v2540
    %2542 = vdwg.mxu0
    %v2544 = vperm.slane %v2167, 0
    %v2546 = vadd.f32 %v2544, %v2448
    %v2547 = vadd.f32 %v2544, %v2451
    %v2548 = vadd.f32 %v2544, %v2454
    %v2549 = vadd.f32 %v2544, %v2457
    %v2550 = vadd.f32 %v2544, %v2460
    %v2551 = vadd.f32 %v2544, %v2463
    %v2552 = vadd.f32 %v2544, %v2466
    %v2553 = vadd.f32 %v2544, %v2469
    %v2554 = vadd.f32 %v2544, %v2472
    %v2555 = vadd.f32 %v2544, %v2475
    %v2556 = vadd.f32 %v2544, %v2478
    %v2557 = vadd.f32 %v2544, %v2481
    %v2558 = vadd.f32 %v2544, %v2484
    %v2559 = vadd.f32 %v2544, %v2487
    %v2560 = vadd.f32 %v2544, %v2490
    %v2561 = vadd.f32 %v2544, %v2493
    %v2562 = vadd.f32 %v2544, %v2496
    %v2563 = vadd.f32 %v2544, %v2499
    %v2564 = vadd.f32 %v2544, %v2502
    %v2565 = vadd.f32 %v2544, %v2505
    %v2566 = vadd.f32 %v2544, %v2508
    %v2567 = vadd.f32 %v2544, %v2511
    %v2568 = vadd.f32 %v2544, %v2514
    %v2569 = vadd.f32 %v2544, %v2517
    %v2570 = vadd.f32 %v2544, %v2520
    %v2571 = vadd.f32 %v2544, %v2523
    %v2572 = vadd.f32 %v2544, %v2526
    %v2573 = vadd.f32 %v2544, %v2529
    %v2574 = vadd.f32 %v2544, %v2532
    %v2575 = vadd.f32 %v2544, %v2535
    %v2576 = vadd.f32 %v2544, %v2538
    %v2577 = vadd.f32 %v2544, %v2541
    %2578 = vmatpush.bf16.msra.mxu0 %v2158
    %2579 = vmatpush.bf16.msra.mxu0 %v2157
    %2580 = vmatpush.bf16.msra.mxu0 %v2156
    %2581 = vmatpush.bf16.msra.mxu0 %v2155
    %2582 = vmatpush.bf16.msra.mxu0 %v2154
    %2583 = vmatpush.bf16.msra.mxu0 %v2153
    %2584 = vmatpush.bf16.msra.mxu0 %v2152
    %2585 = vmatpush.bf16.msra.mxu0 %v2151
    %2586 = vmatmul.bf16.gmra.mxu0 %v1078
    %v2587 = vpop.f32.mrf.mxu0
    %v2588 = vadd.f32 0.0, %v2587
    %v2589 = vpop.f32.mrf.mxu0
    %v2590 = vadd.f32 0.0, %v2589
    %2591 = vmatmul.bf16.gmra.mxu0 %v1080
    %v2592 = vpop.f32.mrf.mxu0
    %v2593 = vadd.f32 0.0, %v2592
    %v2594 = vpop.f32.mrf.mxu0
    %v2595 = vadd.f32 0.0, %v2594
    %2596 = vmatmul.bf16.gmra.mxu0 %v1082
    %v2597 = vpop.f32.mrf.mxu0
    %v2598 = vadd.f32 0.0, %v2597
    %v2599 = vpop.f32.mrf.mxu0
    %v2600 = vadd.f32 0.0, %v2599
    %2601 = vmatmul.bf16.gmra.mxu0 %v1084
    %v2602 = vpop.f32.mrf.mxu0
    %v2603 = vadd.f32 0.0, %v2602
    %v2604 = vpop.f32.mrf.mxu0
    %v2605 = vadd.f32 0.0, %v2604
    %2606 = vmatmul.bf16.gmra.mxu0 %v1086
    %v2607 = vpop.f32.mrf.mxu0
    %v2608 = vadd.f32 0.0, %v2607
    %v2609 = vpop.f32.mrf.mxu0
    %v2610 = vadd.f32 0.0, %v2609
    %2611 = vmatmul.bf16.gmra.mxu0 %v1088
    %v2612 = vpop.f32.mrf.mxu0
    %v2613 = vadd.f32 0.0, %v2612
    %v2614 = vpop.f32.mrf.mxu0
    %v2615 = vadd.f32 0.0, %v2614
    %2616 = vmatmul.bf16.gmra.mxu0 %v1090
    %v2617 = vpop.f32.mrf.mxu0
    %v2618 = vadd.f32 0.0, %v2617
    %v2619 = vpop.f32.mrf.mxu0
    %v2620 = vadd.f32 0.0, %v2619
    %2621 = vmatmul.bf16.gmra.mxu0 %v1092
    %v2622 = vpop.f32.mrf.mxu0
    %v2623 = vadd.f32 0.0, %v2622
    %v2624 = vpop.f32.mrf.mxu0
    %v2625 = vadd.f32 0.0, %v2624
    %2626 = vmatmul.bf16.gmra.mxu0 %v1094
    %v2627 = vpop.f32.mrf.mxu0
    %v2628 = vadd.f32 0.0, %v2627
    %v2629 = vpop.f32.mrf.mxu0
    %v2630 = vadd.f32 0.0, %v2629
    %2631 = vmatmul.bf16.gmra.mxu0 %v1096
    %v2632 = vpop.f32.mrf.mxu0
    %v2633 = vadd.f32 0.0, %v2632
    %v2634 = vpop.f32.mrf.mxu0
    %v2635 = vadd.f32 0.0, %v2634
    %2636 = vmatmul.bf16.gmra.mxu0 %v1098
    %v2637 = vpop.f32.mrf.mxu0
    %v2638 = vadd.f32 0.0, %v2637
    %v2639 = vpop.f32.mrf.mxu0
    %v2640 = vadd.f32 0.0, %v2639
    %2641 = vmatmul.bf16.gmra.mxu0 %v1100
    %v2642 = vpop.f32.mrf.mxu0
    %v2643 = vadd.f32 0.0, %v2642
    %v2644 = vpop.f32.mrf.mxu0
    %v2645 = vadd.f32 0.0, %v2644
    %2646 = vmatmul.bf16.gmra.mxu0 %v1102
    %v2647 = vpop.f32.mrf.mxu0
    %v2648 = vadd.f32 0.0, %v2647
    %v2649 = vpop.f32.mrf.mxu0
    %v2650 = vadd.f32 0.0, %v2649
    %2651 = vmatmul.bf16.gmra.mxu0 %v1104
    %v2652 = vpop.f32.mrf.mxu0
    %v2653 = vadd.f32 0.0, %v2652
    %v2654 = vpop.f32.mrf.mxu0
    %v2655 = vadd.f32 0.0, %v2654
    %2656 = vmatmul.bf16.gmra.mxu0 %v1106
    %v2657 = vpop.f32.mrf.mxu0
    %v2658 = vadd.f32 0.0, %v2657
    %v2659 = vpop.f32.mrf.mxu0
    %v2660 = vadd.f32 0.0, %v2659
    %2661 = vmatmul.bf16.gmra.mxu0 %v1108
    %v2662 = vpop.f32.mrf.mxu0
    %v2663 = vadd.f32 0.0, %v2662
    %v2664 = vpop.f32.mrf.mxu0
    %v2665 = vadd.f32 0.0, %v2664
    %2666 = vdwg.mxu0
    %2667 = vmatpush.bf16.msra.mxu0 %v2166
    %2668 = vmatpush.bf16.msra.mxu0 %v2165
    %2669 = vmatpush.bf16.msra.mxu0 %v2164
    %2670 = vmatpush.bf16.msra.mxu0 %v2163
    %2671 = vmatpush.bf16.msra.mxu0 %v2162
    %2672 = vmatpush.bf16.msra.mxu0 %v2161
    %2673 = vmatpush.bf16.msra.mxu0 %v2160
    %2674 = vmatpush.bf16.msra.mxu0 %v2159
    %2675 = vmatmul.bf16.gmra.mxu0 %v1079
    %v2676 = vpop.f32.mrf.mxu0
    %v2677 = vadd.f32 %v2588, %v2676
    %v2678 = vpop.f32.mrf.mxu0
    %v2679 = vadd.f32 %v2590, %v2678
    %2680 = vmatmul.bf16.gmra.mxu0 %v1081
    %v2681 = vpop.f32.mrf.mxu0
    %v2682 = vadd.f32 %v2593, %v2681
    %v2683 = vpop.f32.mrf.mxu0
    %v2684 = vadd.f32 %v2595, %v2683
    %2685 = vmatmul.bf16.gmra.mxu0 %v1083
    %v2686 = vpop.f32.mrf.mxu0
    %v2687 = vadd.f32 %v2598, %v2686
    %v2688 = vpop.f32.mrf.mxu0
    %v2689 = vadd.f32 %v2600, %v2688
    %2690 = vmatmul.bf16.gmra.mxu0 %v1085
    %v2691 = vpop.f32.mrf.mxu0
    %v2692 = vadd.f32 %v2603, %v2691
    %v2693 = vpop.f32.mrf.mxu0
    %v2694 = vadd.f32 %v2605, %v2693
    %2695 = vmatmul.bf16.gmra.mxu0 %v1087
    %v2696 = vpop.f32.mrf.mxu0
    %v2697 = vadd.f32 %v2608, %v2696
    %v2698 = vpop.f32.mrf.mxu0
    %v2699 = vadd.f32 %v2610, %v2698
    %2700 = vmatmul.bf16.gmra.mxu0 %v1089
    %v2701 = vpop.f32.mrf.mxu0
    %v2702 = vadd.f32 %v2613, %v2701
    %v2703 = vpop.f32.mrf.mxu0
    %v2704 = vadd.f32 %v2615, %v2703
    %2705 = vmatmul.bf16.gmra.mxu0 %v1091
    %v2706 = vpop.f32.mrf.mxu0
    %v2707 = vadd.f32 %v2618, %v2706
    %v2708 = vpop.f32.mrf.mxu0
    %v2709 = vadd.f32 %v2620, %v2708
    %2710 = vmatmul.bf16.gmra.mxu0 %v1093
    %v2711 = vpop.f32.mrf.mxu0
    %v2712 = vadd.f32 %v2623, %v2711
    %v2713 = vpop.f32.mrf.mxu0
    %v2714 = vadd.f32 %v2625, %v2713
    %2715 = vmatmul.bf16.gmra.mxu0 %v1095
    %v2716 = vpop.f32.mrf.mxu0
    %v2717 = vadd.f32 %v2628, %v2716
    %v2718 = vpop.f32.mrf.mxu0
    %v2719 = vadd.f32 %v2630, %v2718
    %2720 = vmatmul.bf16.gmra.mxu0 %v1097
    %v2721 = vpop.f32.mrf.mxu0
    %v2722 = vadd.f32 %v2633, %v2721
    %v2723 = vpop.f32.mrf.mxu0
    %v2724 = vadd.f32 %v2635, %v2723
    %2725 = vmatmul.bf16.gmra.mxu0 %v1099
    %v2726 = vpop.f32.mrf.mxu0
    %v2727 = vadd.f32 %v2638, %v2726
    %v2728 = vpop.f32.mrf.mxu0
    %v2729 = vadd.f32 %v2640, %v2728
    %2730 = vmatmul.bf16.gmra.mxu0 %v1101
    %v2731 = vpop.f32.mrf.mxu0
    %v2732 = vadd.f32 %v2643, %v2731
    %v2733 = vpop.f32.mrf.mxu0
    %v2734 = vadd.f32 %v2645, %v2733
    %2735 = vmatmul.bf16.gmra.mxu0 %v1103
    %v2736 = vpop.f32.mrf.mxu0
    %v2737 = vadd.f32 %v2648, %v2736
    %v2738 = vpop.f32.mrf.mxu0
    %v2739 = vadd.f32 %v2650, %v2738
    %2740 = vmatmul.bf16.gmra.mxu0 %v1105
    %v2741 = vpop.f32.mrf.mxu0
    %v2742 = vadd.f32 %v2653, %v2741
    %v2743 = vpop.f32.mrf.mxu0
    %v2744 = vadd.f32 %v2655, %v2743
    %2745 = vmatmul.bf16.gmra.mxu0 %v1107
    %v2746 = vpop.f32.mrf.mxu0
    %v2747 = vadd.f32 %v2658, %v2746
    %v2748 = vpop.f32.mrf.mxu0
    %v2749 = vadd.f32 %v2660, %v2748
    %2750 = vmatmul.bf16.gmra.mxu0 %v1109
    %v2751 = vpop.f32.mrf.mxu0
    %v2752 = vadd.f32 %v2663, %v2751
    %v2753 = vpop.f32.mrf.mxu0
    %v2754 = vadd.f32 %v2665, %v2753
    %2755 = vdwg.mxu0
    %s2756 = scalar_lea.vmem %s7, 1
    %v2757 = vld [vmem:[%s2756] sm:$0x1]
    %v2759 = vperm.slane %v2757, 0
    %v2761 = vmul.f32 %v2677, %v2759
    %v2762 = vmul.f32 %v2679, %v2759
    %v2763 = vmul.f32 %v2682, %v2759
    %v2764 = vmul.f32 %v2684, %v2759
    %v2765 = vmul.f32 %v2687, %v2759
    %v2766 = vmul.f32 %v2689, %v2759
    %v2767 = vmul.f32 %v2692, %v2759
    %v2768 = vmul.f32 %v2694, %v2759
    %v2769 = vmul.f32 %v2697, %v2759
    %v2770 = vmul.f32 %v2699, %v2759
    %v2771 = vmul.f32 %v2702, %v2759
    %v2772 = vmul.f32 %v2704, %v2759
    %v2773 = vmul.f32 %v2707, %v2759
    %v2774 = vmul.f32 %v2709, %v2759
    %v2775 = vmul.f32 %v2712, %v2759
    %v2776 = vmul.f32 %v2714, %v2759
    %v2777 = vmul.f32 %v2717, %v2759
    %v2778 = vmul.f32 %v2719, %v2759
    %v2779 = vmul.f32 %v2722, %v2759
    %v2780 = vmul.f32 %v2724, %v2759
    %v2781 = vmul.f32 %v2727, %v2759
    %v2782 = vmul.f32 %v2729, %v2759
    %v2783 = vmul.f32 %v2732, %v2759
    %v2784 = vmul.f32 %v2734, %v2759
    %v2785 = vmul.f32 %v2737, %v2759
    %v2786 = vmul.f32 %v2739, %v2759
    %v2787 = vmul.f32 %v2742, %v2759
    %v2788 = vmul.f32 %v2744, %v2759
    %v2789 = vmul.f32 %v2747, %v2759
    %v2790 = vmul.f32 %v2749, %v2759
    %v2791 = vmul.f32 %v2752, %v2759
    %v2792 = vmul.f32 %v2754, %v2759
    %v2793 = vmax.f32 %v2761, 0.0
    %v2794 = vmax.f32 %v2762, 0.0
    %v2795 = vmax.f32 %v2763, 0.0
    %v2796 = vmax.f32 %v2764, 0.0
    %v2797 = vmax.f32 %v2765, 0.0
    %v2798 = vmax.f32 %v2766, 0.0
    %v2799 = vmax.f32 %v2767, 0.0
    %v2800 = vmax.f32 %v2768, 0.0
    %v2801 = vmax.f32 %v2769, 0.0
    %v2802 = vmax.f32 %v2770, 0.0
    %v2803 = vmax.f32 %v2771, 0.0
    %v2804 = vmax.f32 %v2772, 0.0
    %v2805 = vmax.f32 %v2773, 0.0
    %v2806 = vmax.f32 %v2774, 0.0
    %v2807 = vmax.f32 %v2775, 0.0
    %v2808 = vmax.f32 %v2776, 0.0
    %v2809 = vmax.f32 %v2777, 0.0
    %v2810 = vmax.f32 %v2778, 0.0
    %v2811 = vmax.f32 %v2779, 0.0
    %v2812 = vmax.f32 %v2780, 0.0
    %v2813 = vmax.f32 %v2781, 0.0
    %v2814 = vmax.f32 %v2782, 0.0
    %v2815 = vmax.f32 %v2783, 0.0
    %v2816 = vmax.f32 %v2784, 0.0
    %v2817 = vmax.f32 %v2785, 0.0
    %v2818 = vmax.f32 %v2786, 0.0
    %v2819 = vmax.f32 %v2787, 0.0
    %v2820 = vmax.f32 %v2788, 0.0
    %v2821 = vmax.f32 %v2789, 0.0
    %v2822 = vmax.f32 %v2790, 0.0
    %v2823 = vmax.f32 %v2791, 0.0
    %v2824 = vmax.f32 %v2792, 0.0
    %v2825 = vld [vmem:[#allocation7 + $0x80] sm:$0xff]
    %v2826 = vld [vmem:[#allocation7 + $0x88] sm:$0xff]
    %v2827 = vld [vmem:[#allocation7 + $0x90] sm:$0xff]
    %v2828 = vld [vmem:[#allocation7 + $0x98] sm:$0xff]
    %v2829 = vld [vmem:[#allocation7 + $0xa0] sm:$0xff]
    %v2830 = vld [vmem:[#allocation7 + $0xa8] sm:$0xff]
    %v2831 = vld [vmem:[#allocation7 + $0xb0] sm:$0xff]
    %v2832 = vld [vmem:[#allocation7 + $0xb8] sm:$0xff]
    %v2833 = vld [vmem:[#allocation7 + $0xc0] sm:$0xff]
    %v2834 = vld [vmem:[#allocation7 + $0xc8] sm:$0xff]
    %v2835 = vld [vmem:[#allocation7 + $0xd0] sm:$0xff]
    %v2836 = vld [vmem:[#allocation7 + $0xd8] sm:$0xff]
    %v2837 = vld [vmem:[#allocation7 + $0xe0] sm:$0xff]
    %v2838 = vld [vmem:[#allocation7 + $0xe8] sm:$0xff]
    %v2839 = vld [vmem:[#allocation7 + $0xf0] sm:$0xff]
    %v2840 = vld [vmem:[#allocation7 + $0xf8] sm:$0xff]
    %2841 = vmatpush.msra.mxu0 %v2840
    %2842 = vmatpush.msra.mxu0 %v2839
    %2843 = vmatpush.msra.mxu0 %v2838
    %2844 = vmatpush.msra.mxu0 %v2837
    %2845 = vmatpush.msra.mxu0 %v2836
    %2846 = vmatpush.msra.mxu0 %v2835
    %2847 = vmatpush.msra.mxu0 %v2834
    %2848 = vmatpush.msra.mxu0 %v2833
    %2849 = vmatpush.msra.mxu0 %v2832
    %2850 = vmatpush.msra.mxu0 %v2831
    %2851 = vmatpush.msra.mxu0 %v2830
    %2852 = vmatpush.msra.mxu0 %v2829
    %2853 = vmatpush.msra.mxu0 %v2828
    %2854 = vmatpush.msra.mxu0 %v2827
    %2855 = vmatpush.msra.mxu0 %v2826
    %2856 = vmatpush.msra.mxu0 %v2825
    %2857 = vmatmul.f32.gmra.mxu0 %v2793
    %v2858 = vpop.f32.mrf.mxu0
    %v2859 = vadd.f32 0.0, %v2858
    %2860 = vmatmul.f32.gmra.mxu0 %v2794
    %v2861 = vpop.f32.mrf.mxu0
    %v2862 = vadd.f32 0.0, %v2861
    %2863 = vmatmul.f32.gmra.mxu0 %v2795
    %v2864 = vpop.f32.mrf.mxu0
    %v2865 = vadd.f32 0.0, %v2864
    %2866 = vmatmul.f32.gmra.mxu0 %v2796
    %v2867 = vpop.f32.mrf.mxu0
    %v2868 = vadd.f32 0.0, %v2867
    %2869 = vmatmul.f32.gmra.mxu0 %v2797
    %v2870 = vpop.f32.mrf.mxu0
    %v2871 = vadd.f32 0.0, %v2870
    %2872 = vmatmul.f32.gmra.mxu0 %v2798
    %v2873 = vpop.f32.mrf.mxu0
    %v2874 = vadd.f32 0.0, %v2873
    %2875 = vmatmul.f32.gmra.mxu0 %v2799
    %v2876 = vpop.f32.mrf.mxu0
    %v2877 = vadd.f32 0.0, %v2876
    %2878 = vmatmul.f32.gmra.mxu0 %v2800
    %v2879 = vpop.f32.mrf.mxu0
    %v2880 = vadd.f32 0.0, %v2879
    %2881 = vmatmul.f32.gmra.mxu0 %v2801
    %v2882 = vpop.f32.mrf.mxu0
    %v2883 = vadd.f32 0.0, %v2882
    %2884 = vmatmul.f32.gmra.mxu0 %v2802
    %v2885 = vpop.f32.mrf.mxu0
    %v2886 = vadd.f32 0.0, %v2885
    %2887 = vmatmul.f32.gmra.mxu0 %v2803
    %v2888 = vpop.f32.mrf.mxu0
    %v2889 = vadd.f32 0.0, %v2888
    %2890 = vmatmul.f32.gmra.mxu0 %v2804
    %v2891 = vpop.f32.mrf.mxu0
    %v2892 = vadd.f32 0.0, %v2891
    %2893 = vmatmul.f32.gmra.mxu0 %v2805
    %v2894 = vpop.f32.mrf.mxu0
    %v2895 = vadd.f32 0.0, %v2894
    %2896 = vmatmul.f32.gmra.mxu0 %v2806
    %v2897 = vpop.f32.mrf.mxu0
    %v2898 = vadd.f32 0.0, %v2897
    %2899 = vmatmul.f32.gmra.mxu0 %v2807
    %v2900 = vpop.f32.mrf.mxu0
    %v2901 = vadd.f32 0.0, %v2900
    %2902 = vmatmul.f32.gmra.mxu0 %v2808
    %v2903 = vpop.f32.mrf.mxu0
    %v2904 = vadd.f32 0.0, %v2903
    %2905 = vmatmul.f32.gmra.mxu0 %v2809
    %v2906 = vpop.f32.mrf.mxu0
    %v2907 = vadd.f32 0.0, %v2906
    %2908 = vmatmul.f32.gmra.mxu0 %v2810
    %v2909 = vpop.f32.mrf.mxu0
    %v2910 = vadd.f32 0.0, %v2909
    %2911 = vmatmul.f32.gmra.mxu0 %v2811
    %v2912 = vpop.f32.mrf.mxu0
    %v2913 = vadd.f32 0.0, %v2912
    %2914 = vmatmul.f32.gmra.mxu0 %v2812
    %v2915 = vpop.f32.mrf.mxu0
    %v2916 = vadd.f32 0.0, %v2915
    %2917 = vmatmul.f32.gmra.mxu0 %v2813
    %v2918 = vpop.f32.mrf.mxu0
    %v2919 = vadd.f32 0.0, %v2918
    %2920 = vmatmul.f32.gmra.mxu0 %v2814
    %v2921 = vpop.f32.mrf.mxu0
    %v2922 = vadd.f32 0.0, %v2921
    %2923 = vmatmul.f32.gmra.mxu0 %v2815
    %v2924 = vpop.f32.mrf.mxu0
    %v2925 = vadd.f32 0.0, %v2924
    %2926 = vmatmul.f32.gmra.mxu0 %v2816
    %v2927 = vpop.f32.mrf.mxu0
    %v2928 = vadd.f32 0.0, %v2927
    %2929 = vmatmul.f32.gmra.mxu0 %v2817
    %v2930 = vpop.f32.mrf.mxu0
    %v2931 = vadd.f32 0.0, %v2930
    %2932 = vmatmul.f32.gmra.mxu0 %v2818
    %v2933 = vpop.f32.mrf.mxu0
    %v2934 = vadd.f32 0.0, %v2933
    %2935 = vmatmul.f32.gmra.mxu0 %v2819
    %v2936 = vpop.f32.mrf.mxu0
    %v2937 = vadd.f32 0.0, %v2936
    %2938 = vmatmul.f32.gmra.mxu0 %v2820
    %v2939 = vpop.f32.mrf.mxu0
    %v2940 = vadd.f32 0.0, %v2939
    %2941 = vmatmul.f32.gmra.mxu0 %v2821
    %v2942 = vpop.f32.mrf.mxu0
    %v2943 = vadd.f32 0.0, %v2942
    %2944 = vmatmul.f32.gmra.mxu0 %v2822
    %v2945 = vpop.f32.mrf.mxu0
    %v2946 = vadd.f32 0.0, %v2945
    %2947 = vmatmul.f32.gmra.mxu0 %v2823
    %v2948 = vpop.f32.mrf.mxu0
    %v2949 = vadd.f32 0.0, %v2948
    %2950 = vmatmul.f32.gmra.mxu0 %v2824
    %v2951 = vpop.f32.mrf.mxu0
    %v2952 = vadd.f32 0.0, %v2951
    %2953 = vdwg.mxu0
    %v2954 = vadd.f32 %v2546, %v2859
    %v2955 = vadd.f32 %v2547, %v2862
    %v2956 = vadd.f32 %v2548, %v2865
    %v2957 = vadd.f32 %v2549, %v2868
    %v2958 = vadd.f32 %v2550, %v2871
    %v2959 = vadd.f32 %v2551, %v2874
    %v2960 = vadd.f32 %v2552, %v2877
    %v2961 = vadd.f32 %v2553, %v2880
    %v2962 = vadd.f32 %v2554, %v2883
    %v2963 = vadd.f32 %v2555, %v2886
    %v2964 = vadd.f32 %v2556, %v2889
    %v2965 = vadd.f32 %v2557, %v2892
    %v2966 = vadd.f32 %v2558, %v2895
    %v2967 = vadd.f32 %v2559, %v2898
    %v2968 = vadd.f32 %v2560, %v2901
    %v2969 = vadd.f32 %v2561, %v2904
    %v2970 = vadd.f32 %v2562, %v2907
    %v2971 = vadd.f32 %v2563, %v2910
    %v2972 = vadd.f32 %v2564, %v2913
    %v2973 = vadd.f32 %v2565, %v2916
    %v2974 = vadd.f32 %v2566, %v2919
    %v2975 = vadd.f32 %v2567, %v2922
    %v2976 = vadd.f32 %v2568, %v2925
    %v2977 = vadd.f32 %v2569, %v2928
    %v2978 = vadd.f32 %v2570, %v2931
    %v2979 = vadd.f32 %v2571, %v2934
    %v2980 = vadd.f32 %v2572, %v2937
    %v2981 = vadd.f32 %v2573, %v2940
    %v2982 = vadd.f32 %v2574, %v2943
    %v2983 = vadd.f32 %v2575, %v2946
    %v2984 = vadd.f32 %v2576, %v2949
    %v2985 = vadd.f32 %v2577, %v2952
    %2986 = vmatpush.bf16.msra.mxu0 %v2158
    %2987 = vmatpush.bf16.msra.mxu0 %v2157
    %2988 = vmatpush.bf16.msra.mxu0 %v2156
    %2989 = vmatpush.bf16.msra.mxu0 %v2155
    %2990 = vmatpush.bf16.msra.mxu0 %v2154
    %2991 = vmatpush.bf16.msra.mxu0 %v2153
    %2992 = vmatpush.bf16.msra.mxu0 %v2152
    %2993 = vmatpush.bf16.msra.mxu0 %v2151
    %2994 = vmatmul.bf16.gmra.mxu0 %v1679
    %v2995 = vpop.f32.mrf.mxu0
    %v2996 = vadd.f32 0.0, %v2995
    %v2997 = vpop.f32.mrf.mxu0
    %v2998 = vadd.f32 0.0, %v2997
    %2999 = vmatmul.bf16.gmra.mxu0 %v1681
    %v3000 = vpop.f32.mrf.mxu0
    %v3001 = vadd.f32 0.0, %v3000
    %v3002 = vpop.f32.mrf.mxu0
    %v3003 = vadd.f32 0.0, %v3002
    %3004 = vmatmul.bf16.gmra.mxu0 %v1683
    %v3005 = vpop.f32.mrf.mxu0
    %v3006 = vadd.f32 0.0, %v3005
    %v3007 = vpop.f32.mrf.mxu0
    %v3008 = vadd.f32 0.0, %v3007
    %3009 = vmatmul.bf16.gmra.mxu0 %v1685
    %v3010 = vpop.f32.mrf.mxu0
    %v3011 = vadd.f32 0.0, %v3010
    %v3012 = vpop.f32.mrf.mxu0
    %v3013 = vadd.f32 0.0, %v3012
    %3014 = vmatmul.bf16.gmra.mxu0 %v1687
    %v3015 = vpop.f32.mrf.mxu0
    %v3016 = vadd.f32 0.0, %v3015
    %v3017 = vpop.f32.mrf.mxu0
    %v3018 = vadd.f32 0.0, %v3017
    %3019 = vmatmul.bf16.gmra.mxu0 %v1689
    %v3020 = vpop.f32.mrf.mxu0
    %v3021 = vadd.f32 0.0, %v3020
    %v3022 = vpop.f32.mrf.mxu0
    %v3023 = vadd.f32 0.0, %v3022
    %3024 = vmatmul.bf16.gmra.mxu0 %v1691
    %v3025 = vpop.f32.mrf.mxu0
    %v3026 = vadd.f32 0.0, %v3025
    %v3027 = vpop.f32.mrf.mxu0
    %v3028 = vadd.f32 0.0, %v3027
    %3029 = vmatmul.bf16.gmra.mxu0 %v1693
    %v3030 = vpop.f32.mrf.mxu0
    %v3031 = vadd.f32 0.0, %v3030
    %v3032 = vpop.f32.mrf.mxu0
    %v3033 = vadd.f32 0.0, %v3032
    %3034 = vmatmul.bf16.gmra.mxu0 %v1695
    %v3035 = vpop.f32.mrf.mxu0
    %v3036 = vadd.f32 0.0, %v3035
    %v3037 = vpop.f32.mrf.mxu0
    %v3038 = vadd.f32 0.0, %v3037
    %3039 = vmatmul.bf16.gmra.mxu0 %v1697
    %v3040 = vpop.f32.mrf.mxu0
    %v3041 = vadd.f32 0.0, %v3040
    %v3042 = vpop.f32.mrf.mxu0
    %v3043 = vadd.f32 0.0, %v3042
    %3044 = vmatmul.bf16.gmra.mxu0 %v1699
    %v3045 = vpop.f32.mrf.mxu0
    %v3046 = vadd.f32 0.0, %v3045
    %v3047 = vpop.f32.mrf.mxu0
    %v3048 = vadd.f32 0.0, %v3047
    %3049 = vmatmul.bf16.gmra.mxu0 %v1701
    %v3050 = vpop.f32.mrf.mxu0
    %v3051 = vadd.f32 0.0, %v3050
    %v3052 = vpop.f32.mrf.mxu0
    %v3053 = vadd.f32 0.0, %v3052
    %3054 = vmatmul.bf16.gmra.mxu0 %v1703
    %v3055 = vpop.f32.mrf.mxu0
    %v3056 = vadd.f32 0.0, %v3055
    %v3057 = vpop.f32.mrf.mxu0
    %v3058 = vadd.f32 0.0, %v3057
    %3059 = vmatmul.bf16.gmra.mxu0 %v1705
    %v3060 = vpop.f32.mrf.mxu0
    %v3061 = vadd.f32 0.0, %v3060
    %v3062 = vpop.f32.mrf.mxu0
    %v3063 = vadd.f32 0.0, %v3062
    %3064 = vmatmul.bf16.gmra.mxu0 %v1707
    %v3065 = vpop.f32.mrf.mxu0
    %v3066 = vadd.f32 0.0, %v3065
    %v3067 = vpop.f32.mrf.mxu0
    %v3068 = vadd.f32 0.0, %v3067
    %3069 = vmatmul.bf16.gmra.mxu0 %v1709
    %v3070 = vpop.f32.mrf.mxu0
    %v3071 = vadd.f32 0.0, %v3070
    %v3072 = vpop.f32.mrf.mxu0
    %v3073 = vadd.f32 0.0, %v3072
    %3074 = vdwg.mxu0
    %3075 = vmatpush.bf16.msra.mxu0 %v2166
    %3076 = vmatpush.bf16.msra.mxu0 %v2165
    %3077 = vmatpush.bf16.msra.mxu0 %v2164
    %3078 = vmatpush.bf16.msra.mxu0 %v2163
    %3079 = vmatpush.bf16.msra.mxu0 %v2162
    %3080 = vmatpush.bf16.msra.mxu0 %v2161
    %3081 = vmatpush.bf16.msra.mxu0 %v2160
    %3082 = vmatpush.bf16.msra.mxu0 %v2159
    %3083 = vmatmul.bf16.gmra.mxu0 %v1680
    %v3084 = vpop.f32.mrf.mxu0
    %v3085 = vadd.f32 %v2996, %v3084
    %v3086 = vpop.f32.mrf.mxu0
    %v3087 = vadd.f32 %v2998, %v3086
    %3088 = vmatmul.bf16.gmra.mxu0 %v1682
    %v3089 = vpop.f32.mrf.mxu0
    %v3090 = vadd.f32 %v3001, %v3089
    %v3091 = vpop.f32.mrf.mxu0
    %v3092 = vadd.f32 %v3003, %v3091
    %3093 = vmatmul.bf16.gmra.mxu0 %v1684
    %v3094 = vpop.f32.mrf.mxu0
    %v3095 = vadd.f32 %v3006, %v3094
    %v3096 = vpop.f32.mrf.mxu0
    %v3097 = vadd.f32 %v3008, %v3096
    %3098 = vmatmul.bf16.gmra.mxu0 %v1686
    %v3099 = vpop.f32.mrf.mxu0
    %v3100 = vadd.f32 %v3011, %v3099
    %v3101 = vpop.f32.mrf.mxu0
    %v3102 = vadd.f32 %v3013, %v3101
    %3103 = vmatmul.bf16.gmra.mxu0 %v1688
    %v3104 = vpop.f32.mrf.mxu0
    %v3105 = vadd.f32 %v3016, %v3104
    %v3106 = vpop.f32.mrf.mxu0
    %v3107 = vadd.f32 %v3018, %v3106
    %3108 = vmatmul.bf16.gmra.mxu0 %v1690
    %v3109 = vpop.f32.mrf.mxu0
    %v3110 = vadd.f32 %v3021, %v3109
    %v3111 = vpop.f32.mrf.mxu0
    %v3112 = vadd.f32 %v3023, %v3111
    %3113 = vmatmul.bf16.gmra.mxu0 %v1692
    %v3114 = vpop.f32.mrf.mxu0
    %v3115 = vadd.f32 %v3026, %v3114
    %v3116 = vpop.f32.mrf.mxu0
    %v3117 = vadd.f32 %v3028, %v3116
    %3118 = vmatmul.bf16.gmra.mxu0 %v1694
    %v3119 = vpop.f32.mrf.mxu0
    %v3120 = vadd.f32 %v3031, %v3119
    %v3121 = vpop.f32.mrf.mxu0
    %v3122 = vadd.f32 %v3033, %v3121
    %3123 = vmatmul.bf16.gmra.mxu0 %v1696
    %v3124 = vpop.f32.mrf.mxu0
    %v3125 = vadd.f32 %v3036, %v3124
    %v3126 = vpop.f32.mrf.mxu0
    %v3127 = vadd.f32 %v3038, %v3126
    %3128 = vmatmul.bf16.gmra.mxu0 %v1698
    %v3129 = vpop.f32.mrf.mxu0
    %v3130 = vadd.f32 %v3041, %v3129
    %v3131 = vpop.f32.mrf.mxu0
    %v3132 = vadd.f32 %v3043, %v3131
    %3133 = vmatmul.bf16.gmra.mxu0 %v1700
    %v3134 = vpop.f32.mrf.mxu0
    %v3135 = vadd.f32 %v3046, %v3134
    %v3136 = vpop.f32.mrf.mxu0
    %v3137 = vadd.f32 %v3048, %v3136
    %3138 = vmatmul.bf16.gmra.mxu0 %v1702
    %v3139 = vpop.f32.mrf.mxu0
    %v3140 = vadd.f32 %v3051, %v3139
    %v3141 = vpop.f32.mrf.mxu0
    %v3142 = vadd.f32 %v3053, %v3141
    %3143 = vmatmul.bf16.gmra.mxu0 %v1704
    %v3144 = vpop.f32.mrf.mxu0
    %v3145 = vadd.f32 %v3056, %v3144
    %v3146 = vpop.f32.mrf.mxu0
    %v3147 = vadd.f32 %v3058, %v3146
    %3148 = vmatmul.bf16.gmra.mxu0 %v1706
    %v3149 = vpop.f32.mrf.mxu0
    %v3150 = vadd.f32 %v3061, %v3149
    %v3151 = vpop.f32.mrf.mxu0
    %v3152 = vadd.f32 %v3063, %v3151
    %3153 = vmatmul.bf16.gmra.mxu0 %v1708
    %v3154 = vpop.f32.mrf.mxu0
    %v3155 = vadd.f32 %v3066, %v3154
    %v3156 = vpop.f32.mrf.mxu0
    %v3157 = vadd.f32 %v3068, %v3156
    %3158 = vmatmul.bf16.gmra.mxu0 %v1710
    %v3159 = vpop.f32.mrf.mxu0
    %v3160 = vadd.f32 %v3071, %v3159
    %v3161 = vpop.f32.mrf.mxu0
    %v3162 = vadd.f32 %v3073, %v3161
    %3163 = vdwg.mxu0
    %s3164 = scalar_lea.vmem %s7, 2
    %v3165 = vld [vmem:[%s3164] sm:$0x1]
    %v3167 = vperm.slane %v3165, 0
    %v3169 = vmul.f32 %v3085, %v3167
    %v3170 = vmul.f32 %v3087, %v3167
    %v3171 = vmul.f32 %v3090, %v3167
    %v3172 = vmul.f32 %v3092, %v3167
    %v3173 = vmul.f32 %v3095, %v3167
    %v3174 = vmul.f32 %v3097, %v3167
    %v3175 = vmul.f32 %v3100, %v3167
    %v3176 = vmul.f32 %v3102, %v3167
    %v3177 = vmul.f32 %v3105, %v3167
    %v3178 = vmul.f32 %v3107, %v3167
    %v3179 = vmul.f32 %v3110, %v3167
    %v3180 = vmul.f32 %v3112, %v3167
    %v3181 = vmul.f32 %v3115, %v3167
    %v3182 = vmul.f32 %v3117, %v3167
    %v3183 = vmul.f32 %v3120, %v3167
    %v3184 = vmul.f32 %v3122, %v3167
    %v3185 = vmul.f32 %v3125, %v3167
    %v3186 = vmul.f32 %v3127, %v3167
    %v3187 = vmul.f32 %v3130, %v3167
    %v3188 = vmul.f32 %v3132, %v3167
    %v3189 = vmul.f32 %v3135, %v3167
    %v3190 = vmul.f32 %v3137, %v3167
    %v3191 = vmul.f32 %v3140, %v3167
    %v3192 = vmul.f32 %v3142, %v3167
    %v3193 = vmul.f32 %v3145, %v3167
    %v3194 = vmul.f32 %v3147, %v3167
    %v3195 = vmul.f32 %v3150, %v3167
    %v3196 = vmul.f32 %v3152, %v3167
    %v3197 = vmul.f32 %v3155, %v3167
    %v3198 = vmul.f32 %v3157, %v3167
    %v3199 = vmul.f32 %v3160, %v3167
    %v3200 = vmul.f32 %v3162, %v3167
    %v3201 = vmax.f32 %v3169, 0.0
    %v3202 = vmax.f32 %v3170, 0.0
    %v3203 = vmax.f32 %v3171, 0.0
    %v3204 = vmax.f32 %v3172, 0.0
    %v3205 = vmax.f32 %v3173, 0.0
    %v3206 = vmax.f32 %v3174, 0.0
    %v3207 = vmax.f32 %v3175, 0.0
    %v3208 = vmax.f32 %v3176, 0.0
    %v3209 = vmax.f32 %v3177, 0.0
    %v3210 = vmax.f32 %v3178, 0.0
    %v3211 = vmax.f32 %v3179, 0.0
    %v3212 = vmax.f32 %v3180, 0.0
    %v3213 = vmax.f32 %v3181, 0.0
    %v3214 = vmax.f32 %v3182, 0.0
    %v3215 = vmax.f32 %v3183, 0.0
    %v3216 = vmax.f32 %v3184, 0.0
    %v3217 = vmax.f32 %v3185, 0.0
    %v3218 = vmax.f32 %v3186, 0.0
    %v3219 = vmax.f32 %v3187, 0.0
    %v3220 = vmax.f32 %v3188, 0.0
    %v3221 = vmax.f32 %v3189, 0.0
    %v3222 = vmax.f32 %v3190, 0.0
    %v3223 = vmax.f32 %v3191, 0.0
    %v3224 = vmax.f32 %v3192, 0.0
    %v3225 = vmax.f32 %v3193, 0.0
    %v3226 = vmax.f32 %v3194, 0.0
    %v3227 = vmax.f32 %v3195, 0.0
    %v3228 = vmax.f32 %v3196, 0.0
    %v3229 = vmax.f32 %v3197, 0.0
    %v3230 = vmax.f32 %v3198, 0.0
    %v3231 = vmax.f32 %v3199, 0.0
    %v3232 = vmax.f32 %v3200, 0.0
    %v3233 = vld [vmem:[#allocation7 + $0x100] sm:$0xff]
    %v3234 = vld [vmem:[#allocation7 + $0x108] sm:$0xff]
    %v3235 = vld [vmem:[#allocation7 + $0x110] sm:$0xff]
    %v3236 = vld [vmem:[#allocation7 + $0x118] sm:$0xff]
    %v3237 = vld [vmem:[#allocation7 + $0x120] sm:$0xff]
    %v3238 = vld [vmem:[#allocation7 + $0x128] sm:$0xff]
    %v3239 = vld [vmem:[#allocation7 + $0x130] sm:$0xff]
    %v3240 = vld [vmem:[#allocation7 + $0x138] sm:$0xff]
    %v3241 = vld [vmem:[#allocation7 + $0x140] sm:$0xff]
    %v3242 = vld [vmem:[#allocation7 + $0x148] sm:$0xff]
    %v3243 = vld [vmem:[#allocation7 + $0x150] sm:$0xff]
    %v3244 = vld [vmem:[#allocation7 + $0x158] sm:$0xff]
    %v3245 = vld [vmem:[#allocation7 + $0x160] sm:$0xff]
    %v3246 = vld [vmem:[#allocation7 + $0x168] sm:$0xff]
    %v3247 = vld [vmem:[#allocation7 + $0x170] sm:$0xff]
    %v3248 = vld [vmem:[#allocation7 + $0x178] sm:$0xff]
    %3249 = vmatpush.msra.mxu0 %v3248
    %3250 = vmatpush.msra.mxu0 %v3247
    %3251 = vmatpush.msra.mxu0 %v3246
    %3252 = vmatpush.msra.mxu0 %v3245
    %3253 = vmatpush.msra.mxu0 %v3244
    %3254 = vmatpush.msra.mxu0 %v3243
    %3255 = vmatpush.msra.mxu0 %v3242
    %3256 = vmatpush.msra.mxu0 %v3241
    %3257 = vmatpush.msra.mxu0 %v3240
    %3258 = vmatpush.msra.mxu0 %v3239
    %3259 = vmatpush.msra.mxu0 %v3238
    %3260 = vmatpush.msra.mxu0 %v3237
    %3261 = vmatpush.msra.mxu0 %v3236
    %3262 = vmatpush.msra.mxu0 %v3235
    %3263 = vmatpush.msra.mxu0 %v3234
    %3264 = vmatpush.msra.mxu0 %v3233
    %3265 = vmatmul.f32.gmra.mxu0 %v3201
    %v3266 = vpop.f32.mrf.mxu0
    %v3267 = vadd.f32 0.0, %v3266
    %3268 = vmatmul.f32.gmra.mxu0 %v3202
    %v3269 = vpop.f32.mrf.mxu0
    %v3270 = vadd.f32 0.0, %v3269
    %3271 = vmatmul.f32.gmra.mxu0 %v3203
    %v3272 = vpop.f32.mrf.mxu0
    %v3273 = vadd.f32 0.0, %v3272
    %3274 = vmatmul.f32.gmra.mxu0 %v3204
    %v3275 = vpop.f32.mrf.mxu0
    %v3276 = vadd.f32 0.0, %v3275
    %3277 = vmatmul.f32.gmra.mxu0 %v3205
    %v3278 = vpop.f32.mrf.mxu0
    %v3279 = vadd.f32 0.0, %v3278
    %3280 = vmatmul.f32.gmra.mxu0 %v3206
    %v3281 = vpop.f32.mrf.mxu0
    %v3282 = vadd.f32 0.0, %v3281
    %3283 = vmatmul.f32.gmra.mxu0 %v3207
    %v3284 = vpop.f32.mrf.mxu0
    %v3285 = vadd.f32 0.0, %v3284
    %3286 = vmatmul.f32.gmra.mxu0 %v3208
    %v3287 = vpop.f32.mrf.mxu0
    %v3288 = vadd.f32 0.0, %v3287
    %3289 = vmatmul.f32.gmra.mxu0 %v3209
    %v3290 = vpop.f32.mrf.mxu0
    %v3291 = vadd.f32 0.0, %v3290
    %3292 = vmatmul.f32.gmra.mxu0 %v3210
    %v3293 = vpop.f32.mrf.mxu0
    %v3294 = vadd.f32 0.0, %v3293
    %3295 = vmatmul.f32.gmra.mxu0 %v3211
    %v3296 = vpop.f32.mrf.mxu0
    %v3297 = vadd.f32 0.0, %v3296
    %3298 = vmatmul.f32.gmra.mxu0 %v3212
    %v3299 = vpop.f32.mrf.mxu0
    %v3300 = vadd.f32 0.0, %v3299
    %3301 = vmatmul.f32.gmra.mxu0 %v3213
    %v3302 = vpop.f32.mrf.mxu0
    %v3303 = vadd.f32 0.0, %v3302
    %3304 = vmatmul.f32.gmra.mxu0 %v3214
    %v3305 = vpop.f32.mrf.mxu0
    %v3306 = vadd.f32 0.0, %v3305
    %3307 = vmatmul.f32.gmra.mxu0 %v3215
    %v3308 = vpop.f32.mrf.mxu0
    %v3309 = vadd.f32 0.0, %v3308
    %3310 = vmatmul.f32.gmra.mxu0 %v3216
    %v3311 = vpop.f32.mrf.mxu0
    %v3312 = vadd.f32 0.0, %v3311
    %3313 = vmatmul.f32.gmra.mxu0 %v3217
    %v3314 = vpop.f32.mrf.mxu0
    %v3315 = vadd.f32 0.0, %v3314
    %3316 = vmatmul.f32.gmra.mxu0 %v3218
    %v3317 = vpop.f32.mrf.mxu0
    %v3318 = vadd.f32 0.0, %v3317
    %3319 = vmatmul.f32.gmra.mxu0 %v3219
    %v3320 = vpop.f32.mrf.mxu0
    %v3321 = vadd.f32 0.0, %v3320
    %3322 = vmatmul.f32.gmra.mxu0 %v3220
    %v3323 = vpop.f32.mrf.mxu0
    %v3324 = vadd.f32 0.0, %v3323
    %3325 = vmatmul.f32.gmra.mxu0 %v3221
    %v3326 = vpop.f32.mrf.mxu0
    %v3327 = vadd.f32 0.0, %v3326
    %3328 = vmatmul.f32.gmra.mxu0 %v3222
    %v3329 = vpop.f32.mrf.mxu0
    %v3330 = vadd.f32 0.0, %v3329
    %3331 = vmatmul.f32.gmra.mxu0 %v3223
    %v3332 = vpop.f32.mrf.mxu0
    %v3333 = vadd.f32 0.0, %v3332
    %3334 = vmatmul.f32.gmra.mxu0 %v3224
    %v3335 = vpop.f32.mrf.mxu0
    %v3336 = vadd.f32 0.0, %v3335
    %3337 = vmatmul.f32.gmra.mxu0 %v3225
    %v3338 = vpop.f32.mrf.mxu0
    %v3339 = vadd.f32 0.0, %v3338
    %3340 = vmatmul.f32.gmra.mxu0 %v3226
    %v3341 = vpop.f32.mrf.mxu0
    %v3342 = vadd.f32 0.0, %v3341
    %3343 = vmatmul.f32.gmra.mxu0 %v3227
    %v3344 = vpop.f32.mrf.mxu0
    %v3345 = vadd.f32 0.0, %v3344
    %3346 = vmatmul.f32.gmra.mxu0 %v3228
    %v3347 = vpop.f32.mrf.mxu0
    %v3348 = vadd.f32 0.0, %v3347
    %3349 = vmatmul.f32.gmra.mxu0 %v3229
    %v3350 = vpop.f32.mrf.mxu0
    %v3351 = vadd.f32 0.0, %v3350
    %3352 = vmatmul.f32.gmra.mxu0 %v3230
    %v3353 = vpop.f32.mrf.mxu0
    %v3354 = vadd.f32 0.0, %v3353
    %3355 = vmatmul.f32.gmra.mxu0 %v3231
    %v3356 = vpop.f32.mrf.mxu0
    %v3357 = vadd.f32 0.0, %v3356
    %3358 = vmatmul.f32.gmra.mxu0 %v3232
    %v3359 = vpop.f32.mrf.mxu0
    %v3360 = vadd.f32 0.0, %v3359
    %3361 = vdwg.mxu0
    %v3362 = vadd.f32 %v2954, %v3267
    %v3363 = vadd.f32 %v2955, %v3270
    %v3364 = vadd.f32 %v2956, %v3273
    %v3365 = vadd.f32 %v2957, %v3276
    %v3366 = vadd.f32 %v2958, %v3279
    %v3367 = vadd.f32 %v2959, %v3282
    %v3368 = vadd.f32 %v2960, %v3285
    %v3369 = vadd.f32 %v2961, %v3288
    %v3370 = vadd.f32 %v2962, %v3291
    %v3371 = vadd.f32 %v2963, %v3294
    %v3372 = vadd.f32 %v2964, %v3297
    %v3373 = vadd.f32 %v2965, %v3300
    %v3374 = vadd.f32 %v2966, %v3303
    %v3375 = vadd.f32 %v2967, %v3306
    %v3376 = vadd.f32 %v2968, %v3309
    %v3377 = vadd.f32 %v2969, %v3312
    %v3378 = vadd.f32 %v2970, %v3315
    %v3379 = vadd.f32 %v2971, %v3318
    %v3380 = vadd.f32 %v2972, %v3321
    %v3381 = vadd.f32 %v2973, %v3324
    %v3382 = vadd.f32 %v2974, %v3327
    %v3383 = vadd.f32 %v2975, %v3330
    %v3384 = vadd.f32 %v2976, %v3333
    %v3385 = vadd.f32 %v2977, %v3336
    %v3386 = vadd.f32 %v2978, %v3339
    %v3387 = vadd.f32 %v2979, %v3342
    %v3388 = vadd.f32 %v2980, %v3345
    %v3389 = vadd.f32 %v2981, %v3348
    %v3390 = vadd.f32 %v2982, %v3351
    %v3391 = vadd.f32 %v2983, %v3354
    %v3392 = vadd.f32 %v2984, %v3357
    %v3393 = vadd.f32 %v2985, %v3360
    %v3394 = vlaneseq
    %v3395 = vand.u32 %v3394, 127
    %vm3396 = vcmp.lt.s32.totalorder %v3395, 4
    %v3397 = vsel %vm3396, %v3362, -1e+30
    %v3398 = vsel %vm3396, %v3363, -1e+30
    %v3399 = vsel %vm3396, %v3364, -1e+30
    %v3400 = vsel %vm3396, %v3365, -1e+30
    %v3401 = vsel %vm3396, %v3366, -1e+30
    %v3402 = vsel %vm3396, %v3367, -1e+30
    %v3403 = vsel %vm3396, %v3368, -1e+30
    %v3404 = vsel %vm3396, %v3369, -1e+30
    %v3405 = vsel %vm3396, %v3370, -1e+30
    %v3406 = vsel %vm3396, %v3371, -1e+30
    %v3407 = vsel %vm3396, %v3372, -1e+30
    %v3408 = vsel %vm3396, %v3373, -1e+30
    %v3409 = vsel %vm3396, %v3374, -1e+30
    %v3410 = vsel %vm3396, %v3375, -1e+30
    %v3411 = vsel %vm3396, %v3376, -1e+30
    %v3412 = vsel %vm3396, %v3377, -1e+30
    %v3413 = vsel %vm3396, %v3378, -1e+30
    %v3414 = vsel %vm3396, %v3379, -1e+30
    %v3415 = vsel %vm3396, %v3380, -1e+30
    %v3416 = vsel %vm3396, %v3381, -1e+30
    %v3417 = vsel %vm3396, %v3382, -1e+30
    %v3418 = vsel %vm3396, %v3383, -1e+30
    %v3419 = vsel %vm3396, %v3384, -1e+30
    %v3420 = vsel %vm3396, %v3385, -1e+30
    %v3421 = vsel %vm3396, %v3386, -1e+30
    %v3422 = vsel %vm3396, %v3387, -1e+30
    %v3423 = vsel %vm3396, %v3388, -1e+30
    %v3424 = vsel %vm3396, %v3389, -1e+30
    %v3425 = vsel %vm3396, %v3390, -1e+30
    %v3426 = vsel %vm3396, %v3391, -1e+30
    %v3427 = vsel %vm3396, %v3392, -1e+30
    %v3428 = vsel %vm3396, %v3393, -1e+30
    %3429 = vmax.xlane.f32.xlu0 %v3397
    %v3430 = vpop.xlane.xlu0 %3429
    %3431 = vmax.xlane.f32.xlu0 %v3398
    %v3432 = vpop.xlane.xlu0 %3431
    %3433 = vmax.xlane.f32.xlu0 %v3399
    %v3434 = vpop.xlane.xlu0 %3433
    %3435 = vmax.xlane.f32.xlu0 %v3400
    %v3436 = vpop.xlane.xlu0 %3435
    %3437 = vmax.xlane.f32.xlu0 %v3401
    %v3438 = vpop.xlane.xlu0 %3437
    %3439 = vmax.xlane.f32.xlu0 %v3402
    %v3440 = vpop.xlane.xlu0 %3439
    %3441 = vmax.xlane.f32.xlu0 %v3403
    %v3442 = vpop.xlane.xlu0 %3441
    %3443 = vmax.xlane.f32.xlu0 %v3404
    %v3444 = vpop.xlane.xlu0 %3443
    %3445 = vmax.xlane.f32.xlu0 %v3405
    %v3446 = vpop.xlane.xlu0 %3445
    %3447 = vmax.xlane.f32.xlu0 %v3406
    %v3448 = vpop.xlane.xlu0 %3447
    %3449 = vmax.xlane.f32.xlu0 %v3407
    %v3450 = vpop.xlane.xlu0 %3449
    %3451 = vmax.xlane.f32.xlu0 %v3408
    %v3452 = vpop.xlane.xlu0 %3451
    %3453 = vmax.xlane.f32.xlu0 %v3409
    %v3454 = vpop.xlane.xlu0 %3453
    %3455 = vmax.xlane.f32.xlu0 %v3410
    %v3456 = vpop.xlane.xlu0 %3455
    %3457 = vmax.xlane.f32.xlu0 %v3411
    %v3458 = vpop.xlane.xlu0 %3457
    %3459 = vmax.xlane.f32.xlu0 %v3412
    %v3460 = vpop.xlane.xlu0 %3459
    %3461 = vmax.xlane.f32.xlu0 %v3413
    %v3462 = vpop.xlane.xlu0 %3461
    %3463 = vmax.xlane.f32.xlu0 %v3414
    %v3464 = vpop.xlane.xlu0 %3463
    %3465 = vmax.xlane.f32.xlu0 %v3415
    %v3466 = vpop.xlane.xlu0 %3465
    %3467 = vmax.xlane.f32.xlu0 %v3416
    %v3468 = vpop.xlane.xlu0 %3467
    %3469 = vmax.xlane.f32.xlu0 %v3417
    %v3470 = vpop.xlane.xlu0 %3469
    %3471 = vmax.xlane.f32.xlu0 %v3418
    %v3472 = vpop.xlane.xlu0 %3471
    %3473 = vmax.xlane.f32.xlu0 %v3419
    %v3474 = vpop.xlane.xlu0 %3473
    %3475 = vmax.xlane.f32.xlu0 %v3420
    %v3476 = vpop.xlane.xlu0 %3475
    %3477 = vmax.xlane.f32.xlu0 %v3421
    %v3478 = vpop.xlane.xlu0 %3477
    %3479 = vmax.xlane.f32.xlu0 %v3422
    %v3480 = vpop.xlane.xlu0 %3479
    %3481 = vmax.xlane.f32.xlu0 %v3423
    %v3482 = vpop.xlane.xlu0 %3481
    %3483 = vmax.xlane.f32.xlu0 %v3424
    %v3484 = vpop.xlane.xlu0 %3483
    %3485 = vmax.xlane.f32.xlu0 %v3425
    %v3486 = vpop.xlane.xlu0 %3485
    %3487 = vmax.xlane.f32.xlu0 %v3426
    %v3488 = vpop.xlane.xlu0 %3487
    %3489 = vmax.xlane.f32.xlu0 %v3427
    %v3490 = vpop.xlane.xlu0 %3489
    %3491 = vmax.xlane.f32.xlu0 %v3428
    %v3492 = vpop.xlane.xlu0 %3491
    %v3493 = vsub.f32 %v3397, %v3430
    %v3494 = vsub.f32 %v3398, %v3432
    %v3495 = vsub.f32 %v3399, %v3434
    %v3496 = vsub.f32 %v3400, %v3436
    %v3497 = vsub.f32 %v3401, %v3438
    %v3498 = vsub.f32 %v3402, %v3440
    %v3499 = vsub.f32 %v3403, %v3442
    %v3500 = vsub.f32 %v3404, %v3444
    %v3501 = vsub.f32 %v3405, %v3446
    %v3502 = vsub.f32 %v3406, %v3448
    %v3503 = vsub.f32 %v3407, %v3450
    %v3504 = vsub.f32 %v3408, %v3452
    %v3505 = vsub.f32 %v3409, %v3454
    %v3506 = vsub.f32 %v3410, %v3456
    %v3507 = vsub.f32 %v3411, %v3458
    %v3508 = vsub.f32 %v3412, %v3460
    %v3509 = vsub.f32 %v3413, %v3462
    %v3510 = vsub.f32 %v3414, %v3464
    %v3511 = vsub.f32 %v3415, %v3466
    %v3512 = vsub.f32 %v3416, %v3468
    %v3513 = vsub.f32 %v3417, %v3470
    %v3514 = vsub.f32 %v3418, %v3472
    %v3515 = vsub.f32 %v3419, %v3474
    %v3516 = vsub.f32 %v3420, %v3476
    %v3517 = vsub.f32 %v3421, %v3478
    %v3518 = vsub.f32 %v3422, %v3480
    %v3519 = vsub.f32 %v3423, %v3482
    %v3520 = vsub.f32 %v3424, %v3484
    %v3521 = vsub.f32 %v3425, %v3486
    %v3522 = vsub.f32 %v3426, %v3488
    %v3523 = vsub.f32 %v3427, %v3490
    %v3524 = vsub.f32 %v3428, %v3492
    %v3525 = vmul.f32 %v3493, 1.442695
    %v3526 = vpow.pop %v3525
    %v3527 = vmul.f32 %v3494, 1.442695
    %v3528 = vpow.pop %v3527
    %v3529 = vmul.f32 %v3495, 1.442695
    %v3530 = vpow.pop %v3529
    %v3531 = vmul.f32 %v3496, 1.442695
    %v3532 = vpow.pop %v3531
    %v3533 = vmul.f32 %v3497, 1.442695
    %v3534 = vpow.pop %v3533
    %v3535 = vmul.f32 %v3498, 1.442695
    %v3536 = vpow.pop %v3535
    %v3537 = vmul.f32 %v3499, 1.442695
    %v3538 = vpow.pop %v3537
    %v3539 = vmul.f32 %v3500, 1.442695
    %v3540 = vpow.pop %v3539
    %v3541 = vmul.f32 %v3501, 1.442695
    %v3542 = vpow.pop %v3541
    %v3543 = vmul.f32 %v3502, 1.442695
    %v3544 = vpow.pop %v3543
    %v3545 = vmul.f32 %v3503, 1.442695
    %v3546 = vpow.pop %v3545
    %v3547 = vmul.f32 %v3504, 1.442695
    %v3548 = vpow.pop %v3547
    %v3549 = vmul.f32 %v3505, 1.442695
    %v3550 = vpow.pop %v3549
    %v3551 = vmul.f32 %v3506, 1.442695
    %v3552 = vpow.pop %v3551
    %v3553 = vmul.f32 %v3507, 1.442695
    %v3554 = vpow.pop %v3553
    %v3555 = vmul.f32 %v3508, 1.442695
    %v3556 = vpow.pop %v3555
    %v3557 = vmul.f32 %v3509, 1.442695
    %v3558 = vpow.pop %v3557
    %v3559 = vmul.f32 %v3510, 1.442695
    %v3560 = vpow.pop %v3559
    %v3561 = vmul.f32 %v3511, 1.442695
    %v3562 = vpow.pop %v3561
    %v3563 = vmul.f32 %v3512, 1.442695
    %v3564 = vpow.pop %v3563
    %v3565 = vmul.f32 %v3513, 1.442695
    %v3566 = vpow.pop %v3565
    %v3567 = vmul.f32 %v3514, 1.442695
    %v3568 = vpow.pop %v3567
    %v3569 = vmul.f32 %v3515, 1.442695
    %v3570 = vpow.pop %v3569
    %v3571 = vmul.f32 %v3516, 1.442695
    %v3572 = vpow.pop %v3571
    %v3573 = vmul.f32 %v3517, 1.442695
    %v3574 = vpow.pop %v3573
    %v3575 = vmul.f32 %v3518, 1.442695
    %v3576 = vpow.pop %v3575
    %v3577 = vmul.f32 %v3519, 1.442695
    %v3578 = vpow.pop %v3577
    %v3579 = vmul.f32 %v3520, 1.442695
    %v3580 = vpow.pop %v3579
    %v3581 = vmul.f32 %v3521, 1.442695
    %v3582 = vpow.pop %v3581
    %v3583 = vmul.f32 %v3522, 1.442695
    %v3584 = vpow.pop %v3583
    %v3585 = vmul.f32 %v3523, 1.442695
    %v3586 = vpow.pop %v3585
    %v3587 = vmul.f32 %v3524, 1.442695
    %v3588 = vpow.pop %v3587
    %3589 = vadd.xlane.f32.xlu0 %v3526
    %v3590 = vpop.xlane.xlu0 %3589
    %3591 = vadd.xlane.f32.xlu0 %v3528
    %v3592 = vpop.xlane.xlu0 %3591
    %3593 = vadd.xlane.f32.xlu0 %v3530
    %v3594 = vpop.xlane.xlu0 %3593
    %3595 = vadd.xlane.f32.xlu0 %v3532
    %v3596 = vpop.xlane.xlu0 %3595
    %3597 = vadd.xlane.f32.xlu0 %v3534
    %v3598 = vpop.xlane.xlu0 %3597
    %3599 = vadd.xlane.f32.xlu0 %v3536
    %v3600 = vpop.xlane.xlu0 %3599
    %3601 = vadd.xlane.f32.xlu0 %v3538
    %v3602 = vpop.xlane.xlu0 %3601
    %3603 = vadd.xlane.f32.xlu0 %v3540
    %v3604 = vpop.xlane.xlu0 %3603
    %3605 = vadd.xlane.f32.xlu0 %v3542
    %v3606 = vpop.xlane.xlu0 %3605
    %3607 = vadd.xlane.f32.xlu0 %v3544
    %v3608 = vpop.xlane.xlu0 %3607
    %3609 = vadd.xlane.f32.xlu0 %v3546
    %v3610 = vpop.xlane.xlu0 %3609
    %3611 = vadd.xlane.f32.xlu0 %v3548
    %v3612 = vpop.xlane.xlu0 %3611
    %3613 = vadd.xlane.f32.xlu0 %v3550
    %v3614 = vpop.xlane.xlu0 %3613
    %3615 = vadd.xlane.f32.xlu0 %v3552
    %v3616 = vpop.xlane.xlu0 %3615
    %3617 = vadd.xlane.f32.xlu0 %v3554
    %v3618 = vpop.xlane.xlu0 %3617
    %3619 = vadd.xlane.f32.xlu0 %v3556
    %v3620 = vpop.xlane.xlu0 %3619
    %3621 = vadd.xlane.f32.xlu0 %v3558
    %v3622 = vpop.xlane.xlu0 %3621
    %3623 = vadd.xlane.f32.xlu0 %v3560
    %v3624 = vpop.xlane.xlu0 %3623
    %3625 = vadd.xlane.f32.xlu0 %v3562
    %v3626 = vpop.xlane.xlu0 %3625
    %3627 = vadd.xlane.f32.xlu0 %v3564
    %v3628 = vpop.xlane.xlu0 %3627
    %3629 = vadd.xlane.f32.xlu0 %v3566
    %v3630 = vpop.xlane.xlu0 %3629
    %3631 = vadd.xlane.f32.xlu0 %v3568
    %v3632 = vpop.xlane.xlu0 %3631
    %3633 = vadd.xlane.f32.xlu0 %v3570
    %v3634 = vpop.xlane.xlu0 %3633
    %3635 = vadd.xlane.f32.xlu0 %v3572
    %v3636 = vpop.xlane.xlu0 %3635
    %3637 = vadd.xlane.f32.xlu0 %v3574
    %v3638 = vpop.xlane.xlu0 %3637
    %3639 = vadd.xlane.f32.xlu0 %v3576
    %v3640 = vpop.xlane.xlu0 %3639
    %3641 = vadd.xlane.f32.xlu0 %v3578
    %v3642 = vpop.xlane.xlu0 %3641
    %3643 = vadd.xlane.f32.xlu0 %v3580
    %v3644 = vpop.xlane.xlu0 %3643
    %3645 = vadd.xlane.f32.xlu0 %v3582
    %v3646 = vpop.xlane.xlu0 %3645
    %3647 = vadd.xlane.f32.xlu0 %v3584
    %v3648 = vpop.xlane.xlu0 %3647
    %3649 = vadd.xlane.f32.xlu0 %v3586
    %v3650 = vpop.xlane.xlu0 %3649
    %3651 = vadd.xlane.f32.xlu0 %v3588
    %v3652 = vpop.xlane.xlu0 %3651
    %v3653 = vlog2.pop %v3590
    %v3654 = vmul.f32 %v3653, 0.6931472
    %v3655 = vlog2.pop %v3592
    %v3656 = vmul.f32 %v3655, 0.6931472
    %v3657 = vlog2.pop %v3594
    %v3658 = vmul.f32 %v3657, 0.6931472
    %v3659 = vlog2.pop %v3596
    %v3660 = vmul.f32 %v3659, 0.6931472
    %v3661 = vlog2.pop %v3598
    %v3662 = vmul.f32 %v3661, 0.6931472
    %v3663 = vlog2.pop %v3600
    %v3664 = vmul.f32 %v3663, 0.6931472
    %v3665 = vlog2.pop %v3602
    %v3666 = vmul.f32 %v3665, 0.6931472
    %v3667 = vlog2.pop %v3604
    %v3668 = vmul.f32 %v3667, 0.6931472
    %v3669 = vlog2.pop %v3606
    %v3670 = vmul.f32 %v3669, 0.6931472
    %v3671 = vlog2.pop %v3608
    %v3672 = vmul.f32 %v3671, 0.6931472
    %v3673 = vlog2.pop %v3610
    %v3674 = vmul.f32 %v3673, 0.6931472
    %v3675 = vlog2.pop %v3612
    %v3676 = vmul.f32 %v3675, 0.6931472
    %v3677 = vlog2.pop %v3614
    %v3678 = vmul.f32 %v3677, 0.6931472
    %v3679 = vlog2.pop %v3616
    %v3680 = vmul.f32 %v3679, 0.6931472
    %v3681 = vlog2.pop %v3618
    %v3682 = vmul.f32 %v3681, 0.6931472
    %v3683 = vlog2.pop %v3620
    %v3684 = vmul.f32 %v3683, 0.6931472
    %v3685 = vlog2.pop %v3622
    %v3686 = vmul.f32 %v3685, 0.6931472
    %v3687 = vlog2.pop %v3624
    %v3688 = vmul.f32 %v3687, 0.6931472
    %v3689 = vlog2.pop %v3626
    %v3690 = vmul.f32 %v3689, 0.6931472
    %v3691 = vlog2.pop %v3628
    %v3692 = vmul.f32 %v3691, 0.6931472
    %v3693 = vlog2.pop %v3630
    %v3694 = vmul.f32 %v3693, 0.6931472
    %v3695 = vlog2.pop %v3632
    %v3696 = vmul.f32 %v3695, 0.6931472
    %v3697 = vlog2.pop %v3634
    %v3698 = vmul.f32 %v3697, 0.6931472
    %v3699 = vlog2.pop %v3636
    %v3700 = vmul.f32 %v3699, 0.6931472
    %v3701 = vlog2.pop %v3638
    %v3702 = vmul.f32 %v3701, 0.6931472
    %v3703 = vlog2.pop %v3640
    %v3704 = vmul.f32 %v3703, 0.6931472
    %v3705 = vlog2.pop %v3642
    %v3706 = vmul.f32 %v3705, 0.6931472
    %v3707 = vlog2.pop %v3644
    %v3708 = vmul.f32 %v3707, 0.6931472
    %v3709 = vlog2.pop %v3646
    %v3710 = vmul.f32 %v3709, 0.6931472
    %v3711 = vlog2.pop %v3648
    %v3712 = vmul.f32 %v3711, 0.6931472
    %v3713 = vlog2.pop %v3650
    %v3714 = vmul.f32 %v3713, 0.6931472
    %v3715 = vlog2.pop %v3652
    %v3716 = vmul.f32 %v3715, 0.6931472
    %v3717 = vsub.f32 %v3493, %v3654
    %v3718 = vsub.f32 %v3494, %v3656
    %v3719 = vsub.f32 %v3495, %v3658
    %v3720 = vsub.f32 %v3496, %v3660
    %v3721 = vsub.f32 %v3497, %v3662
    %v3722 = vsub.f32 %v3498, %v3664
    %v3723 = vsub.f32 %v3499, %v3666
    %v3724 = vsub.f32 %v3500, %v3668
    %v3725 = vsub.f32 %v3501, %v3670
    %v3726 = vsub.f32 %v3502, %v3672
    %v3727 = vsub.f32 %v3503, %v3674
    %v3728 = vsub.f32 %v3504, %v3676
    %v3729 = vsub.f32 %v3505, %v3678
    %v3730 = vsub.f32 %v3506, %v3680
    %v3731 = vsub.f32 %v3507, %v3682
    %v3732 = vsub.f32 %v3508, %v3684
    %v3733 = vsub.f32 %v3509, %v3686
    %v3734 = vsub.f32 %v3510, %v3688
    %v3735 = vsub.f32 %v3511, %v3690
    %v3736 = vsub.f32 %v3512, %v3692
    %v3737 = vsub.f32 %v3513, %v3694
    %v3738 = vsub.f32 %v3514, %v3696
    %v3739 = vsub.f32 %v3515, %v3698
    %v3740 = vsub.f32 %v3516, %v3700
    %v3741 = vsub.f32 %v3517, %v3702
    %v3742 = vsub.f32 %v3518, %v3704
    %v3743 = vsub.f32 %v3519, %v3706
    %v3744 = vsub.f32 %v3520, %v3708
    %v3745 = vsub.f32 %v3521, %v3710
    %v3746 = vsub.f32 %v3522, %v3712
    %v3747 = vsub.f32 %v3523, %v3714
    %v3748 = vsub.f32 %v3524, %v3716
    %3749 = vst [vmem:[#allocation8] sm:$0xff] %v3717
    %3750 = vst [vmem:[#allocation8 + $0x8] sm:$0xff] %v3718
    %3751 = vst [vmem:[#allocation8 + $0x10] sm:$0xff] %v3719
    %3752 = vst [vmem:[#allocation8 + $0x18] sm:$0xff] %v3720
    %3753 = vst [vmem:[#allocation8 + $0x20] sm:$0xff] %v3721
    %3754 = vst [vmem:[#allocation8 + $0x28] sm:$0xff] %v3722
    %3755 = vst [vmem:[#allocation8 + $0x30] sm:$0xff] %v3723
    %3756 = vst [vmem:[#allocation8 + $0x38] sm:$0xff] %v3724
    %3757 = vst [vmem:[#allocation8 + $0x40] sm:$0xff] %v3725
    %3758 = vst [vmem:[#allocation8 + $0x48] sm:$0xff] %v3726
    %3759 = vst [vmem:[#allocation8 + $0x50] sm:$0xff] %v3727
    %3760 = vst [vmem:[#allocation8 + $0x58] sm:$0xff] %v3728
    %3761 = vst [vmem:[#allocation8 + $0x60] sm:$0xff] %v3729
    %3762 = vst [vmem:[#allocation8 + $0x68] sm:$0xff] %v3730
    %3763 = vst [vmem:[#allocation8 + $0x70] sm:$0xff] %v3731
    %3764 = vst [vmem:[#allocation8 + $0x78] sm:$0xff] %v3732
    %3765 = vst [vmem:[#allocation8 + $0x80] sm:$0xff] %v3733
    %3766 = vst [vmem:[#allocation8 + $0x88] sm:$0xff] %v3734
    %3767 = vst [vmem:[#allocation8 + $0x90] sm:$0xff] %v3735
    %3768 = vst [vmem:[#allocation8 + $0x98] sm:$0xff] %v3736
    %3769 = vst [vmem:[#allocation8 + $0xa0] sm:$0xff] %v3737
    %3770 = vst [vmem:[#allocation8 + $0xa8] sm:$0xff] %v3738
    %3771 = vst [vmem:[#allocation8 + $0xb0] sm:$0xff] %v3739
    %3772 = vst [vmem:[#allocation8 + $0xb8] sm:$0xff] %v3740
    %3773 = vst [vmem:[#allocation8 + $0xc0] sm:$0xff] %v3741
    %3774 = vst [vmem:[#allocation8 + $0xc8] sm:$0xff] %v3742
    %3775 = vst [vmem:[#allocation8 + $0xd0] sm:$0xff] %v3743
    %3776 = vst [vmem:[#allocation8 + $0xd8] sm:$0xff] %v3744
    %3777 = vst [vmem:[#allocation8 + $0xe0] sm:$0xff] %v3745
    %3778 = vst [vmem:[#allocation8 + $0xe8] sm:$0xff] %v3746
    %3779 = vst [vmem:[#allocation8 + $0xf0] sm:$0xff] %v3747
    %3780 = vst [vmem:[#allocation8 + $0xf8] sm:$0xff] %v3748
    // Predicated region
    $region54: #{tpu_custom_call.1} parent=1 // pred_check
      _
    $region55: #{tpu_custom_call.1} parent=1 // pred_check_branch
      %3782 = sbr.rel (0) target = $region57
    $region56: #{tpu_custom_call.1} parent=1 // pred_region
      %3784 = vsyncadd [#allocation4], 0
      %s3785 = sshll.u32 [#allocation8], 4
      %s3786 = int_to_ptr.vmem [resolvable:$true] %s3785
      %s3787 = sshll.u32 %s10, 4
      %s3788 = int_to_ptr.hbm [resolvable:$true] %s3787
      %3793 = dma.vmem_to_hbm [thread:$0]  %s3786, 4096, %s3788, [#allocation4], 128, 128, 8
    $region57: #{tpu_custom_call.1} parent=1 // pred_fallthru
      _
    // Predicated region
    $region58: #{tpu_custom_call.1} parent=1 // pred_check
      _
    $region59: #{tpu_custom_call.1} parent=1 // pred_check_branch
      %3795 = sbr.rel (0) target = $region61
    $region60: #{tpu_custom_call.1} parent=1 // pred_region
      %3797 = dma.done [#allocation4], 4096
    $region61: #{tpu_custom_call.1} parent=1 // pred_fallthru
      _
    %3798 = vsyncpa [#allocation3], 1
    %3799 = vsyncpa [#allocation6], 1
    %3800 = vsyncpa [#allocation4], 1

</llo_original>
